<compile_context>
chip_gen: v5e
topology: v5e:2x2
jax: 0.10.0
libtpu: 0.0.40
codegen_flags: <defaults>
</compile_context>

<pallas_src>
import functools

import jax
import jax.numpy as jnp
from jax.experimental import pallas as pl
from jax.experimental.pallas import tpu as pltpu


# ---------------------------------------------------------------------------
# Fused kernel: LayerNorm + fc1/fc2 + residuals + per-sample LayerNorm +
#               grouped 3x3 conv + final residual/doubling.  One grid step
#               handles one sample (full N = H*W rows).
# ---------------------------------------------------------------------------
def _sum_all(a):
    return jnp.sum(jnp.sum(a, axis=1, keepdims=True), axis=0, keepdims=True)


def _roll_rows(a, s):
    """out[n] = a[(n + s) mod N].  Rows that wrap around correspond to spatial
    positions outside the image and are zeroed by the tap mask, so a modular
    roll (two static slices + concat, no zero buffer) is exact."""
    if s == 0:
        return a
    n = a.shape[0]
    shift = (-s) % n
    if shift == 0:
        return a
    return jnp.roll(a, shift=shift, axis=0)


def _ucm_block_kernel(x_ref, g_ref, be_ref, w1_ref, b1_ref, w2_ref, b2_ref,
                      t1_ref, t2_ref, hh_ref, ww_ref, cb_ref, o_ref,
                      *, H, W, eps_ln, eps_dw):
    x = x_ref[...].astype(jnp.float32)                      # (N, C)
    n, c = x.shape

    # ---- norm2: per-row LayerNorm (affine), biased variance, eps=1e-5 ----
    u = jnp.mean(x, axis=-1, keepdims=True)
    xc = x - u
    var = jnp.mean(xc * xc, axis=-1, keepdims=True)
    y = xc * (jax.lax.rsqrt(var + eps_ln) * g_ref[...]) + be_ref[...]

    # ---- branch 1: fc1(y) + y ; branch 2: fc2(y) + y ----------------------
    # (the row swaps around fc2 cancel exactly: fc2 is a row-wise op, so
    #  swap -> fc2 -> swap == fc2 on the original rows)
    h1 = jnp.dot(y, w1_ref[...], preferred_element_type=jnp.float32)
    h1 = h1 + b1_ref[...] + y
    h2 = jnp.dot(y, w2_ref[...], preferred_element_type=jnp.float32)
    h2 = h2 + b2_ref[...] + y

    # ---- F.layer_norm(cat, [2C, H, W]): per-sample stats over ALL elements
    # of the concatenated tensor (layout independent), biased var, no affine.
    cnt = 2.0 * n * c
    mu = (_sum_all(h1) + _sum_all(h2)) / cnt                # (1, 1)
    d1 = h1 - mu
    d2 = h2 - mu
    var2 = (_sum_all(d1 * d1) + _sum_all(d2 * d2)) / cnt
    inv = jax.lax.rsqrt(var2 + eps_dw)
    a1 = d1 * inv
    a2 = d2 * inv

    # ---- grouped 3x3 conv as nine shifted MXU matmuls + border masks ------
    # For tap t=(dh,dw):
    #   out[n, g] += mask_t[n] * (a1[n+s] @ T1_t + a2[n+s] @ T2_t)[g],
    # where s = dh*W + dw and mask_t kills rows whose (h+dh, w+dw) falls
    # outside the image (computed from the prebuilt (N,1) h/w index maps).
    hh = hh_ref[...]                                        # (N, 1) int32
    ww = ww_ref[...]                                        # (N, 1) int32
    acc = jnp.zeros((n, c), jnp.float32)
    t = 0
    for dh in (-1, 0, 1):
        for dw in (-1, 0, 1):
            s = dh * W + dw
            valid = ((hh + dh >= 0) & (hh + dh < H) &
                     (ww + dw >= 0) & (ww + dw < W))
            mask = valid.astype(jnp.float32)                # (N, 1)
            contrib = (
                jnp.dot(_roll_rows(a1, s), t1_ref[t],
                        preferred_element_type=jnp.float32)
                + jnp.dot(_roll_rows(a2, s), t2_ref[t],
                          preferred_element_type=jnp.float32))
            acc = acc + mask * contrib
            t += 1

    out = acc + cb_ref[...] + y                             # conv bias, += x1
    o_ref[...] = (out + out).astype(o_ref.dtype)            # x + drop_path(x)


def _ucm_forward(x, ln_g, ln_b, w1t, b1, w2t, b2, taps1, taps2, hh, ww, cb,
                 H, W, eps_ln, eps_dw):
    B, N, C = x.shape
    kernel = functools.partial(_ucm_block_kernel, H=H, W=W,
                               eps_ln=eps_ln, eps_dw=eps_dw)
    # TODO(synk): for very large N*C this per-sample block may exceed VMEM;
    # a two-pass (row-tiled MLP, per-sample conv) fallback would be needed.
    return pl.pallas_call(
        kernel,
        out_shape=jax.ShapeDtypeStruct((B, N, C), x.dtype),
        grid_spec=pltpu.PrefetchScalarGridSpec(
            num_scalar_prefetch=0,
            grid=(B,),
            in_specs=[
                pl.BlockSpec((None, N, C), lambda b: (b, 0, 0)),   # x
                pl.BlockSpec((1, C), lambda b: (0, 0)),            # ln gamma
                pl.BlockSpec((1, C), lambda b: (0, 0)),            # ln beta
                pl.BlockSpec((C, C), lambda b: (0, 0)),            # W1^T
                pl.BlockSpec((1, C), lambda b: (0, 0)),            # b1
                pl.BlockSpec((C, C), lambda b: (0, 0)),            # W2^T
                pl.BlockSpec((1, C), lambda b: (0, 0)),            # b2
                pl.BlockSpec((9, C, C), lambda b: (0, 0, 0)),      # taps1
                pl.BlockSpec((9, C, C), lambda b: (0, 0, 0)),      # taps2
                pl.BlockSpec((N, 1), lambda b: (0, 0)),            # h index
                pl.BlockSpec((N, 1), lambda b: (0, 0)),            # w index
                pl.BlockSpec((1, C), lambda b: (0, 0)),            # conv bias
            ],
            out_specs=pl.BlockSpec((None, N, C), lambda b: (b, 0, 0)),
        ),
        compiler_params=pltpu.CompilerParams(
            dimension_semantics=("parallel",),
            vmem_limit_bytes=48 * 1024 * 1024),
    )(x, ln_g.reshape(1, C), ln_b.reshape(1, C), w1t, b1.reshape(1, C),
      w2t, b2.reshape(1, C), taps1, taps2, hh, ww, cb.reshape(1, C))


# ---------------------------------------------------------------------------
# Host-side parameter / geometry preprocessing
# ---------------------------------------------------------------------------
def _conv_tap_matrices(cw):
    """cw: (C, 2, 3, 3) PyTorch grouped-conv weight (groups=C, 2 in-ch/group).
    Build dense per-tap channel-mixing matrices M[kh*3+kw][2g+ci, g] =
    cw[g, ci, kh, kw] and split them into the rows that read branch-1
    channels (j < C of the concat) and branch-2 channels (j >= C)."""
    C = cw.shape[0]
    full = jnp.zeros((3, 3, 2 * C, C), dtype=jnp.float32)
    g = jnp.arange(C)
    for ci in range(2):
        vals = jnp.transpose(cw[:, ci, :, :], (1, 2, 0))    # (3, 3, C)
        full = full.at[:, :, 2 * g + ci, g].set(vals)
    full = full.reshape(9, 2 * C, C)
    return full[:, :C, :], full[:, C:, :]


def _spatial_index_maps(H, W):
    """(N, 1) int32 row->h and row->w maps (precomputed so the kernel only
    does compares; no in-kernel vector integer division)."""
    n = jnp.arange(H * W, dtype=jnp.int32)
    hh = (n // W).astype(jnp.int32).reshape(H * W, 1)
    ww = (n % W).astype(jnp.int32).reshape(H * W, 1)
    return hh, ww


def _trunc_normal(key, shape, std=0.02):
    return jnp.clip(jax.random.normal(key, shape, jnp.float32) * std,
                    -2.0 * std, 2.0 * std)


class UCMBlock1:
    """JAX/Pallas port of UCMBlock1.  The PyTorch forward is only shape
    consistent when int(dim * mlp_ratio) == dim, so pass mlp_ratio=1.0."""

    def __init__(self, dim, mlp_ratio=4.0, drop=0.0, drop_path=0.0, key=None):
        hidden = int(dim * mlp_ratio)
        assert hidden == dim, "UCMBlock1.forward requires int(dim*mlp_ratio)==dim"
        assert drop_path == 0.0, "only drop_path=0.0 (Identity) is supported"
        if key is None:
            key = jax.random.PRNGKey(0)
        k1, k2, k3 = jax.random.split(key, 3)
        self.dim, self.hidden = dim, hidden
        self.eps_ln = 1e-5            # nn.LayerNorm default
        self.eps_dw = 1e-5            # F.layer_norm default
        # norm2 (init: weight=1, bias=0)
        self.ln_g = jnp.ones((dim,), jnp.float32)
        self.ln_b = jnp.zeros((dim,), jnp.float32)
        # fc1 / fc2 (trunc_normal std=0.02, bias=0); torch layout (out, in)
        self.w1 = _trunc_normal(k1, (hidden, dim))
        self.b1 = jnp.zeros((hidden,), jnp.float32)
        self.w2 = _trunc_normal(k2, (dim, hidden))
        self.b2 = jnp.zeros((dim,), jnp.float32)
        self.w1t = jnp.transpose(self.w1)      # (dim, hidden) for y @ W1^T
        self.w2t = jnp.transpose(self.w2)      # (hidden, dim)
        # DWConv1: Conv2d(2*hidden, hidden, 3, 1, 1, bias=True, groups=hidden)
        fan_out = 3 * 3 * hidden // hidden     # = 9
        self.cw = (jax.random.normal(k3, (hidden, 2, 3, 3), jnp.float32)
                   * jnp.sqrt(2.0 / fan_out))
        self.cb = jnp.zeros((hidden,), jnp.float32)
        self.taps1, self.taps2 = _conv_tap_matrices(self.cw)
        self.drop = drop  # nn.Dropout(drop) is never used in the torch forward

    def __call__(self, x, H, W):
        B, N, C = x.shape
        assert C == self.dim and N == H * W
        hh, ww = _spatial_index_maps(H, W)
        return _ucm_forward(x, self.ln_g, self.ln_b, self.w1t, self.b1,
                            self.w2t, self.b2, self.taps1, self.taps2,
                            hh, ww, self.cb, H, W, self.eps_ln, self.eps_dw)


# ---------------------------------------------------------------------------
# Pure-JAX reference (mirrors the torch forward literally, including swaps)
# ---------------------------------------------------------------------------
def _ref_forward(blk, x, H, W):
    B, N, C = x.shape
    u = jnp.mean(x, axis=-1, keepdims=True)
    v = jnp.mean((x - u) ** 2, axis=-1, keepdims=True)
    xn = (x - u) / jnp.sqrt(v + blk.eps_ln) * blk.ln_g + blk.ln_b
    x1 = xn
    xf = xn.reshape(B * N, C)

    hi = jnp.dot(xf, blk.w1.T, precision=jax.lax.Precision.HIGHEST) + blk.b1
    hi = hi.reshape(B, N, -1) + x1

    idx = jnp.array([0, B * N - 1])
    x2 = xf.at[idx].set(xf[idx[::-1]])
    h2 = jnp.dot(x2, blk.w2.T, precision=jax.lax.Precision.HIGHEST) + blk.b2
    h2 = h2.at[idx].set(h2[idx[::-1]])
    h2 = h2.reshape(B, N, -1) + x1

    cat = jnp.concatenate([hi, h2], axis=2)                  # (B, N, 2C)

    xc = jnp.transpose(cat, (0, 2, 1)).reshape(B, 2 * C, H, W)
    u2 = jnp.mean(xc, axis=(1, 2, 3), keepdims=True)
    v2 = jnp.mean((xc - u2) ** 2, axis=(1, 2, 3), keepdims=True)
    xcn = (xc - u2) / jnp.sqrt(v2 + blk.eps_dw)
    conv = jax.lax.conv_general_dilated(
        xcn, blk.cw, window_strides=(1, 1), padding=((1, 1), (1, 1)),
        dimension_numbers=("NCHW", "OIHW", "NCHW"),
        feature_group_count=C,
        precision=jax.lax.Precision.HIGHEST) + blk.cb[None, :, None, None]
    dw = jnp.transpose(conv.reshape(B, C, N), (0, 2, 1))

    out = dw + x1
    return out + out


if __name__ == "__main__":
    key = jax.random.PRNGKey(0)
    kx, kp = jax.random.split(key)
    B, H, W, dim = 2, 8, 8, 32
    N = H * W
    x = jax.random.normal(kx, (B, N, dim), dtype=jnp.float32)

    # mlp_ratio must be 1.0 for the original forward to be shape-consistent.
    blk = UCMBlock1(dim, mlp_ratio=1.0, key=kp)
    out = jax.block_until_ready(blk(x, H, W))
    assert out.shape == (B, N, dim)

    ref = _ref_forward(blk, x, H, W)
    err = float(jnp.max(jnp.abs(out - ref)))
    scale = float(jnp.max(jnp.abs(ref))) + 1.0
    assert err / scale < 2e-2, f"mismatch: max abs err {err}, ref scale {scale}"
    print("KERNEL_OK")
</pallas_src>

<mosaic_0001>
module attributes {stable_mosaic.version = 11 : i64} {
  func.func @_ucm_block_kernel(%arg0: i32, %arg1: memref<1x64x32xf32, #tpu.memory_space<vmem>>, %arg2: memref<1x32xf32, #tpu.memory_space<vmem>>, %arg3: memref<1x32xf32, #tpu.memory_space<vmem>>, %arg4: memref<32x32xf32, #tpu.memory_space<vmem>>, %arg5: memref<1x32xf32, #tpu.memory_space<vmem>>, %arg6: memref<32x32xf32, #tpu.memory_space<vmem>>, %arg7: memref<1x32xf32, #tpu.memory_space<vmem>>, %arg8: memref<9x32x32xf32, #tpu.memory_space<vmem>>, %arg9: memref<9x32x32xf32, #tpu.memory_space<vmem>>, %arg10: memref<64x1xi32, #tpu.memory_space<vmem>>, %arg11: memref<64x1xi32, #tpu.memory_space<vmem>>, %arg12: memref<1x32xf32, #tpu.memory_space<vmem>>, %arg13: memref<1x64x32xf32, #tpu.memory_space<vmem>>) attributes {dimension_semantics = [#tpu.dimension_semantics<parallel>], iteration_bounds = array<i64: 2>, scalar_prefetch = 0 : i64, scratch_operands = 0 : i64, tpu.core_type = #tpu.core_type<tc>, window_params = [{transform_indices = @transform_0, window_bounds = array<i64: 1, 64, 32>}, {pipeline_mode = #tpu.pipeline_mode<synchronous>, transform_indices = @transform_1, window_bounds = array<i64: 1, 32>}, {pipeline_mode = #tpu.pipeline_mode<synchronous>, transform_indices = @transform_2, window_bounds = array<i64: 1, 32>}, {pipeline_mode = #tpu.pipeline_mode<synchronous>, transform_indices = @transform_3, window_bounds = array<i64: 32, 32>}, {pipeline_mode = #tpu.pipeline_mode<synchronous>, transform_indices = @transform_4, window_bounds = array<i64: 1, 32>}, {pipeline_mode = #tpu.pipeline_mode<synchronous>, transform_indices = @transform_5, window_bounds = array<i64: 32, 32>}, {pipeline_mode = #tpu.pipeline_mode<synchronous>, transform_indices = @transform_6, window_bounds = array<i64: 1, 32>}, {pipeline_mode = #tpu.pipeline_mode<synchronous>, transform_indices = @transform_7, window_bounds = array<i64: 9, 32, 32>}, {pipeline_mode = #tpu.pipeline_mode<synchronous>, transform_indices = @transform_8, window_bounds = array<i64: 9, 32, 32>}, {pipeline_mode = #tpu.pipeline_mode<synchronous>, transform_indices = @transform_9, window_bounds = array<i64: 64, 1>}, {pipeline_mode = #tpu.pipeline_mode<synchronous>, transform_indices = @transform_10, window_bounds = array<i64: 64, 1>}, {pipeline_mode = #tpu.pipeline_mode<synchronous>, transform_indices = @transform_11, window_bounds = array<i64: 1, 32>}, {transform_indices = @transform_12, window_bounds = array<i64: 1, 64, 32>}]} {
    %c0 = arith.constant 0 : index
    %c0_0 = arith.constant 0 : index
    %c0_1 = arith.constant 0 : index
    %0 = vector.load %arg1[%c0, %c0_0, %c0_1] : memref<1x64x32xf32, #tpu.memory_space<vmem>>, vector<1x64x32xf32>
    %1 = vector.shape_cast %0 : vector<1x64x32xf32> to vector<64x32xf32>
    %cst = arith.constant dense<0.000000e+00> : vector<64xf32>
    %2 = vector.multi_reduction <add>, %1, %cst [1] : vector<64x32xf32> to vector<64xf32>
    %3 = vector.shape_cast %2 : vector<64xf32> to vector<64x1xf32>
    %cst_2 = arith.constant 3.200000e+01 : f32
    %4 = vector.broadcast %cst_2 : f32 to vector<64x1xf32>
    %5 = arith.divf %3, %4 : vector<64x1xf32>
    %6 = vector.broadcast %5 : vector<64x1xf32> to vector<64x32xf32>
    %7 = arith.subf %1, %6 : vector<64x32xf32>
    %8 = arith.mulf %7, %7 : vector<64x32xf32>
    %cst_3 = arith.constant dense<0.000000e+00> : vector<64xf32>
    %9 = vector.multi_reduction <add>, %8, %cst_3 [1] : vector<64x32xf32> to vector<64xf32>
    %10 = vector.shape_cast %9 : vector<64xf32> to vector<64x1xf32>
    %cst_4 = arith.constant 3.200000e+01 : f32
    %11 = vector.broadcast %cst_4 : f32 to vector<64x1xf32>
    %12 = arith.divf %10, %11 : vector<64x1xf32>
    %cst_5 = arith.constant 9.99999974E-6 : f32
    %13 = vector.broadcast %cst_5 : f32 to vector<64x1xf32>
    %14 = arith.addf %12, %13 : vector<64x1xf32>
    %15 = math.rsqrt %14 : vector<64x1xf32>
    %c0_6 = arith.constant 0 : index
    %c0_7 = arith.constant 0 : index
    %16 = vector.load %arg2[%c0_6, %c0_7] : memref<1x32xf32, #tpu.memory_space<vmem>>, vector<1x32xf32>
    %17 = vector.broadcast %15 : vector<64x1xf32> to vector<64x32xf32>
    %18 = vector.broadcast %16 : vector<1x32xf32> to vector<64x32xf32>
    %19 = arith.mulf %17, %18 : vector<64x32xf32>
    %20 = arith.mulf %7, %19 : vector<64x32xf32>
    %c0_8 = arith.constant 0 : index
    %c0_9 = arith.constant 0 : index
    %21 = vector.load %arg3[%c0_8, %c0_9] : memref<1x32xf32, #tpu.memory_space<vmem>>, vector<1x32xf32>
    %22 = vector.broadcast %21 : vector<1x32xf32> to vector<64x32xf32>
    %23 = arith.addf %20, %22 : vector<64x32xf32>
    %c0_10 = arith.constant 0 : index
    %c0_11 = arith.constant 0 : index
    %24 = vector.load %arg4[%c0_10, %c0_11] : memref<32x32xf32, #tpu.memory_space<vmem>>, vector<32x32xf32>
    %cst_12 = arith.constant dense<0.000000e+00> : vector<64x32xf32>
    %25 = tpu.matmul %23, %24, %cst_12 {dimension_numbers = #tpu.dot_dimension_numbers<[1], [0], [0], [1], [0, 0, 1, 1], [], []>} : vector<64x32xf32>, vector<32x32xf32>, vector<64x32xf32> -> vector<64x32xf32>
    %c0_13 = arith.constant 0 : index
    %c0_14 = arith.constant 0 : index
    %26 = vector.load %arg5[%c0_13, %c0_14] : memref<1x32xf32, #tpu.memory_space<vmem>>, vector<1x32xf32>
    %27 = vector.broadcast %26 : vector<1x32xf32> to vector<64x32xf32>
    %28 = arith.addf %25, %27 : vector<64x32xf32>
    %29 = arith.addf %28, %23 : vector<64x32xf32>
    %c0_15 = arith.constant 0 : index
    %c0_16 = arith.constant 0 : index
    %30 = vector.load %arg6[%c0_15, %c0_16] : memref<32x32xf32, #tpu.memory_space<vmem>>, vector<32x32xf32>
    %cst_17 = arith.constant dense<0.000000e+00> : vector<64x32xf32>
    %31 = tpu.matmul %23, %30, %cst_17 {dimension_numbers = #tpu.dot_dimension_numbers<[1], [0], [0], [1], [0, 0, 1, 1], [], []>} : vector<64x32xf32>, vector<32x32xf32>, vector<64x32xf32> -> vector<64x32xf32>
    %c0_18 = arith.constant 0 : index
    %c0_19 = arith.constant 0 : index
    %32 = vector.load %arg7[%c0_18, %c0_19] : memref<1x32xf32, #tpu.memory_space<vmem>>, vector<1x32xf32>
    %33 = vector.broadcast %32 : vector<1x32xf32> to vector<64x32xf32>
    %34 = arith.addf %31, %33 : vector<64x32xf32>
    %35 = arith.addf %34, %23 : vector<64x32xf32>
    %cst_20 = arith.constant dense<0.000000e+00> : vector<64xf32>
    %36 = vector.multi_reduction <add>, %29, %cst_20 [1] : vector<64x32xf32> to vector<64xf32>
    %37 = vector.shape_cast %36 : vector<64xf32> to vector<64x1xf32>
    %cst_21 = arith.constant dense<0.000000e+00> : vector<1xf32>
    %38 = vector.multi_reduction <add>, %37, %cst_21 [0] : vector<64x1xf32> to vector<1xf32>
    %39 = vector.shape_cast %38 : vector<1xf32> to vector<1x1xf32>
    %cst_22 = arith.constant dense<0.000000e+00> : vector<64xf32>
    %40 = vector.multi_reduction <add>, %35, %cst_22 [1] : vector<64x32xf32> to vector<64xf32>
    %41 = vector.shape_cast %40 : vector<64xf32> to vector<64x1xf32>
    %cst_23 = arith.constant dense<0.000000e+00> : vector<1xf32>
    %42 = vector.multi_reduction <add>, %41, %cst_23 [0] : vector<64x1xf32> to vector<1xf32>
    %43 = vector.shape_cast %42 : vector<1xf32> to vector<1x1xf32>
    %44 = arith.addf %39, %43 : vector<1x1xf32>
    %cst_24 = arith.constant 4.096000e+03 : f32
    %45 = vector.broadcast %cst_24 : f32 to vector<1x1xf32>
    %46 = arith.divf %44, %45 : vector<1x1xf32>
    %47 = vector.broadcast %46 : vector<1x1xf32> to vector<64x32xf32>
    %48 = arith.subf %29, %47 : vector<64x32xf32>
    %49 = vector.broadcast %46 : vector<1x1xf32> to vector<64x32xf32>
    %50 = arith.subf %35, %49 : vector<64x32xf32>
    %51 = arith.mulf %48, %48 : vector<64x32xf32>
    %cst_25 = arith.constant dense<0.000000e+00> : vector<64xf32>
    %52 = vector.multi_reduction <add>, %51, %cst_25 [1] : vector<64x32xf32> to vector<64xf32>
    %53 = vector.shape_cast %52 : vector<64xf32> to vector<64x1xf32>
    %cst_26 = arith.constant dense<0.000000e+00> : vector<1xf32>
    %54 = vector.multi_reduction <add>, %53, %cst_26 [0] : vector<64x1xf32> to vector<1xf32>
    %55 = vector.shape_cast %54 : vector<1xf32> to vector<1x1xf32>
    %56 = arith.mulf %50, %50 : vector<64x32xf32>
    %cst_27 = arith.constant dense<0.000000e+00> : vector<64xf32>
    %57 = vector.multi_reduction <add>, %56, %cst_27 [1] : vector<64x32xf32> to vector<64xf32>
    %58 = vector.shape_cast %57 : vector<64xf32> to vector<64x1xf32>
    %cst_28 = arith.constant dense<0.000000e+00> : vector<1xf32>
    %59 = vector.multi_reduction <add>, %58, %cst_28 [0] : vector<64x1xf32> to vector<1xf32>
    %60 = vector.shape_cast %59 : vector<1xf32> to vector<1x1xf32>
    %61 = arith.addf %55, %60 : vector<1x1xf32>
    %cst_29 = arith.constant 4.096000e+03 : f32
    %62 = vector.broadcast %cst_29 : f32 to vector<1x1xf32>
    %63 = arith.divf %61, %62 : vector<1x1xf32>
    %cst_30 = arith.constant 9.99999974E-6 : f32
    %64 = vector.broadcast %cst_30 : f32 to vector<1x1xf32>
    %65 = arith.addf %63, %64 : vector<1x1xf32>
    %66 = math.rsqrt %65 : vector<1x1xf32>
    %67 = vector.broadcast %66 : vector<1x1xf32> to vector<64x32xf32>
    %68 = arith.mulf %48, %67 : vector<64x32xf32>
    %69 = vector.broadcast %66 : vector<1x1xf32> to vector<64x32xf32>
    %70 = arith.mulf %50, %69 : vector<64x32xf32>
    %c0_31 = arith.constant 0 : index
    %c0_32 = arith.constant 0 : index
    %71 = vector.load %arg10[%c0_31, %c0_32] : memref<64x1xi32, #tpu.memory_space<vmem>>, vector<64x1xi32>
    %c0_33 = arith.constant 0 : index
    %c0_34 = arith.constant 0 : index
    %72 = vector.load %arg11[%c0_33, %c0_34] : memref<64x1xi32, #tpu.memory_space<vmem>>, vector<64x1xi32>
    %cst_35 = arith.constant 0.000000e+00 : f32
    %73 = vector.broadcast %cst_35 : f32 to vector<64x32xf32>
    %c-1_i32 = arith.constant -1 : i32
    %74 = vector.broadcast %c-1_i32 : i32 to vector<64x1xi32>
    %75 = arith.addi %71, %74 : vector<64x1xi32>
    %c0_i32 = arith.constant 0 : i32
    %76 = vector.broadcast %c0_i32 : i32 to vector<64x1xi32>
    %77 = arith.cmpi sge, %75, %76 : vector<64x1xi32>
    %c-1_i32_36 = arith.constant -1 : i32
    %78 = vector.broadcast %c-1_i32_36 : i32 to vector<64x1xi32>
    %79 = arith.addi %71, %78 : vector<64x1xi32>
    %c8_i32 = arith.constant 8 : i32
    %80 = vector.broadcast %c8_i32 : i32 to vector<64x1xi32>
    %81 = arith.cmpi slt, %79, %80 : vector<64x1xi32>
    %82 = arith.andi %77, %81 : vector<64x1xi1>
    %c-1_i32_37 = arith.constant -1 : i32
    %83 = vector.broadcast %c-1_i32_37 : i32 to vector<64x1xi32>
    %84 = arith.addi %72, %83 : vector<64x1xi32>
    %c0_i32_38 = arith.constant 0 : i32
    %85 = vector.broadcast %c0_i32_38 : i32 to vector<64x1xi32>
    %86 = arith.cmpi sge, %84, %85 : vector<64x1xi32>
    %87 = arith.andi %82, %86 : vector<64x1xi1>
    %c-1_i32_39 = arith.constant -1 : i32
    %88 = vector.broadcast %c-1_i32_39 : i32 to vector<64x1xi32>
    %89 = arith.addi %72, %88 : vector<64x1xi32>
    %c8_i32_40 = arith.constant 8 : i32
    %90 = vector.broadcast %c8_i32_40 : i32 to vector<64x1xi32>
    %91 = arith.cmpi slt, %89, %90 : vector<64x1xi32>
    %92 = arith.andi %87, %91 : vector<64x1xi1>
    %93 = arith.extui %92 : vector<64x1xi1> to vector<64x1xi32>
    %94 = arith.sitofp %93 : vector<64x1xi32> to vector<64x1xf32>
    %95 = vector.extract_strided_slice %68 {offsets = [55, 0], sizes = [9, 32], strides = [1, 1]} : vector<64x32xf32> to vector<9x32xf32>
    %96 = vector.extract_strided_slice %68 {offsets = [0, 0], sizes = [55, 32], strides = [1, 1]} : vector<64x32xf32> to vector<55x32xf32>
    %97 = tpu.concatenate %95, %96 in 0 : vector<9x32xf32>, vector<55x32xf32> -> vector<64x32xf32>
    %c0_41 = arith.constant 0 : index
    %c0_42 = arith.constant 0 : index
    %c0_43 = arith.constant 0 : index
    %98 = vector.load %arg8[%c0_41, %c0_42, %c0_43] : memref<9x32x32xf32, #tpu.memory_space<vmem>>, vector<1x32x32xf32>
    %99 = vector.shape_cast %98 : vector<1x32x32xf32> to vector<32x32xf32>
    %cst_44 = arith.constant dense<0.000000e+00> : vector<64x32xf32>
    %100 = tpu.matmul %97, %99, %cst_44 {dimension_numbers = #tpu.dot_dimension_numbers<[1], [0], [0], [1], [0, 0, 1, 1], [], []>} : vector<64x32xf32>, vector<32x32xf32>, vector<64x32xf32> -> vector<64x32xf32>
    %101 = vector.extract_strided_slice %70 {offsets = [55, 0], sizes = [9, 32], strides = [1, 1]} : vector<64x32xf32> to vector<9x32xf32>
    %102 = vector.extract_strided_slice %70 {offsets = [0, 0], sizes = [55, 32], strides = [1, 1]} : vector<64x32xf32> to vector<55x32xf32>
    %103 = tpu.concatenate %101, %102 in 0 : vector<9x32xf32>, vector<55x32xf32> -> vector<64x32xf32>
    %c0_45 = arith.constant 0 : index
    %c0_46 = arith.constant 0 : index
    %c0_47 = arith.constant 0 : index
    %104 = vector.load %arg9[%c0_45, %c0_46, %c0_47] : memref<9x32x32xf32, #tpu.memory_space<vmem>>, vector<1x32x32xf32>
    %105 = vector.shape_cast %104 : vector<1x32x32xf32> to vector<32x32xf32>
    %cst_48 = arith.constant dense<0.000000e+00> : vector<64x32xf32>
    %106 = tpu.matmul %103, %105, %cst_48 {dimension_numbers = #tpu.dot_dimension_numbers<[1], [0], [0], [1], [0, 0, 1, 1], [], []>} : vector<64x32xf32>, vector<32x32xf32>, vector<64x32xf32> -> vector<64x32xf32>
    %107 = arith.addf %100, %106 : vector<64x32xf32>
    %108 = vector.broadcast %94 : vector<64x1xf32> to vector<64x32xf32>
    %109 = arith.mulf %108, %107 : vector<64x32xf32>
    %110 = arith.addf %73, %109 : vector<64x32xf32>
    %c-1_i32_49 = arith.constant -1 : i32
    %111 = vector.broadcast %c-1_i32_49 : i32 to vector<64x1xi32>
    %112 = arith.addi %71, %111 : vector<64x1xi32>
    %c0_i32_50 = arith.constant 0 : i32
    %113 = vector.broadcast %c0_i32_50 : i32 to vector<64x1xi32>
    %114 = arith.cmpi sge, %112, %113 : vector<64x1xi32>
    %c-1_i32_51 = arith.constant -1 : i32
    %115 = vector.broadcast %c-1_i32_51 : i32 to vector<64x1xi32>
    %116 = arith.addi %71, %115 : vector<64x1xi32>
    %c8_i32_52 = arith.constant 8 : i32
    %117 = vector.broadcast %c8_i32_52 : i32 to vector<64x1xi32>
    %118 = arith.cmpi slt, %116, %117 : vector<64x1xi32>
    %119 = arith.andi %114, %118 : vector<64x1xi1>
    %c0_i32_53 = arith.constant 0 : i32
    %120 = vector.broadcast %c0_i32_53 : i32 to vector<64x1xi32>
    %121 = arith.addi %72, %120 : vector<64x1xi32>
    %c0_i32_54 = arith.constant 0 : i32
    %122 = vector.broadcast %c0_i32_54 : i32 to vector<64x1xi32>
    %123 = arith.cmpi sge, %121, %122 : vector<64x1xi32>
    %124 = arith.andi %119, %123 : vector<64x1xi1>
    %c0_i32_55 = arith.constant 0 : i32
    %125 = vector.broadcast %c0_i32_55 : i32 to vector<64x1xi32>
    %126 = arith.addi %72, %125 : vector<64x1xi32>
    %c8_i32_56 = arith.constant 8 : i32
    %127 = vector.broadcast %c8_i32_56 : i32 to vector<64x1xi32>
    %128 = arith.cmpi slt, %126, %127 : vector<64x1xi32>
    %129 = arith.andi %124, %128 : vector<64x1xi1>
    %130 = arith.extui %129 : vector<64x1xi1> to vector<64x1xi32>
    %131 = arith.sitofp %130 : vector<64x1xi32> to vector<64x1xf32>
    %132 = vector.extract_strided_slice %68 {offsets = [56, 0], sizes = [8, 32], strides = [1, 1]} : vector<64x32xf32> to vector<8x32xf32>
    %133 = vector.extract_strided_slice %68 {offsets = [0, 0], sizes = [56, 32], strides = [1, 1]} : vector<64x32xf32> to vector<56x32xf32>
    %134 = tpu.concatenate %132, %133 in 0 : vector<8x32xf32>, vector<56x32xf32> -> vector<64x32xf32>
    %c1 = arith.constant 1 : index
    %c0_57 = arith.constant 0 : index
    %c0_58 = arith.constant 0 : index
    %135 = vector.load %arg8[%c1, %c0_57, %c0_58] : memref<9x32x32xf32, #tpu.memory_space<vmem>>, vector<1x32x32xf32>
    %136 = vector.shape_cast %135 : vector<1x32x32xf32> to vector<32x32xf32>
    %cst_59 = arith.constant dense<0.000000e+00> : vector<64x32xf32>
    %137 = tpu.matmul %134, %136, %cst_59 {dimension_numbers = #tpu.dot_dimension_numbers<[1], [0], [0], [1], [0, 0, 1, 1], [], []>} : vector<64x32xf32>, vector<32x32xf32>, vector<64x32xf32> -> vector<64x32xf32>
    %138 = vector.extract_strided_slice %70 {offsets = [56, 0], sizes = [8, 32], strides = [1, 1]} : vector<64x32xf32> to vector<8x32xf32>
    %139 = vector.extract_strided_slice %70 {offsets = [0, 0], sizes = [56, 32], strides = [1, 1]} : vector<64x32xf32> to vector<56x32xf32>
    %140 = tpu.concatenate %138, %139 in 0 : vector<8x32xf32>, vector<56x32xf32> -> vector<64x32xf32>
    %c1_60 = arith.constant 1 : index
    %c0_61 = arith.constant 0 : index
    %c0_62 = arith.constant 0 : index
    %141 = vector.load %arg9[%c1_60, %c0_61, %c0_62] : memref<9x32x32xf32, #tpu.memory_space<vmem>>, vector<1x32x32xf32>
    %142 = vector.shape_cast %141 : vector<1x32x32xf32> to vector<32x32xf32>
    %cst_63 = arith.constant dense<0.000000e+00> : vector<64x32xf32>
    %143 = tpu.matmul %140, %142, %cst_63 {dimension_numbers = #tpu.dot_dimension_numbers<[1], [0], [0], [1], [0, 0, 1, 1], [], []>} : vector<64x32xf32>, vector<32x32xf32>, vector<64x32xf32> -> vector<64x32xf32>
    %144 = arith.addf %137, %143 : vector<64x32xf32>
    %145 = vector.broadcast %131 : vector<64x1xf32> to vector<64x32xf32>
    %146 = arith.mulf %145, %144 : vector<64x32xf32>
    %147 = arith.addf %110, %146 : vector<64x32xf32>
    %c-1_i32_64 = arith.constant -1 : i32
    %148 = vector.broadcast %c-1_i32_64 : i32 to vector<64x1xi32>
    %149 = arith.addi %71, %148 : vector<64x1xi32>
    %c0_i32_65 = arith.constant 0 : i32
    %150 = vector.broadcast %c0_i32_65 : i32 to vector<64x1xi32>
    %151 = arith.cmpi sge, %149, %150 : vector<64x1xi32>
    %c-1_i32_66 = arith.constant -1 : i32
    %152 = vector.broadcast %c-1_i32_66 : i32 to vector<64x1xi32>
    %153 = arith.addi %71, %152 : vector<64x1xi32>
    %c8_i32_67 = arith.constant 8 : i32
    %154 = vector.broadcast %c8_i32_67 : i32 to vector<64x1xi32>
    %155 = arith.cmpi slt, %153, %154 : vector<64x1xi32>
    %156 = arith.andi %151, %155 : vector<64x1xi1>
    %c1_i32 = arith.constant 1 : i32
    %157 = vector.broadcast %c1_i32 : i32 to vector<64x1xi32>
    %158 = arith.addi %72, %157 : vector<64x1xi32>
    %c0_i32_68 = arith.constant 0 : i32
    %159 = vector.broadcast %c0_i32_68 : i32 to vector<64x1xi32>
    %160 = arith.cmpi sge, %158, %159 : vector<64x1xi32>
    %161 = arith.andi %156, %160 : vector<64x1xi1>
    %c1_i32_69 = arith.constant 1 : i32
    %162 = vector.broadcast %c1_i32_69 : i32 to vector<64x1xi32>
    %163 = arith.addi %72, %162 : vector<64x1xi32>
    %c8_i32_70 = arith.constant 8 : i32
    %164 = vector.broadcast %c8_i32_70 : i32 to vector<64x1xi32>
    %165 = arith.cmpi slt, %163, %164 : vector<64x1xi32>
    %166 = arith.andi %161, %165 : vector<64x1xi1>
    %167 = arith.extui %166 : vector<64x1xi1> to vector<64x1xi32>
    %168 = arith.sitofp %167 : vector<64x1xi32> to vector<64x1xf32>
    %169 = vector.extract_strided_slice %68 {offsets = [57, 0], sizes = [7, 32], strides = [1, 1]} : vector<64x32xf32> to vector<7x32xf32>
    %170 = vector.extract_strided_slice %68 {offsets = [0, 0], sizes = [57, 32], strides = [1, 1]} : vector<64x32xf32> to vector<57x32xf32>
    %171 = tpu.concatenate %169, %170 in 0 : vector<7x32xf32>, vector<57x32xf32> -> vector<64x32xf32>
    %c2 = arith.constant 2 : index
    %c0_71 = arith.constant 0 : index
    %c0_72 = arith.constant 0 : index
    %172 = vector.load %arg8[%c2, %c0_71, %c0_72] : memref<9x32x32xf32, #tpu.memory_space<vmem>>, vector<1x32x32xf32>
    %173 = vector.shape_cast %172 : vector<1x32x32xf32> to vector<32x32xf32>
    %cst_73 = arith.constant dense<0.000000e+00> : vector<64x32xf32>
    %174 = tpu.matmul %171, %173, %cst_73 {dimension_numbers = #tpu.dot_dimension_numbers<[1], [0], [0], [1], [0, 0, 1, 1], [], []>} : vector<64x32xf32>, vector<32x32xf32>, vector<64x32xf32> -> vector<64x32xf32>
    %175 = vector.extract_strided_slice %70 {offsets = [57, 0], sizes = [7, 32], strides = [1, 1]} : vector<64x32xf32> to vector<7x32xf32>
    %176 = vector.extract_strided_slice %70 {offsets = [0, 0], sizes = [57, 32], strides = [1, 1]} : vector<64x32xf32> to vector<57x32xf32>
    %177 = tpu.concatenate %175, %176 in 0 : vector<7x32xf32>, vector<57x32xf32> -> vector<64x32xf32>
    %c2_74 = arith.constant 2 : index
    %c0_75 = arith.constant 0 : index
    %c0_76 = arith.constant 0 : index
    %178 = vector.load %arg9[%c2_74, %c0_75, %c0_76] : memref<9x32x32xf32, #tpu.memory_space<vmem>>, vector<1x32x32xf32>
    %179 = vector.shape_cast %178 : vector<1x32x32xf32> to vector<32x32xf32>
    %cst_77 = arith.constant dense<0.000000e+00> : vector<64x32xf32>
    %180 = tpu.matmul %177, %179, %cst_77 {dimension_numbers = #tpu.dot_dimension_numbers<[1], [0], [0], [1], [0, 0, 1, 1], [], []>} : vector<64x32xf32>, vector<32x32xf32>, vector<64x32xf32> -> vector<64x32xf32>
    %181 = arith.addf %174, %180 : vector<64x32xf32>
    %182 = vector.broadcast %168 : vector<64x1xf32> to vector<64x32xf32>
    %183 = arith.mulf %182, %181 : vector<64x32xf32>
    %184 = arith.addf %147, %183 : vector<64x32xf32>
    %c0_i32_78 = arith.constant 0 : i32
    %185 = vector.broadcast %c0_i32_78 : i32 to vector<64x1xi32>
    %186 = arith.addi %71, %185 : vector<64x1xi32>
    %c0_i32_79 = arith.constant 0 : i32
    %187 = vector.broadcast %c0_i32_79 : i32 to vector<64x1xi32>
    %188 = arith.cmpi sge, %186, %187 : vector<64x1xi32>
    %c0_i32_80 = arith.constant 0 : i32
    %189 = vector.broadcast %c0_i32_80 : i32 to vector<64x1xi32>
    %190 = arith.addi %71, %189 : vector<64x1xi32>
    %c8_i32_81 = arith.constant 8 : i32
    %191 = vector.broadcast %c8_i32_81 : i32 to vector<64x1xi32>
    %192 = arith.cmpi slt, %190, %191 : vector<64x1xi32>
    %193 = arith.andi %188, %192 : vector<64x1xi1>
    %c-1_i32_82 = arith.constant -1 : i32
    %194 = vector.broadcast %c-1_i32_82 : i32 to vector<64x1xi32>
    %195 = arith.addi %72, %194 : vector<64x1xi32>
    %c0_i32_83 = arith.constant 0 : i32
    %196 = vector.broadcast %c0_i32_83 : i32 to vector<64x1xi32>
    %197 = arith.cmpi sge, %195, %196 : vector<64x1xi32>
    %198 = arith.andi %193, %197 : vector<64x1xi1>
    %c-1_i32_84 = arith.constant -1 : i32
    %199 = vector.broadcast %c-1_i32_84 : i32 to vector<64x1xi32>
    %200 = arith.addi %72, %199 : vector<64x1xi32>
    %c8_i32_85 = arith.constant 8 : i32
    %201 = vector.broadcast %c8_i32_85 : i32 to vector<64x1xi32>
    %202 = arith.cmpi slt, %200, %201 : vector<64x1xi32>
    %203 = arith.andi %198, %202 : vector<64x1xi1>
    %204 = arith.extui %203 : vector<64x1xi1> to vector<64x1xi32>
    %205 = arith.sitofp %204 : vector<64x1xi32> to vector<64x1xf32>
    %206 = vector.extract_strided_slice %68 {offsets = [63, 0], sizes = [1, 32], strides = [1, 1]} : vector<64x32xf32> to vector<1x32xf32>
    %207 = vector.extract_strided_slice %68 {offsets = [0, 0], sizes = [63, 32], strides = [1, 1]} : vector<64x32xf32> to vector<63x32xf32>
    %208 = tpu.concatenate %206, %207 in 0 : vector<1x32xf32>, vector<63x32xf32> -> vector<64x32xf32>
    %c3 = arith.constant 3 : index
    %c0_86 = arith.constant 0 : index
    %c0_87 = arith.constant 0 : index
    %209 = vector.load %arg8[%c3, %c0_86, %c0_87] : memref<9x32x32xf32, #tpu.memory_space<vmem>>, vector<1x32x32xf32>
    %210 = vector.shape_cast %209 : vector<1x32x32xf32> to vector<32x32xf32>
    %cst_88 = arith.constant dense<0.000000e+00> : vector<64x32xf32>
    %211 = tpu.matmul %208, %210, %cst_88 {dimension_numbers = #tpu.dot_dimension_numbers<[1], [0], [0], [1], [0, 0, 1, 1], [], []>} : vector<64x32xf32>, vector<32x32xf32>, vector<64x32xf32> -> vector<64x32xf32>
    %212 = vector.extract_strided_slice %70 {offsets = [63, 0], sizes = [1, 32], strides = [1, 1]} : vector<64x32xf32> to vector<1x32xf32>
    %213 = vector.extract_strided_slice %70 {offsets = [0, 0], sizes = [63, 32], strides = [1, 1]} : vector<64x32xf32> to vector<63x32xf32>
    %214 = tpu.concatenate %212, %213 in 0 : vector<1x32xf32>, vector<63x32xf32> -> vector<64x32xf32>
    %c3_89 = arith.constant 3 : index
    %c0_90 = arith.constant 0 : index
    %c0_91 = arith.constant 0 : index
    %215 = vector.load %arg9[%c3_89, %c0_90, %c0_91] : memref<9x32x32xf32, #tpu.memory_space<vmem>>, vector<1x32x32xf32>
    %216 = vector.shape_cast %215 : vector<1x32x32xf32> to vector<32x32xf32>
    %cst_92 = arith.constant dense<0.000000e+00> : vector<64x32xf32>
    %217 = tpu.matmul %214, %216, %cst_92 {dimension_numbers = #tpu.dot_dimension_numbers<[1], [0], [0], [1], [0, 0, 1, 1], [], []>} : vector<64x32xf32>, vector<32x32xf32>, vector<64x32xf32> -> vector<64x32xf32>
    %218 = arith.addf %211, %217 : vector<64x32xf32>
    %219 = vector.broadcast %205 : vector<64x1xf32> to vector<64x32xf32>
    %220 = arith.mulf %219, %218 : vector<64x32xf32>
    %221 = arith.addf %184, %220 : vector<64x32xf32>
    %c0_i32_93 = arith.constant 0 : i32
    %222 = vector.broadcast %c0_i32_93 : i32 to vector<64x1xi32>
    %223 = arith.addi %71, %222 : vector<64x1xi32>
    %c0_i32_94 = arith.constant 0 : i32
    %224 = vector.broadcast %c0_i32_94 : i32 to vector<64x1xi32>
    %225 = arith.cmpi sge, %223, %224 : vector<64x1xi32>
    %c0_i32_95 = arith.constant 0 : i32
    %226 = vector.broadcast %c0_i32_95 : i32 to vector<64x1xi32>
    %227 = arith.addi %71, %226 : vector<64x1xi32>
    %c8_i32_96 = arith.constant 8 : i32
    %228 = vector.broadcast %c8_i32_96 : i32 to vector<64x1xi32>
    %229 = arith.cmpi slt, %227, %228 : vector<64x1xi32>
    %230 = arith.andi %225, %229 : vector<64x1xi1>
    %c0_i32_97 = arith.constant 0 : i32
    %231 = vector.broadcast %c0_i32_97 : i32 to vector<64x1xi32>
    %232 = arith.addi %72, %231 : vector<64x1xi32>
    %c0_i32_98 = arith.constant 0 : i32
    %233 = vector.broadcast %c0_i32_98 : i32 to vector<64x1xi32>
    %234 = arith.cmpi sge, %232, %233 : vector<64x1xi32>
    %235 = arith.andi %230, %234 : vector<64x1xi1>
    %c0_i32_99 = arith.constant 0 : i32
    %236 = vector.broadcast %c0_i32_99 : i32 to vector<64x1xi32>
    %237 = arith.addi %72, %236 : vector<64x1xi32>
    %c8_i32_100 = arith.constant 8 : i32
    %238 = vector.broadcast %c8_i32_100 : i32 to vector<64x1xi32>
    %239 = arith.cmpi slt, %237, %238 : vector<64x1xi32>
    %240 = arith.andi %235, %239 : vector<64x1xi1>
    %241 = arith.extui %240 : vector<64x1xi1> to vector<64x1xi32>
    %242 = arith.sitofp %241 : vector<64x1xi32> to vector<64x1xf32>
    %c4 = arith.constant 4 : index
    %c0_101 = arith.constant 0 : index
    %c0_102 = arith.constant 0 : index
    %243 = vector.load %arg8[%c4, %c0_101, %c0_102] : memref<9x32x32xf32, #tpu.memory_space<vmem>>, vector<1x32x32xf32>
    %244 = vector.shape_cast %243 : vector<1x32x32xf32> to vector<32x32xf32>
    %cst_103 = arith.constant dense<0.000000e+00> : vector<64x32xf32>
    %245 = tpu.matmul %68, %244, %cst_103 {dimension_numbers = #tpu.dot_dimension_numbers<[1], [0], [0], [1], [0, 0, 1, 1], [], []>} : vector<64x32xf32>, vector<32x32xf32>, vector<64x32xf32> -> vector<64x32xf32>
    %c4_104 = arith.constant 4 : index
    %c0_105 = arith.constant 0 : index
    %c0_106 = arith.constant 0 : index
    %246 = vector.load %arg9[%c4_104, %c0_105, %c0_106] : memref<9x32x32xf32, #tpu.memory_space<vmem>>, vector<1x32x32xf32>
    %247 = vector.shape_cast %246 : vector<1x32x32xf32> to vector<32x32xf32>
    %cst_107 = arith.constant dense<0.000000e+00> : vector<64x32xf32>
    %248 = tpu.matmul %70, %247, %cst_107 {dimension_numbers = #tpu.dot_dimension_numbers<[1], [0], [0], [1], [0, 0, 1, 1], [], []>} : vector<64x32xf32>, vector<32x32xf32>, vector<64x32xf32> -> vector<64x32xf32>
    %249 = arith.addf %245, %248 : vector<64x32xf32>
    %250 = vector.broadcast %242 : vector<64x1xf32> to vector<64x32xf32>
    %251 = arith.mulf %250, %249 : vector<64x32xf32>
    %252 = arith.addf %221, %251 : vector<64x32xf32>
    %c0_i32_108 = arith.constant 0 : i32
    %253 = vector.broadcast %c0_i32_108 : i32 to vector<64x1xi32>
    %254 = arith.addi %71, %253 : vector<64x1xi32>
    %c0_i32_109 = arith.constant 0 : i32
    %255 = vector.broadcast %c0_i32_109 : i32 to vector<64x1xi32>
    %256 = arith.cmpi sge, %254, %255 : vector<64x1xi32>
    %c0_i32_110 = arith.constant 0 : i32
    %257 = vector.broadcast %c0_i32_110 : i32 to vector<64x1xi32>
    %258 = arith.addi %71, %257 : vector<64x1xi32>
    %c8_i32_111 = arith.constant 8 : i32
    %259 = vector.broadcast %c8_i32_111 : i32 to vector<64x1xi32>
    %260 = arith.cmpi slt, %258, %259 : vector<64x1xi32>
    %261 = arith.andi %256, %260 : vector<64x1xi1>
    %c1_i32_112 = arith.constant 1 : i32
    %262 = vector.broadcast %c1_i32_112 : i32 to vector<64x1xi32>
    %263 = arith.addi %72, %262 : vector<64x1xi32>
    %c0_i32_113 = arith.constant 0 : i32
    %264 = vector.broadcast %c0_i32_113 : i32 to vector<64x1xi32>
    %265 = arith.cmpi sge, %263, %264 : vector<64x1xi32>
    %266 = arith.andi %261, %265 : vector<64x1xi1>
    %c1_i32_114 = arith.constant 1 : i32
    %267 = vector.broadcast %c1_i32_114 : i32 to vector<64x1xi32>
    %268 = arith.addi %72, %267 : vector<64x1xi32>
    %c8_i32_115 = arith.constant 8 : i32
    %269 = vector.broadcast %c8_i32_115 : i32 to vector<64x1xi32>
    %270 = arith.cmpi slt, %268, %269 : vector<64x1xi32>
    %271 = arith.andi %266, %270 : vector<64x1xi1>
    %272 = arith.extui %271 : vector<64x1xi1> to vector<64x1xi32>
    %273 = arith.sitofp %272 : vector<64x1xi32> to vector<64x1xf32>
    %274 = vector.extract_strided_slice %68 {offsets = [1, 0], sizes = [63, 32], strides = [1, 1]} : vector<64x32xf32> to vector<63x32xf32>
    %275 = vector.extract_strided_slice %68 {offsets = [0, 0], sizes = [1, 32], strides = [1, 1]} : vector<64x32xf32> to vector<1x32xf32>
    %276 = tpu.concatenate %274, %275 in 0 : vector<63x32xf32>, vector<1x32xf32> -> vector<64x32xf32>
    %c5 = arith.constant 5 : index
    %c0_116 = arith.constant 0 : index
    %c0_117 = arith.constant 0 : index
    %277 = vector.load %arg8[%c5, %c0_116, %c0_117] : memref<9x32x32xf32, #tpu.memory_space<vmem>>, vector<1x32x32xf32>
    %278 = vector.shape_cast %277 : vector<1x32x32xf32> to vector<32x32xf32>
    %cst_118 = arith.constant dense<0.000000e+00> : vector<64x32xf32>
    %279 = tpu.matmul %276, %278, %cst_118 {dimension_numbers = #tpu.dot_dimension_numbers<[1], [0], [0], [1], [0, 0, 1, 1], [], []>} : vector<64x32xf32>, vector<32x32xf32>, vector<64x32xf32> -> vector<64x32xf32>
    %280 = vector.extract_strided_slice %70 {offsets = [1, 0], sizes = [63, 32], strides = [1, 1]} : vector<64x32xf32> to vector<63x32xf32>
    %281 = vector.extract_strided_slice %70 {offsets = [0, 0], sizes = [1, 32], strides = [1, 1]} : vector<64x32xf32> to vector<1x32xf32>
    %282 = tpu.concatenate %280, %281 in 0 : vector<63x32xf32>, vector<1x32xf32> -> vector<64x32xf32>
    %c5_119 = arith.constant 5 : index
    %c0_120 = arith.constant 0 : index
    %c0_121 = arith.constant 0 : index
    %283 = vector.load %arg9[%c5_119, %c0_120, %c0_121] : memref<9x32x32xf32, #tpu.memory_space<vmem>>, vector<1x32x32xf32>
    %284 = vector.shape_cast %283 : vector<1x32x32xf32> to vector<32x32xf32>
    %cst_122 = arith.constant dense<0.000000e+00> : vector<64x32xf32>
    %285 = tpu.matmul %282, %284, %cst_122 {dimension_numbers = #tpu.dot_dimension_numbers<[1], [0], [0], [1], [0, 0, 1, 1], [], []>} : vector<64x32xf32>, vector<32x32xf32>, vector<64x32xf32> -> vector<64x32xf32>
    %286 = arith.addf %279, %285 : vector<64x32xf32>
    %287 = vector.broadcast %273 : vector<64x1xf32> to vector<64x32xf32>
    %288 = arith.mulf %287, %286 : vector<64x32xf32>
    %289 = arith.addf %252, %288 : vector<64x32xf32>
    %c1_i32_123 = arith.constant 1 : i32
    %290 = vector.broadcast %c1_i32_123 : i32 to vector<64x1xi32>
    %291 = arith.addi %71, %290 : vector<64x1xi32>
    %c0_i32_124 = arith.constant 0 : i32
    %292 = vector.broadcast %c0_i32_124 : i32 to vector<64x1xi32>
    %293 = arith.cmpi sge, %291, %292 : vector<64x1xi32>
    %c1_i32_125 = arith.constant 1 : i32
    %294 = vector.broadcast %c1_i32_125 : i32 to vector<64x1xi32>
    %295 = arith.addi %71, %294 : vector<64x1xi32>
    %c8_i32_126 = arith.constant 8 : i32
    %296 = vector.broadcast %c8_i32_126 : i32 to vector<64x1xi32>
    %297 = arith.cmpi slt, %295, %296 : vector<64x1xi32>
    %298 = arith.andi %293, %297 : vector<64x1xi1>
    %c-1_i32_127 = arith.constant -1 : i32
    %299 = vector.broadcast %c-1_i32_127 : i32 to vector<64x1xi32>
    %300 = arith.addi %72, %299 : vector<64x1xi32>
    %c0_i32_128 = arith.constant 0 : i32
    %301 = vector.broadcast %c0_i32_128 : i32 to vector<64x1xi32>
    %302 = arith.cmpi sge, %300, %301 : vector<64x1xi32>
    %303 = arith.andi %298, %302 : vector<64x1xi1>
    %c-1_i32_129 = arith.constant -1 : i32
    %304 = vector.broadcast %c-1_i32_129 : i32 to vector<64x1xi32>
    %305 = arith.addi %72, %304 : vector<64x1xi32>
    %c8_i32_130 = arith.constant 8 : i32
    %306 = vector.broadcast %c8_i32_130 : i32 to vector<64x1xi32>
    %307 = arith.cmpi slt, %305, %306 : vector<64x1xi32>
    %308 = arith.andi %303, %307 : vector<64x1xi1>
    %309 = arith.extui %308 : vector<64x1xi1> to vector<64x1xi32>
    %310 = arith.sitofp %309 : vector<64x1xi32> to vector<64x1xf32>
    %311 = vector.extract_strided_slice %68 {offsets = [7, 0], sizes = [57, 32], strides = [1, 1]} : vector<64x32xf32> to vector<57x32xf32>
    %312 = vector.extract_strided_slice %68 {offsets = [0, 0], sizes = [7, 32], strides = [1, 1]} : vector<64x32xf32> to vector<7x32xf32>
    %313 = tpu.concatenate %311, %312 in 0 : vector<57x32xf32>, vector<7x32xf32> -> vector<64x32xf32>
    %c6 = arith.constant 6 : index
    %c0_131 = arith.constant 0 : index
    %c0_132 = arith.constant 0 : index
    %314 = vector.load %arg8[%c6, %c0_131, %c0_132] : memref<9x32x32xf32, #tpu.memory_space<vmem>>, vector<1x32x32xf32>
    %315 = vector.shape_cast %314 : vector<1x32x32xf32> to vector<32x32xf32>
    %cst_133 = arith.constant dense<0.000000e+00> : vector<64x32xf32>
    %316 = tpu.matmul %313, %315, %cst_133 {dimension_numbers = #tpu.dot_dimension_numbers<[1], [0], [0], [1], [0, 0, 1, 1], [], []>} : vector<64x32xf32>, vector<32x32xf32>, vector<64x32xf32> -> vector<64x32xf32>
    %317 = vector.extract_strided_slice %70 {offsets = [7, 0], sizes = [57, 32], strides = [1, 1]} : vector<64x32xf32> to vector<57x32xf32>
    %318 = vector.extract_strided_slice %70 {offsets = [0, 0], sizes = [7, 32], strides = [1, 1]} : vector<64x32xf32> to vector<7x32xf32>
    %319 = tpu.concatenate %317, %318 in 0 : vector<57x32xf32>, vector<7x32xf32> -> vector<64x32xf32>
    %c6_134 = arith.constant 6 : index
    %c0_135 = arith.constant 0 : index
    %c0_136 = arith.constant 0 : index
    %320 = vector.load %arg9[%c6_134, %c0_135, %c0_136] : memref<9x32x32xf32, #tpu.memory_space<vmem>>, vector<1x32x32xf32>
    %321 = vector.shape_cast %320 : vector<1x32x32xf32> to vector<32x32xf32>
    %cst_137 = arith.constant dense<0.000000e+00> : vector<64x32xf32>
    %322 = tpu.matmul %319, %321, %cst_137 {dimension_numbers = #tpu.dot_dimension_numbers<[1], [0], [0], [1], [0, 0, 1, 1], [], []>} : vector<64x32xf32>, vector<32x32xf32>, vector<64x32xf32> -> vector<64x32xf32>
    %323 = arith.addf %316, %322 : vector<64x32xf32>
    %324 = vector.broadcast %310 : vector<64x1xf32> to vector<64x32xf32>
    %325 = arith.mulf %324, %323 : vector<64x32xf32>
    %326 = arith.addf %289, %325 : vector<64x32xf32>
    %c1_i32_138 = arith.constant 1 : i32
    %327 = vector.broadcast %c1_i32_138 : i32 to vector<64x1xi32>
    %328 = arith.addi %71, %327 : vector<64x1xi32>
    %c0_i32_139 = arith.constant 0 : i32
    %329 = vector.broadcast %c0_i32_139 : i32 to vector<64x1xi32>
    %330 = arith.cmpi sge, %328, %329 : vector<64x1xi32>
    %c1_i32_140 = arith.constant 1 : i32
    %331 = vector.broadcast %c1_i32_140 : i32 to vector<64x1xi32>
    %332 = arith.addi %71, %331 : vector<64x1xi32>
    %c8_i32_141 = arith.constant 8 : i32
    %333 = vector.broadcast %c8_i32_141 : i32 to vector<64x1xi32>
    %334 = arith.cmpi slt, %332, %333 : vector<64x1xi32>
    %335 = arith.andi %330, %334 : vector<64x1xi1>
    %c0_i32_142 = arith.constant 0 : i32
    %336 = vector.broadcast %c0_i32_142 : i32 to vector<64x1xi32>
    %337 = arith.addi %72, %336 : vector<64x1xi32>
    %c0_i32_143 = arith.constant 0 : i32
    %338 = vector.broadcast %c0_i32_143 : i32 to vector<64x1xi32>
    %339 = arith.cmpi sge, %337, %338 : vector<64x1xi32>
    %340 = arith.andi %335, %339 : vector<64x1xi1>
    %c0_i32_144 = arith.constant 0 : i32
    %341 = vector.broadcast %c0_i32_144 : i32 to vector<64x1xi32>
    %342 = arith.addi %72, %341 : vector<64x1xi32>
    %c8_i32_145 = arith.constant 8 : i32
    %343 = vector.broadcast %c8_i32_145 : i32 to vector<64x1xi32>
    %344 = arith.cmpi slt, %342, %343 : vector<64x1xi32>
    %345 = arith.andi %340, %344 : vector<64x1xi1>
    %346 = arith.extui %345 : vector<64x1xi1> to vector<64x1xi32>
    %347 = arith.sitofp %346 : vector<64x1xi32> to vector<64x1xf32>
    %348 = vector.extract_strided_slice %68 {offsets = [8, 0], sizes = [56, 32], strides = [1, 1]} : vector<64x32xf32> to vector<56x32xf32>
    %349 = vector.extract_strided_slice %68 {offsets = [0, 0], sizes = [8, 32], strides = [1, 1]} : vector<64x32xf32> to vector<8x32xf32>
    %350 = tpu.concatenate %348, %349 in 0 : vector<56x32xf32>, vector<8x32xf32> -> vector<64x32xf32>
    %c7 = arith.constant 7 : index
    %c0_146 = arith.constant 0 : index
    %c0_147 = arith.constant 0 : index
    %351 = vector.load %arg8[%c7, %c0_146, %c0_147] : memref<9x32x32xf32, #tpu.memory_space<vmem>>, vector<1x32x32xf32>
    %352 = vector.shape_cast %351 : vector<1x32x32xf32> to vector<32x32xf32>
    %cst_148 = arith.constant dense<0.000000e+00> : vector<64x32xf32>
    %353 = tpu.matmul %350, %352, %cst_148 {dimension_numbers = #tpu.dot_dimension_numbers<[1], [0], [0], [1], [0, 0, 1, 1], [], []>} : vector<64x32xf32>, vector<32x32xf32>, vector<64x32xf32> -> vector<64x32xf32>
    %354 = vector.extract_strided_slice %70 {offsets = [8, 0], sizes = [56, 32], strides = [1, 1]} : vector<64x32xf32> to vector<56x32xf32>
    %355 = vector.extract_strided_slice %70 {offsets = [0, 0], sizes = [8, 32], strides = [1, 1]} : vector<64x32xf32> to vector<8x32xf32>
    %356 = tpu.concatenate %354, %355 in 0 : vector<56x32xf32>, vector<8x32xf32> -> vector<64x32xf32>
    %c7_149 = arith.constant 7 : index
    %c0_150 = arith.constant 0 : index
    %c0_151 = arith.constant 0 : index
    %357 = vector.load %arg9[%c7_149, %c0_150, %c0_151] : memref<9x32x32xf32, #tpu.memory_space<vmem>>, vector<1x32x32xf32>
    %358 = vector.shape_cast %357 : vector<1x32x32xf32> to vector<32x32xf32>
    %cst_152 = arith.constant dense<0.000000e+00> : vector<64x32xf32>
    %359 = tpu.matmul %356, %358, %cst_152 {dimension_numbers = #tpu.dot_dimension_numbers<[1], [0], [0], [1], [0, 0, 1, 1], [], []>} : vector<64x32xf32>, vector<32x32xf32>, vector<64x32xf32> -> vector<64x32xf32>
    %360 = arith.addf %353, %359 : vector<64x32xf32>
    %361 = vector.broadcast %347 : vector<64x1xf32> to vector<64x32xf32>
    %362 = arith.mulf %361, %360 : vector<64x32xf32>
    %363 = arith.addf %326, %362 : vector<64x32xf32>
    %c1_i32_153 = arith.constant 1 : i32
    %364 = vector.broadcast %c1_i32_153 : i32 to vector<64x1xi32>
    %365 = arith.addi %71, %364 : vector<64x1xi32>
    %c0_i32_154 = arith.constant 0 : i32
    %366 = vector.broadcast %c0_i32_154 : i32 to vector<64x1xi32>
    %367 = arith.cmpi sge, %365, %366 : vector<64x1xi32>
    %c1_i32_155 = arith.constant 1 : i32
    %368 = vector.broadcast %c1_i32_155 : i32 to vector<64x1xi32>
    %369 = arith.addi %71, %368 : vector<64x1xi32>
    %c8_i32_156 = arith.constant 8 : i32
    %370 = vector.broadcast %c8_i32_156 : i32 to vector<64x1xi32>
    %371 = arith.cmpi slt, %369, %370 : vector<64x1xi32>
    %372 = arith.andi %367, %371 : vector<64x1xi1>
    %c1_i32_157 = arith.constant 1 : i32
    %373 = vector.broadcast %c1_i32_157 : i32 to vector<64x1xi32>
    %374 = arith.addi %72, %373 : vector<64x1xi32>
    %c0_i32_158 = arith.constant 0 : i32
    %375 = vector.broadcast %c0_i32_158 : i32 to vector<64x1xi32>
    %376 = arith.cmpi sge, %374, %375 : vector<64x1xi32>
    %377 = arith.andi %372, %376 : vector<64x1xi1>
    %c1_i32_159 = arith.constant 1 : i32
    %378 = vector.broadcast %c1_i32_159 : i32 to vector<64x1xi32>
    %379 = arith.addi %72, %378 : vector<64x1xi32>
    %c8_i32_160 = arith.constant 8 : i32
    %380 = vector.broadcast %c8_i32_160 : i32 to vector<64x1xi32>
    %381 = arith.cmpi slt, %379, %380 : vector<64x1xi32>
    %382 = arith.andi %377, %381 : vector<64x1xi1>
    %383 = arith.extui %382 : vector<64x1xi1> to vector<64x1xi32>
    %384 = arith.sitofp %383 : vector<64x1xi32> to vector<64x1xf32>
    %385 = vector.extract_strided_slice %68 {offsets = [9, 0], sizes = [55, 32], strides = [1, 1]} : vector<64x32xf32> to vector<55x32xf32>
    %386 = vector.extract_strided_slice %68 {offsets = [0, 0], sizes = [9, 32], strides = [1, 1]} : vector<64x32xf32> to vector<9x32xf32>
    %387 = tpu.concatenate %385, %386 in 0 : vector<55x32xf32>, vector<9x32xf32> -> vector<64x32xf32>
    %c8 = arith.constant 8 : index
    %c0_161 = arith.constant 0 : index
    %c0_162 = arith.constant 0 : index
    %388 = vector.load %arg8[%c8, %c0_161, %c0_162] : memref<9x32x32xf32, #tpu.memory_space<vmem>>, vector<1x32x32xf32>
    %389 = vector.shape_cast %388 : vector<1x32x32xf32> to vector<32x32xf32>
    %cst_163 = arith.constant dense<0.000000e+00> : vector<64x32xf32>
    %390 = tpu.matmul %387, %389, %cst_163 {dimension_numbers = #tpu.dot_dimension_numbers<[1], [0], [0], [1], [0, 0, 1, 1], [], []>} : vector<64x32xf32>, vector<32x32xf32>, vector<64x32xf32> -> vector<64x32xf32>
    %391 = vector.extract_strided_slice %70 {offsets = [9, 0], sizes = [55, 32], strides = [1, 1]} : vector<64x32xf32> to vector<55x32xf32>
    %392 = vector.extract_strided_slice %70 {offsets = [0, 0], sizes = [9, 32], strides = [1, 1]} : vector<64x32xf32> to vector<9x32xf32>
    %393 = tpu.concatenate %391, %392 in 0 : vector<55x32xf32>, vector<9x32xf32> -> vector<64x32xf32>
    %c8_164 = arith.constant 8 : index
    %c0_165 = arith.constant 0 : index
    %c0_166 = arith.constant 0 : index
    %394 = vector.load %arg9[%c8_164, %c0_165, %c0_166] : memref<9x32x32xf32, #tpu.memory_space<vmem>>, vector<1x32x32xf32>
    %395 = vector.shape_cast %394 : vector<1x32x32xf32> to vector<32x32xf32>
    %cst_167 = arith.constant dense<0.000000e+00> : vector<64x32xf32>
    %396 = tpu.matmul %393, %395, %cst_167 {dimension_numbers = #tpu.dot_dimension_numbers<[1], [0], [0], [1], [0, 0, 1, 1], [], []>} : vector<64x32xf32>, vector<32x32xf32>, vector<64x32xf32> -> vector<64x32xf32>
    %397 = arith.addf %390, %396 : vector<64x32xf32>
    %398 = vector.broadcast %384 : vector<64x1xf32> to vector<64x32xf32>
    %399 = arith.mulf %398, %397 : vector<64x32xf32>
    %400 = arith.addf %363, %399 : vector<64x32xf32>
    %c0_168 = arith.constant 0 : index
    %c0_169 = arith.constant 0 : index
    %401 = vector.load %arg12[%c0_168, %c0_169] : memref<1x32xf32, #tpu.memory_space<vmem>>, vector<1x32xf32>
    %402 = vector.broadcast %401 : vector<1x32xf32> to vector<64x32xf32>
    %403 = arith.addf %400, %402 : vector<64x32xf32>
    %404 = arith.addf %403, %23 : vector<64x32xf32>
    %405 = arith.addf %404, %404 : vector<64x32xf32>
    %c0_170 = arith.constant 0 : index
    %c0_171 = arith.constant 0 : index
    %c0_172 = arith.constant 0 : index
    %406 = vector.load %arg13[%c0_170, %c0_171, %c0_172] : memref<1x64x32xf32, #tpu.memory_space<vmem>>, vector<1x64x32xf32>
    %407 = vector.shape_cast %406 : vector<1x64x32xf32> to vector<64x32xf32>
    %408 = vector.shape_cast %405 : vector<64x32xf32> to vector<1x64x32xf32>
    tpu.vector_store %arg13[%c0_170, %c0_171, %c0_172], %408 {strides = array<i32>} : memref<1x64x32xf32, #tpu.memory_space<vmem>>, vector<1x64x32xf32>,
    return
  }
  func.func @transform_0(%arg0: i32) -> (i32, i32, i32) {
    %c0_i32 = arith.constant 0 : i32
    %c0_i32_0 = arith.constant 0 : i32
    %c0_i32_1 = arith.constant 0 : i32
    return %arg0, %c0_i32, %c0_i32_0 : i32, i32, i32
  }
  func.func @transform_1(%arg0: i32) -> (i32, i32) {
    %c0_i32 = arith.constant 0 : i32
    %c0_i32_0 = arith.constant 0 : i32
    %c0_i32_1 = arith.constant 0 : i32
    return %c0_i32, %c0_i32_0 : i32, i32
  }
  func.func @transform_2(%arg0: i32) -> (i32, i32) {
    %c0_i32 = arith.constant 0 : i32
    %c0_i32_0 = arith.constant 0 : i32
    %c0_i32_1 = arith.constant 0 : i32
    return %c0_i32, %c0_i32_0 : i32, i32
  }
  func.func @transform_3(%arg0: i32) -> (i32, i32) {
    %c0_i32 = arith.constant 0 : i32
    %c0_i32_0 = arith.constant 0 : i32
    %c0_i32_1 = arith.constant 0 : i32
    return %c0_i32, %c0_i32_0 : i32, i32
  }
  func.func @transform_4(%arg0: i32) -> (i32, i32) {
    %c0_i32 = arith.constant 0 : i32
    %c0_i32_0 = arith.constant 0 : i32
    %c0_i32_1 = arith.constant 0 : i32
    return %c0_i32, %c0_i32_0 : i32, i32
  }
  func.func @transform_5(%arg0: i32) -> (i32, i32) {
    %c0_i32 = arith.constant 0 : i32
    %c0_i32_0 = arith.constant 0 : i32
    %c0_i32_1 = arith.constant 0 : i32
    return %c0_i32, %c0_i32_0 : i32, i32
  }
  func.func @transform_6(%arg0: i32) -> (i32, i32) {
    %c0_i32 = arith.constant 0 : i32
    %c0_i32_0 = arith.constant 0 : i32
    %c0_i32_1 = arith.constant 0 : i32
    return %c0_i32, %c0_i32_0 : i32, i32
  }
  func.func @transform_7(%arg0: i32) -> (i32, i32, i32) {
    %c0_i32 = arith.constant 0 : i32
    %c0_i32_0 = arith.constant 0 : i32
    %c0_i32_1 = arith.constant 0 : i32
    %c0_i32_2 = arith.constant 0 : i32
    return %c0_i32, %c0_i32_0, %c0_i32_1 : i32, i32, i32
  }
  func.func @transform_8(%arg0: i32) -> (i32, i32, i32) {
    %c0_i32 = arith.constant 0 : i32
    %c0_i32_0 = arith.constant 0 : i32
    %c0_i32_1 = arith.constant 0 : i32
    %c0_i32_2 = arith.constant 0 : i32
    return %c0_i32, %c0_i32_0, %c0_i32_1 : i32, i32, i32
  }
  func.func @transform_9(%arg0: i32) -> (i32, i32) {
    %c0_i32 = arith.constant 0 : i32
    %c0_i32_0 = arith.constant 0 : i32
    %c0_i32_1 = arith.constant 0 : i32
    return %c0_i32, %c0_i32_0 : i32, i32
  }
  func.func @transform_10(%arg0: i32) -> (i32, i32) {
    %c0_i32 = arith.constant 0 : i32
    %c0_i32_0 = arith.constant 0 : i32
    %c0_i32_1 = arith.constant 0 : i32
    return %c0_i32, %c0_i32_0 : i32, i32
  }
  func.func @transform_11(%arg0: i32) -> (i32, i32) {
    %c0_i32 = arith.constant 0 : i32
    %c0_i32_0 = arith.constant 0 : i32
    %c0_i32_1 = arith.constant 0 : i32
    return %c0_i32, %c0_i32_0 : i32, i32
  }
  func.func @transform_12(%arg0: i32) -> (i32, i32, i32) {
    %c0_i32 = arith.constant 0 : i32
    %c0_i32_0 = arith.constant 0 : i32
    %c0_i32_1 = arith.constant 0 : i32
    return %arg0, %c0_i32, %c0_i32_0 : i32, i32, i32
  }
}

</mosaic_0001>

<llo_original>
// kernel: tpu_custom_call.1
$region0: #{tpu_custom_call.1}
  #allocation0 [shape = 'u32[]', space=smem, size = 0x4, offset = 0x4, fixed_abs, tag = 'smem constant byte address 0x4 - core index']
  #allocation1 [shape = 'u32[72,128]{1,0:T(1,128)}', space=vmem, size = 0x9000, scoped, tag = 'internal scratch']
  %s0 = inlined_call_operand.vmem [shape: f32[2,64,32], index: 0, kind: input, shape index: {}]
  %s1 = inlined_call_operand.vmem [shape: f32[1,32], index: 1, kind: input, shape index: {}]
  %s2 = inlined_call_operand.vmem [shape: f32[1,32], index: 2, kind: input, shape index: {}]
  %s3 = inlined_call_operand.vmem [shape: f32[32,32], index: 3, kind: input, shape index: {}]
  %s4 = inlined_call_operand.vmem [shape: f32[1,32], index: 4, kind: input, shape index: {}]
  %s5 = inlined_call_operand.vmem [shape: f32[32,32], index: 5, kind: input, shape index: {}]
  %s6 = inlined_call_operand.vmem [shape: f32[1,32], index: 6, kind: input, shape index: {}]
  %s7 = inlined_call_operand.hbm [shape: f32[9,32,32], index: 7, kind: input, shape index: {}]
  %s8 = inlined_call_operand.hbm [shape: f32[9,32,32], index: 8, kind: input, shape index: {}]
  %s9 = inlined_call_operand.vmem [shape: s32[64,1], index: 9, kind: input, shape index: {}]
  %s10 = inlined_call_operand.vmem [shape: s32[64,1], index: 10, kind: input, shape index: {}]
  %s11 = inlined_call_operand.vmem [shape: f32[1,32], index: 11, kind: input, shape index: {}]
  %s12 = inlined_call_operand.vmem [shape: f32[2,64,32], index: 12, kind: output, shape index: {}]
  %s13 = sld [smem:[#allocation0]]
  $region89: #{tpu_custom_call.1} parent=0
    _
  %s15 = ssub.s32 1, %s13
  %s16 = scalar_select 0, %s15, %s13
  $region1: #{tpu_custom_call.1} parent=0
    #allocation2 [shape = 'u8[147456]{0}', space=vmem, size = 0x24000, scoped, tag = 'input window, operand 7, single buffered']
    #allocation3 [shape = 's32[2]{0}', space=sflag, size = 0x8, scoped, tag = 'scoped memory for tpu_custom_call.1']
    #allocation4 [shape = 'u8[147456]{0}', space=vmem, size = 0x24000, scoped, tag = 'input window, operand 8, single buffered']
    #allocation5 [shape = 's32[1]{0}', space=sflag, size = 0x4, scoped, tag = 'scoped memory for tpu_custom_call.1']
    %17 = vsyncpa [#allocation3], 0
    %18 = vsyncpa [#allocation5], 0
    loop: start=0, step=1, limit=4
    $region2: #{tpu_custom_call.1} parent=1 // loop_pre_header
      _
    $region3: #{tpu_custom_call.1} parent=1 // loop_header
      %s20 = sphi 0, %s24
      %p21 = scmp.ge.s32.totalorder %s20, 4
      %s30 = sphi 0, %s32
      %s33 = sphi 0, %s30
      %s34 = sphi 0, %s33
      %s50 = sphi 0, %s34
      %s54 = sphi 0, %s54
      %s56 = sphi 0, %s54
      %s57 = sphi 0, %s56
      %s71 = sphi 0, %s57
      %s75 = sphi 0, %s75
      %s77 = sphi 0, %s75
      %s78 = sphi 0, %s77
      %s92 = sphi 0, %s78
      %s96 = sphi 0, %s96
      %s98 = sphi 0, %s96
      %s99 = sphi 0, %s98
      %s113 = sphi 0, %s99
      %s117 = sphi 0, %s117
      %s119 = sphi 0, %s117
      %s120 = sphi 0, %s119
      %s134 = sphi 0, %s120
      %s138 = sphi 0, %s138
      %s140 = sphi 0, %s138
      %s141 = sphi 0, %s140
      %s155 = sphi 0, %s141
      %s159 = sphi 0, %s159
      %s161 = sphi 0, %s159
      %s162 = sphi 0, %s161
      %s176 = sphi 0, %s162
      %s180 = sphi 0, %s180
      %s182 = sphi 0, %s180
      %s183 = sphi 0, %s182
      %s197 = sphi 0, %s183
      %s201 = sphi 0, %s201
      %s203 = sphi 0, %s201
      %s204 = sphi 0, %s203
      %s218 = sphi 0, %s204
      %s222 = sphi 0, %s222
      %s224 = sphi 0, %s222
      %s225 = sphi 0, %s224
      %s239 = sphi 0, %s225
      %s243 = sphi 0, %s243
      %s245 = sphi 0, %s243
      %s246 = sphi 0, %s245
      %s260 = sphi 0, %s246
      %s264 = sphi 0, %s264
      %s266 = sphi 0, %s264
      %s267 = sphi 0, %s266
      %s281 = sphi 0, %s267
      %s287 = sphi 0, %s289
      %s290 = sphi 0, %s287
      %s291 = sphi 0, %s290
      %s307 = sphi 0, %s291
    $region4: #{tpu_custom_call.1} parent=1 // loop_header_branch
      %23 = sbr.rel (%p21) target = $region8
    $region5: #{tpu_custom_call.1} parent=1 // loop_body
      %s25 = ssub.s32 %s20, 1
      %s26 = ssub.s32 %s20, 2
      %s27 = sadd.s32 %s20, 1
      %s28 = ssub.s32 %s20, %s27
      %p29 = scmp.eq.s32.totalorder %s28, 0
      %s31 = sadd.s32 %s30, 1
      %s32 = scalar_select %p29, %s30, %s31
      %p35 = pneg %p29
      %p36 = scmp.eq.s32.totalorder %s20, 1
      %p37 = por %p35, %p36
      %p38 = scmp.ne.s32.totalorder %s30, %s33
      %p39 = scmp.eq.s32.totalorder %s20, 0
      %p40 = por %p38, %p39
      %p41 = scmp.ne.s32.totalorder %s30, %s33
      %p42 = scmp.eq.s32.totalorder %s25, 1
      %p43 = por %p41, %p42
      %p44 = scmp.ne.s32.totalorder %s33, %s34
      %p45 = scmp.eq.s32.totalorder %s25, 0
      %p46 = por %p44, %p45
      %p47 = scmp.ne.s32.totalorder %s33, %s34
      %p48 = scmp.eq.s32.totalorder %s26, 1
      %p49 = por %p47, %p48
      %p51 = scmp.ne.s32.totalorder %s34, %s50
      %p52 = scmp.eq.s32.totalorder %s26, 0
      %p53 = por %p51, %p52
      %s55 = sadd.s32 %s54, 1
      %p58 = scmp.eq.s32.totalorder %s20, 1
      %p59 = scmp.ne.s32.totalorder %s54, %s56
      %p60 = scmp.eq.s32.totalorder %s20, 0
      %p61 = por %p59, %p60
      %p62 = scmp.ne.s32.totalorder %s54, %s56
      %p63 = scmp.eq.s32.totalorder %s25, 1
      %p64 = por %p62, %p63
      %p65 = scmp.ne.s32.totalorder %s56, %s57
      %p66 = scmp.eq.s32.totalorder %s25, 0
      %p67 = por %p65, %p66
      %p68 = scmp.ne.s32.totalorder %s56, %s57
      %p69 = scmp.eq.s32.totalorder %s26, 1
      %p70 = por %p68, %p69
      %p72 = scmp.ne.s32.totalorder %s57, %s71
      %p73 = scmp.eq.s32.totalorder %s26, 0
      %p74 = por %p72, %p73
      %s76 = sadd.s32 %s75, 1
      %p79 = scmp.eq.s32.totalorder %s20, 1
      %p80 = scmp.ne.s32.totalorder %s75, %s77
      %p81 = scmp.eq.s32.totalorder %s20, 0
      %p82 = por %p80, %p81
      %p83 = scmp.ne.s32.totalorder %s75, %s77
      %p84 = scmp.eq.s32.totalorder %s25, 1
      %p85 = por %p83, %p84
      %p86 = scmp.ne.s32.totalorder %s77, %s78
      %p87 = scmp.eq.s32.totalorder %s25, 0
      %p88 = por %p86, %p87
      %p89 = scmp.ne.s32.totalorder %s77, %s78
      %p90 = scmp.eq.s32.totalorder %s26, 1
      %p91 = por %p89, %p90
      %p93 = scmp.ne.s32.totalorder %s78, %s92
      %p94 = scmp.eq.s32.totalorder %s26, 0
      %p95 = por %p93, %p94
      %s97 = sadd.s32 %s96, 1
      %p100 = scmp.eq.s32.totalorder %s20, 1
      %p101 = scmp.ne.s32.totalorder %s96, %s98
      %p102 = scmp.eq.s32.totalorder %s20, 0
      %p103 = por %p101, %p102
      %p104 = scmp.ne.s32.totalorder %s96, %s98
      %p105 = scmp.eq.s32.totalorder %s25, 1
      %p106 = por %p104, %p105
      %p107 = scmp.ne.s32.totalorder %s98, %s99
      %p108 = scmp.eq.s32.totalorder %s25, 0
      %p109 = por %p107, %p108
      %p110 = scmp.ne.s32.totalorder %s98, %s99
      %p111 = scmp.eq.s32.totalorder %s26, 1
      %p112 = por %p110, %p111
      %p114 = scmp.ne.s32.totalorder %s99, %s113
      %p115 = scmp.eq.s32.totalorder %s26, 0
      %p116 = por %p114, %p115
      %s118 = sadd.s32 %s117, 1
      %p121 = scmp.eq.s32.totalorder %s20, 1
      %p122 = scmp.ne.s32.totalorder %s117, %s119
      %p123 = scmp.eq.s32.totalorder %s20, 0
      %p124 = por %p122, %p123
      %p125 = scmp.ne.s32.totalorder %s117, %s119
      %p126 = scmp.eq.s32.totalorder %s25, 1
      %p127 = por %p125, %p126
      %p128 = scmp.ne.s32.totalorder %s119, %s120
      %p129 = scmp.eq.s32.totalorder %s25, 0
      %p130 = por %p128, %p129
      %p131 = scmp.ne.s32.totalorder %s119, %s120
      %p132 = scmp.eq.s32.totalorder %s26, 1
      %p133 = por %p131, %p132
      %p135 = scmp.ne.s32.totalorder %s120, %s134
      %p136 = scmp.eq.s32.totalorder %s26, 0
      %p137 = por %p135, %p136
      %s139 = sadd.s32 %s138, 1
      %p142 = scmp.eq.s32.totalorder %s20, 1
      %p143 = scmp.ne.s32.totalorder %s138, %s140
      %p144 = scmp.eq.s32.totalorder %s20, 0
      %p145 = por %p143, %p144
      %p146 = scmp.ne.s32.totalorder %s138, %s140
      %p147 = scmp.eq.s32.totalorder %s25, 1
      %p148 = por %p146, %p147
      %p149 = scmp.ne.s32.totalorder %s140, %s141
      %p150 = scmp.eq.s32.totalorder %s25, 0
      %p151 = por %p149, %p150
      %p152 = scmp.ne.s32.totalorder %s140, %s141
      %p153 = scmp.eq.s32.totalorder %s26, 1
      %p154 = por %p152, %p153
      %p156 = scmp.ne.s32.totalorder %s141, %s155
      %p157 = scmp.eq.s32.totalorder %s26, 0
      %p158 = por %p156, %p157
      %s160 = sadd.s32 %s159, 1
      %p163 = scmp.eq.s32.totalorder %s20, 1
      %p164 = scmp.ne.s32.totalorder %s159, %s161
      %p165 = scmp.eq.s32.totalorder %s20, 0
      %p166 = por %p164, %p165
      %p167 = scmp.ne.s32.totalorder %s159, %s161
      %p168 = scmp.eq.s32.totalorder %s25, 1
      %p169 = por %p167, %p168
      %p170 = scmp.ne.s32.totalorder %s161, %s162
      %p171 = scmp.eq.s32.totalorder %s25, 0
      %p172 = por %p170, %p171
      %p173 = scmp.ne.s32.totalorder %s161, %s162
      %p174 = scmp.eq.s32.totalorder %s26, 1
      %p175 = por %p173, %p174
      %p177 = scmp.ne.s32.totalorder %s162, %s176
      %p178 = scmp.eq.s32.totalorder %s26, 0
      %p179 = por %p177, %p178
      %s181 = sadd.s32 %s180, 1
      %p184 = scmp.eq.s32.totalorder %s20, 1
      %p185 = scmp.ne.s32.totalorder %s180, %s182
      %p186 = scmp.eq.s32.totalorder %s20, 0
      %p187 = por %p185, %p186
      %p188 = scmp.ne.s32.totalorder %s180, %s182
      %p189 = scmp.eq.s32.totalorder %s25, 1
      %p190 = por %p188, %p189
      %p191 = scmp.ne.s32.totalorder %s182, %s183
      %p192 = scmp.eq.s32.totalorder %s25, 0
      %p193 = por %p191, %p192
      %p194 = scmp.ne.s32.totalorder %s182, %s183
      %p195 = scmp.eq.s32.totalorder %s26, 1
      %p196 = por %p194, %p195
      %p198 = scmp.ne.s32.totalorder %s183, %s197
      %p199 = scmp.eq.s32.totalorder %s26, 0
      %p200 = por %p198, %p199
      %s202 = sadd.s32 %s201, 1
      %p205 = scmp.eq.s32.totalorder %s20, 1
      %p206 = scmp.ne.s32.totalorder %s201, %s203
      %p207 = scmp.eq.s32.totalorder %s20, 0
      %p208 = por %p206, %p207
      %p209 = scmp.ne.s32.totalorder %s201, %s203
      %p210 = scmp.eq.s32.totalorder %s25, 1
      %p211 = por %p209, %p210
      %p212 = scmp.ne.s32.totalorder %s203, %s204
      %p213 = scmp.eq.s32.totalorder %s25, 0
      %p214 = por %p212, %p213
      %p215 = scmp.ne.s32.totalorder %s203, %s204
      %p216 = scmp.eq.s32.totalorder %s26, 1
      %p217 = por %p215, %p216
      %p219 = scmp.ne.s32.totalorder %s204, %s218
      %p220 = scmp.eq.s32.totalorder %s26, 0
      %p221 = por %p219, %p220
      %s223 = sadd.s32 %s222, 1
      %p226 = scmp.eq.s32.totalorder %s20, 1
      %p227 = scmp.ne.s32.totalorder %s222, %s224
      %p228 = scmp.eq.s32.totalorder %s20, 0
      %p229 = por %p227, %p228
      %p230 = scmp.ne.s32.totalorder %s222, %s224
      %p231 = scmp.eq.s32.totalorder %s25, 1
      %p232 = por %p230, %p231
      %p233 = scmp.ne.s32.totalorder %s224, %s225
      %p234 = scmp.eq.s32.totalorder %s25, 0
      %p235 = por %p233, %p234
      %p236 = scmp.ne.s32.totalorder %s224, %s225
      %p237 = scmp.eq.s32.totalorder %s26, 1
      %p238 = por %p236, %p237
      %p240 = scmp.ne.s32.totalorder %s225, %s239
      %p241 = scmp.eq.s32.totalorder %s26, 0
      %p242 = por %p240, %p241
      %s244 = sadd.s32 %s243, 1
      %p247 = scmp.eq.s32.totalorder %s20, 1
      %p248 = scmp.ne.s32.totalorder %s243, %s245
      %p249 = scmp.eq.s32.totalorder %s20, 0
      %p250 = por %p248, %p249
      %p251 = scmp.ne.s32.totalorder %s243, %s245
      %p252 = scmp.eq.s32.totalorder %s25, 1
      %p253 = por %p251, %p252
      %p254 = scmp.ne.s32.totalorder %s245, %s246
      %p255 = scmp.eq.s32.totalorder %s25, 0
      %p256 = por %p254, %p255
      %p257 = scmp.ne.s32.totalorder %s245, %s246
      %p258 = scmp.eq.s32.totalorder %s26, 1
      %p259 = por %p257, %p258
      %p261 = scmp.ne.s32.totalorder %s246, %s260
      %p262 = scmp.eq.s32.totalorder %s26, 0
      %p263 = por %p261, %p262
      %s265 = sadd.s32 %s264, 1
      %p268 = scmp.eq.s32.totalorder %s20, 1
      %p269 = scmp.ne.s32.totalorder %s264, %s266
      %p270 = scmp.eq.s32.totalorder %s20, 0
      %p271 = por %p269, %p270
      %p272 = scmp.ne.s32.totalorder %s264, %s266
      %p273 = scmp.eq.s32.totalorder %s25, 1
      %p274 = por %p272, %p273
      %p275 = scmp.ne.s32.totalorder %s266, %s267
      %p276 = scmp.eq.s32.totalorder %s25, 0
      %p277 = por %p275, %p276
      %p278 = scmp.ne.s32.totalorder %s266, %s267
      %p279 = scmp.eq.s32.totalorder %s26, 1
      %p280 = por %p278, %p279
      %p282 = scmp.ne.s32.totalorder %s267, %s281
      %p283 = scmp.eq.s32.totalorder %s26, 0
      %p284 = por %p282, %p283
      %s285 = ssub.s32 %s20, %s27
      %p286 = scmp.eq.s32.totalorder %s285, 0
      %s288 = sadd.s32 %s287, 1
      %s289 = scalar_select %p286, %s287, %s288
      %p292 = pneg %p286
      %p293 = scmp.eq.s32.totalorder %s20, 1
      %p294 = por %p292, %p293
      %p295 = scmp.ne.s32.totalorder %s287, %s290
      %p296 = scmp.eq.s32.totalorder %s20, 0
      %p297 = por %p295, %p296
      %p298 = scmp.ne.s32.totalorder %s287, %s290
      %p299 = scmp.eq.s32.totalorder %s25, 1
      %p300 = por %p298, %p299
      %p301 = scmp.ne.s32.totalorder %s290, %s291
      %p302 = scmp.eq.s32.totalorder %s25, 0
      %p303 = por %p301, %p302
      %p304 = scmp.ne.s32.totalorder %s290, %s291
      %p305 = scmp.eq.s32.totalorder %s26, 1
      %p306 = por %p304, %p305
      %p308 = scmp.ne.s32.totalorder %s291, %s307
      %p309 = scmp.eq.s32.totalorder %s26, 0
      %p310 = por %p308, %p309
      %p311 = scmp.le.s32.totalorder 1, %s20
      %p312 = scmp.lt.s32.totalorder %s20, 3
      %p313 = pnand %p311, %p312
      %p314 = pneg %p313
      // Predicated region
      $region9: #{tpu_custom_call.1} parent=5 // pred_check
        _
      $region10: #{tpu_custom_call.1} parent=5 // pred_check_branch
        %316 = sbr.rel (%p313) target = $region12
      $region11: #{tpu_custom_call.1} parent=5 // pred_region
        %s317 = ssub.s32 %s20, 1
        // Predicated region
        $region13: #{tpu_custom_call.1} parent=11 // pred_check
          %p318 = pneg %p67
        $region14: #{tpu_custom_call.1} parent=11 // pred_check_branch
          %320 = sbr.rel (%p318) target = $region16
        $region15: #{tpu_custom_call.1} parent=11 // pred_region
          _
        $region16: #{tpu_custom_call.1} parent=11 // pred_fallthru
          _
        // Predicated region
        $region17: #{tpu_custom_call.1} parent=11 // pred_check
          %p321 = pneg %p88
        $region18: #{tpu_custom_call.1} parent=11 // pred_check_branch
          %323 = sbr.rel (%p321) target = $region20
        $region19: #{tpu_custom_call.1} parent=11 // pred_region
          _
        $region20: #{tpu_custom_call.1} parent=11 // pred_fallthru
          _
        // Predicated region
        $region21: #{tpu_custom_call.1} parent=11 // pred_check
          %p324 = pneg %p109
        $region22: #{tpu_custom_call.1} parent=11 // pred_check_branch
          %326 = sbr.rel (%p324) target = $region24
        $region23: #{tpu_custom_call.1} parent=11 // pred_region
          _
        $region24: #{tpu_custom_call.1} parent=11 // pred_fallthru
          _
        // Predicated region
        $region25: #{tpu_custom_call.1} parent=11 // pred_check
          %p327 = pneg %p130
        $region26: #{tpu_custom_call.1} parent=11 // pred_check_branch
          %329 = sbr.rel (%p327) target = $region28
        $region27: #{tpu_custom_call.1} parent=11 // pred_region
          _
        $region28: #{tpu_custom_call.1} parent=11 // pred_fallthru
          _
        // Predicated region
        $region29: #{tpu_custom_call.1} parent=11 // pred_check
          %p330 = pneg %p151
        $region30: #{tpu_custom_call.1} parent=11 // pred_check_branch
          %332 = sbr.rel (%p330) target = $region32
        $region31: #{tpu_custom_call.1} parent=11 // pred_region
          _
        $region32: #{tpu_custom_call.1} parent=11 // pred_fallthru
          _
        // Predicated region
        $region33: #{tpu_custom_call.1} parent=11 // pred_check
          %p333 = pneg %p172
        $region34: #{tpu_custom_call.1} parent=11 // pred_check_branch
          %335 = sbr.rel (%p333) target = $region36
        $region35: #{tpu_custom_call.1} parent=11 // pred_region
          _
        $region36: #{tpu_custom_call.1} parent=11 // pred_fallthru
          _
        // Predicated region
        $region37: #{tpu_custom_call.1} parent=11 // pred_check
          %p336 = pneg %p193
        $region38: #{tpu_custom_call.1} parent=11 // pred_check_branch
          %338 = sbr.rel (%p336) target = $region40
        $region39: #{tpu_custom_call.1} parent=11 // pred_region
          %340 = vsyncadd [#allocation3], 0
          %s341 = sshll.u32 %s7, 4
          %s342 = int_to_ptr.hbm [resolvable:$true] %s341
          %s343 = sshll.u32 [#allocation2], 4
          %s344 = int_to_ptr.vmem [resolvable:$true] %s343
          %349 = dma.hbm_to_vmem [thread:$0]  %s342, 4608, %s344, [#allocation3], 128, 128, 8
        $region40: #{tpu_custom_call.1} parent=11 // pred_fallthru
          _
        // Predicated region
        $region41: #{tpu_custom_call.1} parent=11 // pred_check
          %p350 = pneg %p214
        $region42: #{tpu_custom_call.1} parent=11 // pred_check_branch
          %352 = sbr.rel (%p350) target = $region44
        $region43: #{tpu_custom_call.1} parent=11 // pred_region
          %354 = vsyncadd [#allocation5], 0
          %s355 = sshll.u32 %s8, 4
          %s356 = int_to_ptr.hbm [resolvable:$true] %s355
          %s357 = sshll.u32 [#allocation4], 4
          %s358 = int_to_ptr.vmem [resolvable:$true] %s357
          %363 = dma.hbm_to_vmem [thread:$0]  %s356, 4608, %s358, [#allocation5], 128, 128, 8
        $region44: #{tpu_custom_call.1} parent=11 // pred_fallthru
          _
        // Predicated region
        $region45: #{tpu_custom_call.1} parent=11 // pred_check
          %p364 = pneg %p235
        $region46: #{tpu_custom_call.1} parent=11 // pred_check_branch
          %366 = sbr.rel (%p364) target = $region48
        $region47: #{tpu_custom_call.1} parent=11 // pred_region
          _
        $region48: #{tpu_custom_call.1} parent=11 // pred_fallthru
          _
        // Predicated region
        $region49: #{tpu_custom_call.1} parent=11 // pred_check
          %p367 = pneg %p256
        $region50: #{tpu_custom_call.1} parent=11 // pred_check_branch
          %369 = sbr.rel (%p367) target = $region52
        $region51: #{tpu_custom_call.1} parent=11 // pred_region
          _
        $region52: #{tpu_custom_call.1} parent=11 // pred_fallthru
          _
        // Predicated region
        $region53: #{tpu_custom_call.1} parent=11 // pred_check
          %p370 = pneg %p277
        $region54: #{tpu_custom_call.1} parent=11 // pred_check_branch
          %372 = sbr.rel (%p370) target = $region56
        $region55: #{tpu_custom_call.1} parent=11 // pred_region
          _
        $region56: #{tpu_custom_call.1} parent=11 // pred_fallthru
          _
      $region12: #{tpu_custom_call.1} parent=5 // pred_fallthru
        _
      %p373 = scmp.lt.s32.totalorder %s20, 2
      // Predicated region
      $region57: #{tpu_custom_call.1} parent=5 // pred_check
        %p374 = pneg %p373
      $region58: #{tpu_custom_call.1} parent=5 // pred_check_branch
        %376 = sbr.rel (%p374) target = $region60
      $region59: #{tpu_custom_call.1} parent=5 // pred_region
        // Predicated region
        $region61: #{tpu_custom_call.1} parent=59 // pred_check
          %p377 = pneg %p40
        $region62: #{tpu_custom_call.1} parent=59 // pred_check_branch
          %379 = sbr.rel (%p377) target = $region64
        $region63: #{tpu_custom_call.1} parent=59 // pred_region
          %p380 = scmp.lt.s32.totalorder %s20, 1
          %s381 = scalar_select %p380, %s20, 1
          %s382 = smul.addr %s381, 8
          %s383 = smul.addr %s382, 8
          %s384 = scalar_lea.vmem %s0, %s383
        $region64: #{tpu_custom_call.1} parent=59 // pred_fallthru
          _
      $region60: #{tpu_custom_call.1} parent=5 // pred_fallthru
        _
      %p385 = scmp.le.s32.totalorder 1, %s20
      %p386 = scmp.lt.s32.totalorder %s20, 3
      %p387 = pnand %p385, %p386
      %p388 = pneg %p387
      // Predicated region
      $region65: #{tpu_custom_call.1} parent=5 // pred_check
        _
      $region66: #{tpu_custom_call.1} parent=5 // pred_check_branch
        %390 = sbr.rel (%p387) target = $region68
      $region67: #{tpu_custom_call.1} parent=5 // pred_region
        %s391 = ssub.s32 %s20, 1
        // Predicated region
        $region69: #{tpu_custom_call.1} parent=67 // pred_check
          %p392 = pneg %p193
        $region70: #{tpu_custom_call.1} parent=67 // pred_check_branch
          %394 = sbr.rel (%p392) target = $region72
        $region71: #{tpu_custom_call.1} parent=67 // pred_region
          %396 = dma.done [#allocation3], 4608
        $region72: #{tpu_custom_call.1} parent=67 // pred_fallthru
          _
        // Predicated region
        $region73: #{tpu_custom_call.1} parent=67 // pred_check
          %p397 = pneg %p214
        $region74: #{tpu_custom_call.1} parent=67 // pred_check_branch
          %399 = sbr.rel (%p397) target = $region76
        $region75: #{tpu_custom_call.1} parent=67 // pred_region
          %401 = dma.done [#allocation5], 4608
        $region76: #{tpu_custom_call.1} parent=67 // pred_fallthru
          _
        %p402 = scmp.lt.s32.totalorder %s25, 1
        %s403 = scalar_select %p402, %s25, 1
        %s404 = smul.addr %s403, 8
        %s405 = smul.addr %s404, 8
        %s406 = scalar_lea.vmem %s0, %s405
        %p407 = pneg %p46
        %p408 = pneg %p43
        %p409 = pneg %p67
        %p410 = pneg %p64
        %p411 = pneg %p88
        %p412 = pneg %p85
        %p413 = pneg %p109
        %p414 = pneg %p106
        %p415 = pneg %p130
        %p416 = pneg %p127
        %p417 = pneg %p151
        %p418 = pneg %p148
        %p419 = pneg %p172
        %p420 = pneg %p169
        %p421 = pneg %p193
        %p422 = pneg %p190
        %p423 = pneg %p214
        %p424 = pneg %p211
        %p425 = pneg %p235
        %p426 = pneg %p232
        %p427 = pneg %p256
        %p428 = pneg %p253
        %p429 = pneg %p277
        %p430 = pneg %p274
        %p431 = pneg %p303
        %p432 = pneg %p300
        %p433 = scmp.lt.s32.totalorder %s25, 1
        %s434 = scalar_select %p433, %s25, 1
        %s435 = smul.addr %s434, 8
        %s436 = smul.addr %s435, 8
        %s437 = scalar_lea.vmem %s12, %s436
        %p438 = scmp.lt.s32.totalorder %s25, 1
        %s439 = scalar_select %p438, %s25, 1
        %s440 = smul.addr %s439, 8
        %s441 = smul.addr %s440, 8
        %s442 = scalar_lea.vmem %s0, %s441
        %p443 = scmp.lt.s32.totalorder %s25, 1
        %s444 = scalar_select %p443, %s25, 1
        %s445 = smul.addr %s444, 8
        %s446 = smul.addr %s445, 8
        %s447 = scalar_lea.vmem %s12, %s446
        %v448 = vld [vmem:[%s442] sm:$0xff]
        %v449 = vld [vmem:[%s442 + $0x8] sm:$0xff]
        %v450 = vld [vmem:[%s442 + $0x10] sm:$0xff]
        %v451 = vld [vmem:[%s442 + $0x18] sm:$0xff]
        %v452 = vld [vmem:[%s442 + $0x20] sm:$0xff]
        %v453 = vld [vmem:[%s442 + $0x28] sm:$0xff]
        %v454 = vld [vmem:[%s442 + $0x30] sm:$0xff]
        %v455 = vld [vmem:[%s442 + $0x38] sm:$0xff]
        %vm456 = vcmask 261120
        %v457 = vsel %vm456, %v448, 0.0
        %458 = vadd.xlane.f32.xlu0 %v457
        %v459 = vpop.xlane.xlu0 %458
        %v460 = vsel %vm456, %v449, 0.0
        %461 = vadd.xlane.f32.xlu0 %v460
        %v462 = vpop.xlane.xlu0 %461
        %v463 = vsel %vm456, %v450, 0.0
        %464 = vadd.xlane.f32.xlu0 %v463
        %v465 = vpop.xlane.xlu0 %464
        %v466 = vsel %vm456, %v451, 0.0
        %467 = vadd.xlane.f32.xlu0 %v466
        %v468 = vpop.xlane.xlu0 %467
        %v469 = vsel %vm456, %v452, 0.0
        %470 = vadd.xlane.f32.xlu0 %v469
        %v471 = vpop.xlane.xlu0 %470
        %v472 = vsel %vm456, %v453, 0.0
        %473 = vadd.xlane.f32.xlu0 %v472
        %v474 = vpop.xlane.xlu0 %473
        %v475 = vsel %vm456, %v454, 0.0
        %476 = vadd.xlane.f32.xlu0 %v475
        %v477 = vpop.xlane.xlu0 %476
        %v478 = vsel %vm456, %v455, 0.0
        %479 = vadd.xlane.f32.xlu0 %v478
        %v480 = vpop.xlane.xlu0 %479
        %v481 = vrcp.pop 32.0
        %v482 = vmul.f32 32.0, %v481
        %v483 = vsub.f32 1.0, %v482
        %v484 = vmul.f32 %v481, %v483
        %v485 = vadd.f32 %v481, %v484
        %vm486 = vweird.f32 %v481
        %v487 = vsel %vm486, %v481, %v485
        %v488 = vmul.f32 %v459, %v487
        %v489 = vmul.f32 %v462, %v487
        %v490 = vmul.f32 %v465, %v487
        %v491 = vmul.f32 %v468, %v487
        %v492 = vmul.f32 %v471, %v487
        %v493 = vmul.f32 %v474, %v487
        %v494 = vmul.f32 %v477, %v487
        %v495 = vmul.f32 %v480, %v487
        %v496 = vsub.f32 %v448, %v488
        %v497 = vsub.f32 %v449, %v489
        %v498 = vsub.f32 %v450, %v490
        %v499 = vsub.f32 %v451, %v491
        %v500 = vsub.f32 %v452, %v492
        %v501 = vsub.f32 %v453, %v493
        %v502 = vsub.f32 %v454, %v494
        %v503 = vsub.f32 %v455, %v495
        %v504 = vmul.f32 %v496, %v496
        %v505 = vmul.f32 %v497, %v497
        %v506 = vmul.f32 %v498, %v498
        %v507 = vmul.f32 %v499, %v499
        %v508 = vmul.f32 %v500, %v500
        %v509 = vmul.f32 %v501, %v501
        %v510 = vmul.f32 %v502, %v502
        %v511 = vmul.f32 %v503, %v503
        %v512 = vsel %vm456, %v504, 0.0
        %513 = vadd.xlane.f32.xlu0 %v512
        %v514 = vpop.xlane.xlu0 %513
        %v515 = vsel %vm456, %v505, 0.0
        %516 = vadd.xlane.f32.xlu0 %v515
        %v517 = vpop.xlane.xlu0 %516
        %v518 = vsel %vm456, %v506, 0.0
        %519 = vadd.xlane.f32.xlu0 %v518
        %v520 = vpop.xlane.xlu0 %519
        %v521 = vsel %vm456, %v507, 0.0
        %522 = vadd.xlane.f32.xlu0 %v521
        %v523 = vpop.xlane.xlu0 %522
        %v524 = vsel %vm456, %v508, 0.0
        %525 = vadd.xlane.f32.xlu0 %v524
        %v526 = vpop.xlane.xlu0 %525
        %v527 = vsel %vm456, %v509, 0.0
        %528 = vadd.xlane.f32.xlu0 %v527
        %v529 = vpop.xlane.xlu0 %528
        %v530 = vsel %vm456, %v510, 0.0
        %531 = vadd.xlane.f32.xlu0 %v530
        %v532 = vpop.xlane.xlu0 %531
        %v533 = vsel %vm456, %v511, 0.0
        %534 = vadd.xlane.f32.xlu0 %v533
        %v535 = vpop.xlane.xlu0 %534
        %v536 = vmul.f32 %v514, %v487
        %v537 = vmul.f32 %v517, %v487
        %v538 = vmul.f32 %v520, %v487
        %v539 = vmul.f32 %v523, %v487
        %v540 = vmul.f32 %v526, %v487
        %v541 = vmul.f32 %v529, %v487
        %v542 = vmul.f32 %v532, %v487
        %v543 = vmul.f32 %v535, %v487
        %v544 = vadd.f32 %v536, 1e-05
        %v545 = vadd.f32 %v537, 1e-05
        %v546 = vadd.f32 %v538, 1e-05
        %v547 = vadd.f32 %v539, 1e-05
        %v548 = vadd.f32 %v540, 1e-05
        %v549 = vadd.f32 %v541, 1e-05
        %v550 = vadd.f32 %v542, 1e-05
        %v551 = vadd.f32 %v543, 1e-05
        %v552 = vrsqrt.pop %v544
        %v553 = vmul.f32 %v552, %v544
        %v554 = vmul.f32 %v553, %v552
        %v555 = vmul.f32 0.5, %v554
        %v556 = vsub.f32 1.5, %v555
        %v557 = vmul.f32 %v552, %v556
        %vm558 = vweird.f32 %v544
        %vm559 = vweird.f32 %v552
        %vm560 = vmor %vm558, %vm559
        %v561 = vsel %vm560, %v552, %v557
        %v562 = vrsqrt.pop %v545
        %v563 = vmul.f32 %v562, %v545
        %v564 = vmul.f32 %v563, %v562
        %v565 = vmul.f32 0.5, %v564
        %v566 = vsub.f32 1.5, %v565
        %v567 = vmul.f32 %v562, %v566
        %vm568 = vweird.f32 %v545
        %vm569 = vweird.f32 %v562
        %vm570 = vmor %vm568, %vm569
        %v571 = vsel %vm570, %v562, %v567
        %v572 = vrsqrt.pop %v546
        %v573 = vmul.f32 %v572, %v546
        %v574 = vmul.f32 %v573, %v572
        %v575 = vmul.f32 0.5, %v574
        %v576 = vsub.f32 1.5, %v575
        %v577 = vmul.f32 %v572, %v576
        %vm578 = vweird.f32 %v546
        %vm579 = vweird.f32 %v572
        %vm580 = vmor %vm578, %vm579
        %v581 = vsel %vm580, %v572, %v577
        %v582 = vrsqrt.pop %v547
        %v583 = vmul.f32 %v582, %v547
        %v584 = vmul.f32 %v583, %v582
        %v585 = vmul.f32 0.5, %v584
        %v586 = vsub.f32 1.5, %v585
        %v587 = vmul.f32 %v582, %v586
        %vm588 = vweird.f32 %v547
        %vm589 = vweird.f32 %v582
        %vm590 = vmor %vm588, %vm589
        %v591 = vsel %vm590, %v582, %v587
        %v592 = vrsqrt.pop %v548
        %v593 = vmul.f32 %v592, %v548
        %v594 = vmul.f32 %v593, %v592
        %v595 = vmul.f32 0.5, %v594
        %v596 = vsub.f32 1.5, %v595
        %v597 = vmul.f32 %v592, %v596
        %vm598 = vweird.f32 %v548
        %vm599 = vweird.f32 %v592
        %vm600 = vmor %vm598, %vm599
        %v601 = vsel %vm600, %v592, %v597
        %v602 = vrsqrt.pop %v549
        %v603 = vmul.f32 %v602, %v549
        %v604 = vmul.f32 %v603, %v602
        %v605 = vmul.f32 0.5, %v604
        %v606 = vsub.f32 1.5, %v605
        %v607 = vmul.f32 %v602, %v606
        %vm608 = vweird.f32 %v549
        %vm609 = vweird.f32 %v602
        %vm610 = vmor %vm608, %vm609
        %v611 = vsel %vm610, %v602, %v607
        %v612 = vrsqrt.pop %v550
        %v613 = vmul.f32 %v612, %v550
        %v614 = vmul.f32 %v613, %v612
        %v615 = vmul.f32 0.5, %v614
        %v616 = vsub.f32 1.5, %v615
        %v617 = vmul.f32 %v612, %v616
        %vm618 = vweird.f32 %v550
        %vm619 = vweird.f32 %v612
        %vm620 = vmor %vm618, %vm619
        %v621 = vsel %vm620, %v612, %v617
        %v622 = vrsqrt.pop %v551
        %v623 = vmul.f32 %v622, %v551
        %v624 = vmul.f32 %v623, %v622
        %v625 = vmul.f32 0.5, %v624
        %v626 = vsub.f32 1.5, %v625
        %v627 = vmul.f32 %v622, %v626
        %vm628 = vweird.f32 %v551
        %vm629 = vweird.f32 %v622
        %vm630 = vmor %vm628, %vm629
        %v631 = vsel %vm630, %v622, %v627
        %v632 = vld [vmem:[%s1] sm:$0x1]
        %v634 = vperm.slane %v632, 0
        %v636 = vmul.f32 %v561, %v634
        %v637 = vmul.f32 %v571, %v634
        %v638 = vmul.f32 %v581, %v634
        %v639 = vmul.f32 %v591, %v634
        %v640 = vmul.f32 %v601, %v634
        %v641 = vmul.f32 %v611, %v634
        %v642 = vmul.f32 %v621, %v634
        %v643 = vmul.f32 %v631, %v634
        %v644 = vmul.f32 %v496, %v636
        %v645 = vmul.f32 %v497, %v637
        %v646 = vmul.f32 %v498, %v638
        %v647 = vmul.f32 %v499, %v639
        %v648 = vmul.f32 %v500, %v640
        %v649 = vmul.f32 %v501, %v641
        %v650 = vmul.f32 %v502, %v642
        %v651 = vmul.f32 %v503, %v643
        %v652 = vld [vmem:[%s2] sm:$0x1]
        %v654 = vperm.slane %v652, 0
        %v656 = vadd.f32 %v644, %v654
        %v657 = vadd.f32 %v645, %v654
        %v658 = vadd.f32 %v646, %v654
        %v659 = vadd.f32 %v647, %v654
        %v660 = vadd.f32 %v648, %v654
        %v661 = vadd.f32 %v649, %v654
        %v662 = vadd.f32 %v650, %v654
        %v663 = vadd.f32 %v651, %v654
        %v664 = vld [vmem:[%s3] sm:$0xff]
        %v665 = vld [vmem:[%s3 + $0x8] sm:$0xff]
        %v666 = vld [vmem:[%s3 + $0x10] sm:$0xff]
        %v667 = vld [vmem:[%s3 + $0x18] sm:$0xff]
        %v668 = vld [vmem:[%s4] sm:$0x1]
        %v670 = vperm.slane %v668, 0
        %v673 = vsel %vm456, %v656, 0
        %v676 = vsel %vm456, %v657, 0
        %v679 = vsel %vm456, %v658, 0
        %v682 = vsel %vm456, %v659, 0
        %v685 = vsel %vm456, %v660, 0
        %v688 = vsel %vm456, %v661, 0
        %v691 = vsel %vm456, %v662, 0
        %v694 = vsel %vm456, %v663, 0
        %696 = vmatpush.msra.mxu0 0.0
        %697 = vmatpush.msra.mxu0 0.0
        %698 = vmatpush.msra.mxu0 0.0
        %699 = vmatpush.msra.mxu0 0.0
        %700 = vmatpush.msra.mxu0 0.0
        %701 = vmatpush.msra.mxu0 0.0
        %702 = vmatpush.msra.mxu0 0.0
        %703 = vmatpush.msra.mxu0 0.0
        %704 = vmatpush.msra.mxu0 0.0
        %705 = vmatpush.msra.mxu0 0.0
        %706 = vmatpush.msra.mxu0 0.0
        %707 = vmatpush.msra.mxu0 0.0
        %708 = vmatpush.msra.mxu0 %v667
        %709 = vmatpush.msra.mxu0 %v666
        %710 = vmatpush.msra.mxu0 %v665
        %711 = vmatpush.msra.mxu0 %v664
        %712 = vmatmul.f32.gmra.mxu0 %v673
        %v713 = vpop.f32.mrf.mxu0
        %v714 = vadd.f32 %v670, %v713
        %715 = vmatmul.f32.gmra.mxu0 %v676
        %v716 = vpop.f32.mrf.mxu0
        %v717 = vadd.f32 %v670, %v716
        %718 = vmatmul.f32.gmra.mxu0 %v679
        %v719 = vpop.f32.mrf.mxu0
        %v720 = vadd.f32 %v670, %v719
        %721 = vmatmul.f32.gmra.mxu0 %v682
        %v722 = vpop.f32.mrf.mxu0
        %v723 = vadd.f32 %v670, %v722
        %724 = vmatmul.f32.gmra.mxu0 %v685
        %v725 = vpop.f32.mrf.mxu0
        %v726 = vadd.f32 %v670, %v725
        %727 = vmatmul.f32.gmra.mxu0 %v688
        %v728 = vpop.f32.mrf.mxu0
        %v729 = vadd.f32 %v670, %v728
        %730 = vmatmul.f32.gmra.mxu0 %v691
        %v731 = vpop.f32.mrf.mxu0
        %v732 = vadd.f32 %v670, %v731
        %733 = vmatmul.f32.gmra.mxu0 %v694
        %v734 = vpop.f32.mrf.mxu0
        %v735 = vadd.f32 %v670, %v734
        %736 = vdwg.mxu0
        %v737 = vadd.f32 %v714, %v656
        %v738 = vadd.f32 %v717, %v657
        %v739 = vadd.f32 %v720, %v658
        %v740 = vadd.f32 %v723, %v659
        %v741 = vadd.f32 %v726, %v660
        %v742 = vadd.f32 %v729, %v661
        %v743 = vadd.f32 %v732, %v662
        %v744 = vadd.f32 %v735, %v663
        %v745 = vld [vmem:[%s5] sm:$0xff]
        %v746 = vld [vmem:[%s5 + $0x8] sm:$0xff]
        %v747 = vld [vmem:[%s5 + $0x10] sm:$0xff]
        %v748 = vld [vmem:[%s5 + $0x18] sm:$0xff]
        %v749 = vld [vmem:[%s6] sm:$0x1]
        %v751 = vperm.slane %v749, 0
        %753 = vmatpush.msra.mxu0 0.0
        %754 = vmatpush.msra.mxu0 0.0
        %755 = vmatpush.msra.mxu0 0.0
        %756 = vmatpush.msra.mxu0 0.0
        %757 = vmatpush.msra.mxu0 0.0
        %758 = vmatpush.msra.mxu0 0.0
        %759 = vmatpush.msra.mxu0 0.0
        %760 = vmatpush.msra.mxu0 0.0
        %761 = vmatpush.msra.mxu0 0.0
        %762 = vmatpush.msra.mxu0 0.0
        %763 = vmatpush.msra.mxu0 0.0
        %764 = vmatpush.msra.mxu0 0.0
        %765 = vmatpush.msra.mxu0 %v748
        %766 = vmatpush.msra.mxu0 %v747
        %767 = vmatpush.msra.mxu0 %v746
        %768 = vmatpush.msra.mxu0 %v745
        %769 = vmatmul.f32.gmra.mxu0 %v673
        %v770 = vpop.f32.mrf.mxu0
        %v771 = vadd.f32 %v751, %v770
        %772 = vmatmul.f32.gmra.mxu0 %v676
        %v773 = vpop.f32.mrf.mxu0
        %v774 = vadd.f32 %v751, %v773
        %775 = vmatmul.f32.gmra.mxu0 %v679
        %v776 = vpop.f32.mrf.mxu0
        %v777 = vadd.f32 %v751, %v776
        %778 = vmatmul.f32.gmra.mxu0 %v682
        %v779 = vpop.f32.mrf.mxu0
        %v780 = vadd.f32 %v751, %v779
        %781 = vmatmul.f32.gmra.mxu0 %v685
        %v782 = vpop.f32.mrf.mxu0
        %v783 = vadd.f32 %v751, %v782
        %784 = vmatmul.f32.gmra.mxu0 %v688
        %v785 = vpop.f32.mrf.mxu0
        %v786 = vadd.f32 %v751, %v785
        %787 = vmatmul.f32.gmra.mxu0 %v691
        %v788 = vpop.f32.mrf.mxu0
        %v789 = vadd.f32 %v751, %v788
        %790 = vmatmul.f32.gmra.mxu0 %v694
        %v791 = vpop.f32.mrf.mxu0
        %v792 = vadd.f32 %v751, %v791
        %793 = vdwg.mxu0
        %v794 = vadd.f32 %v771, %v656
        %v795 = vadd.f32 %v774, %v657
        %v796 = vadd.f32 %v777, %v658
        %v797 = vadd.f32 %v780, %v659
        %v798 = vadd.f32 %v783, %v660
        %v799 = vadd.f32 %v786, %v661
        %v800 = vadd.f32 %v789, %v662
        %v801 = vadd.f32 %v792, %v663
        %v802 = vsel %vm456, %v737, 0.0
        %803 = vadd.xlane.f32.xlu0 %v802
        %v804 = vpop.xlane.xlu0 %803
        %v805 = vsel %vm456, %v738, 0.0
        %806 = vadd.xlane.f32.xlu0 %v805
        %v807 = vpop.xlane.xlu0 %806
        %v808 = vsel %vm456, %v739, 0.0
        %809 = vadd.xlane.f32.xlu0 %v808
        %v810 = vpop.xlane.xlu0 %809
        %v811 = vsel %vm456, %v740, 0.0
        %812 = vadd.xlane.f32.xlu0 %v811
        %v813 = vpop.xlane.xlu0 %812
        %v814 = vsel %vm456, %v741, 0.0
        %815 = vadd.xlane.f32.xlu0 %v814
        %v816 = vpop.xlane.xlu0 %815
        %v817 = vsel %vm456, %v742, 0.0
        %818 = vadd.xlane.f32.xlu0 %v817
        %v819 = vpop.xlane.xlu0 %818
        %v820 = vsel %vm456, %v743, 0.0
        %821 = vadd.xlane.f32.xlu0 %v820
        %v822 = vpop.xlane.xlu0 %821
        %v823 = vsel %vm456, %v744, 0.0
        %824 = vadd.xlane.f32.xlu0 %v823
        %v825 = vpop.xlane.xlu0 %824
        %v826 = vadd.f32 %v804, %v807
        %v827 = vadd.f32 %v826, %v810
        %v828 = vadd.f32 %v827, %v813
        %v829 = vadd.f32 %v828, %v816
        %v830 = vadd.f32 %v829, %v819
        %v831 = vadd.f32 %v830, %v822
        %v832 = vadd.f32 %v831, %v825
        %v833 = vrot.slane %v832, 4
        %v834 = vadd.f32 %v832, %v833
        %v835 = vrot.slane %v834, 2
        %v836 = vadd.f32 %v834, %v835
        %v837 = vrot.slane %v836, 1
        %v838 = vadd.f32 %v836, %v837
        %v839 = vsel %vm456, %v794, 0.0
        %840 = vadd.xlane.f32.xlu0 %v839
        %v841 = vpop.xlane.xlu0 %840
        %v842 = vsel %vm456, %v795, 0.0
        %843 = vadd.xlane.f32.xlu0 %v842
        %v844 = vpop.xlane.xlu0 %843
        %v845 = vsel %vm456, %v796, 0.0
        %846 = vadd.xlane.f32.xlu0 %v845
        %v847 = vpop.xlane.xlu0 %846
        %v848 = vsel %vm456, %v797, 0.0
        %849 = vadd.xlane.f32.xlu0 %v848
        %v850 = vpop.xlane.xlu0 %849
        %v851 = vsel %vm456, %v798, 0.0
        %852 = vadd.xlane.f32.xlu0 %v851
        %v853 = vpop.xlane.xlu0 %852
        %v854 = vsel %vm456, %v799, 0.0
        %855 = vadd.xlane.f32.xlu0 %v854
        %v856 = vpop.xlane.xlu0 %855
        %v857 = vsel %vm456, %v800, 0.0
        %858 = vadd.xlane.f32.xlu0 %v857
        %v859 = vpop.xlane.xlu0 %858
        %v860 = vsel %vm456, %v801, 0.0
        %861 = vadd.xlane.f32.xlu0 %v860
        %v862 = vpop.xlane.xlu0 %861
        %v863 = vadd.f32 %v841, %v844
        %v864 = vadd.f32 %v863, %v847
        %v865 = vadd.f32 %v864, %v850
        %v866 = vadd.f32 %v865, %v853
        %v867 = vadd.f32 %v866, %v856
        %v868 = vadd.f32 %v867, %v859
        %v869 = vadd.f32 %v868, %v862
        %v870 = vrot.slane %v869, 4
        %v871 = vadd.f32 %v869, %v870
        %v872 = vrot.slane %v871, 2
        %v873 = vadd.f32 %v871, %v872
        %v874 = vrot.slane %v873, 1
        %v875 = vadd.f32 %v873, %v874
        %v876 = vadd.f32 %v838, %v875
        %v877 = vrcp.pop 4096.0
        %v878 = vmul.f32 4096.0, %v877
        %v879 = vsub.f32 1.0, %v878
        %v880 = vmul.f32 %v877, %v879
        %v881 = vadd.f32 %v877, %v880
        %vm882 = vweird.f32 %v877
        %v883 = vsel %vm882, %v877, %v881
        %v884 = vmul.f32 %v876, %v883
        %v885 = vsub.f32 %v737, %v884
        %v886 = vsub.f32 %v738, %v884
        %v887 = vsub.f32 %v739, %v884
        %v888 = vsub.f32 %v740, %v884
        %v889 = vsub.f32 %v741, %v884
        %v890 = vsub.f32 %v742, %v884
        %v891 = vsub.f32 %v743, %v884
        %v892 = vsub.f32 %v744, %v884
        %v893 = vsub.f32 %v794, %v884
        %v894 = vsub.f32 %v795, %v884
        %v895 = vsub.f32 %v796, %v884
        %v896 = vsub.f32 %v797, %v884
        %v897 = vsub.f32 %v798, %v884
        %v898 = vsub.f32 %v799, %v884
        %v899 = vsub.f32 %v800, %v884
        %v900 = vsub.f32 %v801, %v884
        %v901 = vmul.f32 %v885, %v885
        %v902 = vmul.f32 %v886, %v886
        %v903 = vmul.f32 %v887, %v887
        %v904 = vmul.f32 %v888, %v888
        %v905 = vmul.f32 %v889, %v889
        %v906 = vmul.f32 %v890, %v890
        %v907 = vmul.f32 %v891, %v891
        %v908 = vmul.f32 %v892, %v892
        %v909 = vsel %vm456, %v901, 0.0
        %910 = vadd.xlane.f32.xlu0 %v909
        %v911 = vpop.xlane.xlu0 %910
        %v912 = vsel %vm456, %v902, 0.0
        %913 = vadd.xlane.f32.xlu0 %v912
        %v914 = vpop.xlane.xlu0 %913
        %v915 = vsel %vm456, %v903, 0.0
        %916 = vadd.xlane.f32.xlu0 %v915
        %v917 = vpop.xlane.xlu0 %916
        %v918 = vsel %vm456, %v904, 0.0
        %919 = vadd.xlane.f32.xlu0 %v918
        %v920 = vpop.xlane.xlu0 %919
        %v921 = vsel %vm456, %v905, 0.0
        %922 = vadd.xlane.f32.xlu0 %v921
        %v923 = vpop.xlane.xlu0 %922
        %v924 = vsel %vm456, %v906, 0.0
        %925 = vadd.xlane.f32.xlu0 %v924
        %v926 = vpop.xlane.xlu0 %925
        %v927 = vsel %vm456, %v907, 0.0
        %928 = vadd.xlane.f32.xlu0 %v927
        %v929 = vpop.xlane.xlu0 %928
        %v930 = vsel %vm456, %v908, 0.0
        %931 = vadd.xlane.f32.xlu0 %v930
        %v932 = vpop.xlane.xlu0 %931
        %v933 = vadd.f32 %v911, %v914
        %v934 = vadd.f32 %v933, %v917
        %v935 = vadd.f32 %v934, %v920
        %v936 = vadd.f32 %v935, %v923
        %v937 = vadd.f32 %v936, %v926
        %v938 = vadd.f32 %v937, %v929
        %v939 = vadd.f32 %v938, %v932
        %v940 = vrot.slane %v939, 4
        %v941 = vadd.f32 %v939, %v940
        %v942 = vrot.slane %v941, 2
        %v943 = vadd.f32 %v941, %v942
        %v944 = vrot.slane %v943, 1
        %v945 = vadd.f32 %v943, %v944
        %v946 = vmul.f32 %v893, %v893
        %v947 = vmul.f32 %v894, %v894
        %v948 = vmul.f32 %v895, %v895
        %v949 = vmul.f32 %v896, %v896
        %v950 = vmul.f32 %v897, %v897
        %v951 = vmul.f32 %v898, %v898
        %v952 = vmul.f32 %v899, %v899
        %v953 = vmul.f32 %v900, %v900
        %v954 = vsel %vm456, %v946, 0.0
        %955 = vadd.xlane.f32.xlu0 %v954
        %v956 = vpop.xlane.xlu0 %955
        %v957 = vsel %vm456, %v947, 0.0
        %958 = vadd.xlane.f32.xlu0 %v957
        %v959 = vpop.xlane.xlu0 %958
        %v960 = vsel %vm456, %v948, 0.0
        %961 = vadd.xlane.f32.xlu0 %v960
        %v962 = vpop.xlane.xlu0 %961
        %v963 = vsel %vm456, %v949, 0.0
        %964 = vadd.xlane.f32.xlu0 %v963
        %v965 = vpop.xlane.xlu0 %964
        %v966 = vsel %vm456, %v950, 0.0
        %967 = vadd.xlane.f32.xlu0 %v966
        %v968 = vpop.xlane.xlu0 %967
        %v969 = vsel %vm456, %v951, 0.0
        %970 = vadd.xlane.f32.xlu0 %v969
        %v971 = vpop.xlane.xlu0 %970
        %v972 = vsel %vm456, %v952, 0.0
        %973 = vadd.xlane.f32.xlu0 %v972
        %v974 = vpop.xlane.xlu0 %973
        %v975 = vsel %vm456, %v953, 0.0
        %976 = vadd.xlane.f32.xlu0 %v975
        %v977 = vpop.xlane.xlu0 %976
        %v978 = vadd.f32 %v956, %v959
        %v979 = vadd.f32 %v978, %v962
        %v980 = vadd.f32 %v979, %v965
        %v981 = vadd.f32 %v980, %v968
        %v982 = vadd.f32 %v981, %v971
        %v983 = vadd.f32 %v982, %v974
        %v984 = vadd.f32 %v983, %v977
        %v985 = vrot.slane %v984, 4
        %v986 = vadd.f32 %v984, %v985
        %v987 = vrot.slane %v986, 2
        %v988 = vadd.f32 %v986, %v987
        %v989 = vrot.slane %v988, 1
        %v990 = vadd.f32 %v988, %v989
        %v991 = vadd.f32 %v945, %v990
        %v992 = vmul.f32 %v991, %v883
        %v993 = vadd.f32 %v992, 1e-05
        %v994 = vrsqrt.pop %v993
        %v995 = vmul.f32 %v994, %v993
        %v996 = vmul.f32 %v995, %v994
        %v997 = vmul.f32 0.5, %v996
        %v998 = vsub.f32 1.5, %v997
        %v999 = vmul.f32 %v994, %v998
        %vm1000 = vweird.f32 %v993
        %vm1001 = vweird.f32 %v994
        %vm1002 = vmor %vm1000, %vm1001
        %v1003 = vsel %vm1002, %v994, %v999
        %v1004 = vmul.f32 %v885, %v1003
        %v1005 = vmul.f32 %v886, %v1003
        %v1006 = vmul.f32 %v887, %v1003
        %v1007 = vmul.f32 %v888, %v1003
        %v1008 = vmul.f32 %v889, %v1003
        %v1009 = vmul.f32 %v890, %v1003
        %v1010 = vmul.f32 %v891, %v1003
        %v1011 = vmul.f32 %v892, %v1003
        %v1012 = vmul.f32 %v893, %v1003
        %v1013 = vmul.f32 %v894, %v1003
        %v1014 = vmul.f32 %v895, %v1003
        %v1015 = vmul.f32 %v896, %v1003
        %v1016 = vmul.f32 %v897, %v1003
        %v1017 = vmul.f32 %v898, %v1003
        %v1018 = vmul.f32 %v899, %v1003
        %v1019 = vmul.f32 %v900, %v1003
        %v1020 = vld [vmem:[%s9] sm:$0xff]
        %v1021 = vld [vmem:[%s9 + $0x8] sm:$0xff]
        %v1022 = vld [vmem:[%s9 + $0x10] sm:$0xff]
        %v1023 = vld [vmem:[%s9 + $0x18] sm:$0xff]
        %v1024 = vld [vmem:[%s9 + $0x20] sm:$0xff]
        %v1025 = vld [vmem:[%s9 + $0x28] sm:$0xff]
        %v1026 = vld [vmem:[%s9 + $0x30] sm:$0xff]
        %v1027 = vld [vmem:[%s9 + $0x38] sm:$0xff]
        %v1028 = vld [vmem:[%s10] sm:$0xff]
        %v1029 = vld [vmem:[%s10 + $0x8] sm:$0xff]
        %v1030 = vld [vmem:[%s10 + $0x10] sm:$0xff]
        %v1031 = vld [vmem:[%s10 + $0x18] sm:$0xff]
        %v1032 = vld [vmem:[%s10 + $0x20] sm:$0xff]
        %v1033 = vld [vmem:[%s10 + $0x28] sm:$0xff]
        %v1034 = vld [vmem:[%s10 + $0x30] sm:$0xff]
        %v1035 = vld [vmem:[%s10 + $0x38] sm:$0xff]
        %v1036 = vadd.s32 %v1020, 4294967295
        %v1037 = vadd.s32 %v1021, 4294967295
        %v1038 = vadd.s32 %v1022, 4294967295
        %v1039 = vadd.s32 %v1023, 4294967295
        %v1040 = vadd.s32 %v1024, 4294967295
        %v1041 = vadd.s32 %v1025, 4294967295
        %v1042 = vadd.s32 %v1026, 4294967295
        %v1043 = vadd.s32 %v1027, 4294967295
        %vm1044 = vcmp.ge.s32.totalorder %v1036, 0
        %vm1045 = vcmp.ge.s32.totalorder %v1037, 0
        %vm1046 = vcmp.ge.s32.totalorder %v1038, 0
        %vm1047 = vcmp.ge.s32.totalorder %v1039, 0
        %vm1048 = vcmp.ge.s32.totalorder %v1040, 0
        %vm1049 = vcmp.ge.s32.totalorder %v1041, 0
        %vm1050 = vcmp.ge.s32.totalorder %v1042, 0
        %vm1051 = vcmp.ge.s32.totalorder %v1043, 0
        %vm1052 = vcmp.lt.s32.totalorder %v1036, 8
        %vm1053 = vcmp.lt.s32.totalorder %v1037, 8
        %vm1054 = vcmp.lt.s32.totalorder %v1038, 8
        %vm1055 = vcmp.lt.s32.totalorder %v1039, 8
        %vm1056 = vcmp.lt.s32.totalorder %v1040, 8
        %vm1057 = vcmp.lt.s32.totalorder %v1041, 8
        %vm1058 = vcmp.lt.s32.totalorder %v1042, 8
        %vm1059 = vcmp.lt.s32.totalorder %v1043, 8
        %vm1060 = vmand %vm1044, %vm1052
        %vm1061 = vmand %vm1045, %vm1053
        %vm1062 = vmand %vm1046, %vm1054
        %vm1063 = vmand %vm1047, %vm1055
        %vm1064 = vmand %vm1048, %vm1056
        %vm1065 = vmand %vm1049, %vm1057
        %vm1066 = vmand %vm1050, %vm1058
        %vm1067 = vmand %vm1051, %vm1059
        %v1068 = vadd.s32 %v1028, 4294967295
        %v1069 = vadd.s32 %v1029, 4294967295
        %v1070 = vadd.s32 %v1030, 4294967295
        %v1071 = vadd.s32 %v1031, 4294967295
        %v1072 = vadd.s32 %v1032, 4294967295
        %v1073 = vadd.s32 %v1033, 4294967295
        %v1074 = vadd.s32 %v1034, 4294967295
        %v1075 = vadd.s32 %v1035, 4294967295
        %vm1076 = vcmp.ge.s32.totalorder %v1068, 0
        %vm1077 = vcmp.ge.s32.totalorder %v1069, 0
        %vm1078 = vcmp.ge.s32.totalorder %v1070, 0
        %vm1079 = vcmp.ge.s32.totalorder %v1071, 0
        %vm1080 = vcmp.ge.s32.totalorder %v1072, 0
        %vm1081 = vcmp.ge.s32.totalorder %v1073, 0
        %vm1082 = vcmp.ge.s32.totalorder %v1074, 0
        %vm1083 = vcmp.ge.s32.totalorder %v1075, 0
        %vm1084 = vmand %vm1060, %vm1076
        %vm1085 = vmand %vm1061, %vm1077
        %vm1086 = vmand %vm1062, %vm1078
        %vm1087 = vmand %vm1063, %vm1079
        %vm1088 = vmand %vm1064, %vm1080
        %vm1089 = vmand %vm1065, %vm1081
        %vm1090 = vmand %vm1066, %vm1082
        %vm1091 = vmand %vm1067, %vm1083
        %vm1092 = vcmp.lt.s32.totalorder %v1068, 8
        %vm1093 = vcmp.lt.s32.totalorder %v1069, 8
        %vm1094 = vcmp.lt.s32.totalorder %v1070, 8
        %vm1095 = vcmp.lt.s32.totalorder %v1071, 8
        %vm1096 = vcmp.lt.s32.totalorder %v1072, 8
        %vm1097 = vcmp.lt.s32.totalorder %v1073, 8
        %vm1098 = vcmp.lt.s32.totalorder %v1074, 8
        %vm1099 = vcmp.lt.s32.totalorder %v1075, 8
        %vm1100 = vmand %vm1084, %vm1092
        %vm1101 = vmand %vm1085, %vm1093
        %vm1102 = vmand %vm1086, %vm1094
        %vm1103 = vmand %vm1087, %vm1095
        %vm1104 = vmand %vm1088, %vm1096
        %vm1105 = vmand %vm1089, %vm1097
        %vm1106 = vmand %vm1090, %vm1098
        %vm1107 = vmand %vm1091, %vm1099
        %v1108 = vsel %vm1100, 1, 0
        %v1109 = vsel %vm1101, 1, 0
        %v1110 = vsel %vm1102, 1, 0
        %v1111 = vsel %vm1103, 1, 0
        %v1112 = vsel %vm1104, 1, 0
        %v1113 = vsel %vm1105, 1, 0
        %v1114 = vsel %vm1106, 1, 0
        %v1115 = vsel %vm1107, 1, 0
        %v1116 = vcvt.s32.f32 %v1108
        %v1117 = vcvt.s32.f32 %v1109
        %v1118 = vcvt.s32.f32 %v1110
        %v1119 = vcvt.s32.f32 %v1111
        %v1120 = vcvt.s32.f32 %v1112
        %v1121 = vcvt.s32.f32 %v1113
        %v1122 = vcvt.s32.f32 %v1114
        %v1123 = vcvt.s32.f32 %v1115
        %vm1126 = vcmask 1040384
        %v1127 = vrot.slane %v1010, 7
        %v1128 = vrot.slane %v1011, 7
        %v1129 = vsel %vm1126, %v1127, %v1128
        %v1137 = vrot.slane %v1004, 7
        %v1138 = vrot.slane %v1005, 7
        %v1139 = vsel %vm1126, %v1137, %v1138
        %v1140 = vrot.slane %v1006, 7
        %v1141 = vsel %vm1126, %v1138, %v1140
        %v1142 = vrot.slane %v1007, 7
        %v1143 = vsel %vm1126, %v1140, %v1142
        %v1144 = vrot.slane %v1008, 7
        %v1145 = vsel %vm1126, %v1142, %v1144
        %v1146 = vrot.slane %v1009, 7
        %v1147 = vsel %vm1126, %v1144, %v1146
        %v1148 = vsel %vm1126, %v1146, %v1127
        %v1150 = vsel %vm1126, %v1128, %v1137
        %v1151 = vld [vmem:[#allocation2] sm:$0xff]
        %v1152 = vld [vmem:[#allocation2 + $0x8] sm:$0xff]
        %v1153 = vld [vmem:[#allocation2 + $0x10] sm:$0xff]
        %v1154 = vld [vmem:[#allocation2 + $0x18] sm:$0xff]
        %v1157 = vrot.slane %v1018, 7
        %v1158 = vrot.slane %v1019, 7
        %v1159 = vsel %vm1126, %v1157, %v1158
        %v1167 = vrot.slane %v1012, 7
        %v1168 = vrot.slane %v1013, 7
        %v1169 = vsel %vm1126, %v1167, %v1168
        %v1170 = vrot.slane %v1014, 7
        %v1171 = vsel %vm1126, %v1168, %v1170
        %v1172 = vrot.slane %v1015, 7
        %v1173 = vsel %vm1126, %v1170, %v1172
        %v1174 = vrot.slane %v1016, 7
        %v1175 = vsel %vm1126, %v1172, %v1174
        %v1176 = vrot.slane %v1017, 7
        %v1177 = vsel %vm1126, %v1174, %v1176
        %v1178 = vsel %vm1126, %v1176, %v1157
        %v1180 = vsel %vm1126, %v1158, %v1167
        %v1181 = vld [vmem:[#allocation4] sm:$0xff]
        %v1182 = vld [vmem:[#allocation4 + $0x8] sm:$0xff]
        %v1183 = vld [vmem:[#allocation4 + $0x10] sm:$0xff]
        %v1184 = vld [vmem:[#allocation4 + $0x18] sm:$0xff]
        %v1185 = vsel %vm456, %v1159, 0
        %v1188 = vsel %vm456, %v1180, 0
        %v1190 = vsel %vm456, %v1169, 0
        %v1192 = vsel %vm456, %v1171, 0
        %v1194 = vsel %vm456, %v1173, 0
        %v1196 = vsel %vm456, %v1175, 0
        %v1198 = vsel %vm456, %v1177, 0
        %v1200 = vsel %vm456, %v1178, 0
        %1202 = vmatpush.msra.mxu0 0.0
        %1203 = vmatpush.msra.mxu0 0.0
        %1204 = vmatpush.msra.mxu0 0.0
        %1205 = vmatpush.msra.mxu0 0.0
        %1206 = vmatpush.msra.mxu0 0.0
        %1207 = vmatpush.msra.mxu0 0.0
        %1208 = vmatpush.msra.mxu0 0.0
        %1209 = vmatpush.msra.mxu0 0.0
        %1210 = vmatpush.msra.mxu0 0.0
        %1211 = vmatpush.msra.mxu0 0.0
        %1212 = vmatpush.msra.mxu0 0.0
        %1213 = vmatpush.msra.mxu0 0.0
        %1214 = vmatpush.msra.mxu0 %v1184
        %1215 = vmatpush.msra.mxu0 %v1183
        %1216 = vmatpush.msra.mxu0 %v1182
        %1217 = vmatpush.msra.mxu0 %v1181
        %1218 = vmatmul.f32.gmra.mxu0 %v1185
        %v1219 = vpop.f32.mrf.mxu0
        %v1220 = vadd.f32 0.0, %v1219
        %1221 = vmatmul.f32.gmra.mxu0 %v1188
        %v1222 = vpop.f32.mrf.mxu0
        %v1223 = vadd.f32 0.0, %v1222
        %1224 = vmatmul.f32.gmra.mxu0 %v1190
        %v1225 = vpop.f32.mrf.mxu0
        %v1226 = vadd.f32 0.0, %v1225
        %1227 = vmatmul.f32.gmra.mxu0 %v1192
        %v1228 = vpop.f32.mrf.mxu0
        %v1229 = vadd.f32 0.0, %v1228
        %1230 = vmatmul.f32.gmra.mxu0 %v1194
        %v1231 = vpop.f32.mrf.mxu0
        %v1232 = vadd.f32 0.0, %v1231
        %1233 = vmatmul.f32.gmra.mxu0 %v1196
        %v1234 = vpop.f32.mrf.mxu0
        %v1235 = vadd.f32 0.0, %v1234
        %1236 = vmatmul.f32.gmra.mxu0 %v1198
        %v1237 = vpop.f32.mrf.mxu0
        %v1238 = vadd.f32 0.0, %v1237
        %1239 = vmatmul.f32.gmra.mxu0 %v1200
        %v1240 = vpop.f32.mrf.mxu0
        %v1241 = vadd.f32 0.0, %v1240
        %1242 = vdwg.mxu0
        %v1243 = vsel %vm456, %v1129, 0
        %v1246 = vsel %vm456, %v1150, 0
        %v1248 = vsel %vm456, %v1139, 0
        %v1250 = vsel %vm456, %v1141, 0
        %v1252 = vsel %vm456, %v1143, 0
        %v1254 = vsel %vm456, %v1145, 0
        %v1256 = vsel %vm456, %v1147, 0
        %v1258 = vsel %vm456, %v1148, 0
        %1260 = vmatpush.msra.mxu0 0.0
        %1261 = vmatpush.msra.mxu0 0.0
        %1262 = vmatpush.msra.mxu0 0.0
        %1263 = vmatpush.msra.mxu0 0.0
        %1264 = vmatpush.msra.mxu0 0.0
        %1265 = vmatpush.msra.mxu0 0.0
        %1266 = vmatpush.msra.mxu0 0.0
        %1267 = vmatpush.msra.mxu0 0.0
        %1268 = vmatpush.msra.mxu0 0.0
        %1269 = vmatpush.msra.mxu0 0.0
        %1270 = vmatpush.msra.mxu0 0.0
        %1271 = vmatpush.msra.mxu0 0.0
        %1272 = vmatpush.msra.mxu0 %v1154
        %1273 = vmatpush.msra.mxu0 %v1153
        %1274 = vmatpush.msra.mxu0 %v1152
        %1275 = vmatpush.msra.mxu0 %v1151
        %1276 = vmatmul.f32.gmra.mxu0 %v1243
        %v1277 = vpop.f32.mrf.mxu0
        %v1278 = vadd.f32 %v1220, %v1277
        %1279 = vmatmul.f32.gmra.mxu0 %v1246
        %v1280 = vpop.f32.mrf.mxu0
        %v1281 = vadd.f32 %v1223, %v1280
        %1282 = vmatmul.f32.gmra.mxu0 %v1248
        %v1283 = vpop.f32.mrf.mxu0
        %v1284 = vadd.f32 %v1226, %v1283
        %1285 = vmatmul.f32.gmra.mxu0 %v1250
        %v1286 = vpop.f32.mrf.mxu0
        %v1287 = vadd.f32 %v1229, %v1286
        %1288 = vmatmul.f32.gmra.mxu0 %v1252
        %v1289 = vpop.f32.mrf.mxu0
        %v1290 = vadd.f32 %v1232, %v1289
        %1291 = vmatmul.f32.gmra.mxu0 %v1254
        %v1292 = vpop.f32.mrf.mxu0
        %v1293 = vadd.f32 %v1235, %v1292
        %1294 = vmatmul.f32.gmra.mxu0 %v1256
        %v1295 = vpop.f32.mrf.mxu0
        %v1296 = vadd.f32 %v1238, %v1295
        %1297 = vmatmul.f32.gmra.mxu0 %v1258
        %v1298 = vpop.f32.mrf.mxu0
        %v1299 = vadd.f32 %v1241, %v1298
        %1300 = vdwg.mxu0
        %1302 = vset.pattern.permute.xlu0 0
        %1303 = vperm.xlu0 %1302, %v1116
        %v1304 = vpop.permute.xlu0 %1303
        %1307 = vset.pattern.permute.xlu0 0
        %1308 = vperm.xlu0 %1307, %v1117
        %v1309 = vpop.permute.xlu0 %1308
        %1312 = vset.pattern.permute.xlu0 0
        %1313 = vperm.xlu0 %1312, %v1118
        %v1314 = vpop.permute.xlu0 %1313
        %1317 = vset.pattern.permute.xlu0 0
        %1318 = vperm.xlu0 %1317, %v1119
        %v1319 = vpop.permute.xlu0 %1318
        %1322 = vset.pattern.permute.xlu0 0
        %1323 = vperm.xlu0 %1322, %v1120
        %v1324 = vpop.permute.xlu0 %1323
        %1327 = vset.pattern.permute.xlu0 0
        %1328 = vperm.xlu0 %1327, %v1121
        %v1329 = vpop.permute.xlu0 %1328
        %1332 = vset.pattern.permute.xlu0 0
        %1333 = vperm.xlu0 %1332, %v1122
        %v1334 = vpop.permute.xlu0 %1333
        %1337 = vset.pattern.permute.xlu0 0
        %1338 = vperm.xlu0 %1337, %v1123
        %v1339 = vpop.permute.xlu0 %1338
        %v1341 = vmul.f32 %v1304, %v1278
        %v1342 = vmul.f32 %v1309, %v1281
        %v1343 = vmul.f32 %v1314, %v1284
        %v1344 = vmul.f32 %v1319, %v1287
        %v1345 = vmul.f32 %v1324, %v1290
        %v1346 = vmul.f32 %v1329, %v1293
        %v1347 = vmul.f32 %v1334, %v1296
        %v1348 = vmul.f32 %v1339, %v1299
        %v1349 = vadd.f32 %v1341, 0.0
        %v1350 = vadd.f32 %v1342, 0.0
        %v1351 = vadd.f32 %v1343, 0.0
        %v1352 = vadd.f32 %v1344, 0.0
        %v1353 = vadd.f32 %v1345, 0.0
        %v1354 = vadd.f32 %v1346, 0.0
        %v1355 = vadd.f32 %v1347, 0.0
        %v1356 = vadd.f32 %v1348, 0.0
        %vm1357 = vcmp.ge.s32.totalorder %v1028, 0
        %vm1358 = vcmp.ge.s32.totalorder %v1029, 0
        %vm1359 = vcmp.ge.s32.totalorder %v1030, 0
        %vm1360 = vcmp.ge.s32.totalorder %v1031, 0
        %vm1361 = vcmp.ge.s32.totalorder %v1032, 0
        %vm1362 = vcmp.ge.s32.totalorder %v1033, 0
        %vm1363 = vcmp.ge.s32.totalorder %v1034, 0
        %vm1364 = vcmp.ge.s32.totalorder %v1035, 0
        %vm1365 = vmand %vm1060, %vm1357
        %vm1366 = vmand %vm1061, %vm1358
        %vm1367 = vmand %vm1062, %vm1359
        %vm1368 = vmand %vm1063, %vm1360
        %vm1369 = vmand %vm1064, %vm1361
        %vm1370 = vmand %vm1065, %vm1362
        %vm1371 = vmand %vm1066, %vm1363
        %vm1372 = vmand %vm1067, %vm1364
        %vm1373 = vcmp.lt.s32.totalorder %v1028, 8
        %vm1374 = vcmp.lt.s32.totalorder %v1029, 8
        %vm1375 = vcmp.lt.s32.totalorder %v1030, 8
        %vm1376 = vcmp.lt.s32.totalorder %v1031, 8
        %vm1377 = vcmp.lt.s32.totalorder %v1032, 8
        %vm1378 = vcmp.lt.s32.totalorder %v1033, 8
        %vm1379 = vcmp.lt.s32.totalorder %v1034, 8
        %vm1380 = vcmp.lt.s32.totalorder %v1035, 8
        %vm1381 = vmand %vm1365, %vm1373
        %vm1382 = vmand %vm1366, %vm1374
        %vm1383 = vmand %vm1367, %vm1375
        %vm1384 = vmand %vm1368, %vm1376
        %vm1385 = vmand %vm1369, %vm1377
        %vm1386 = vmand %vm1370, %vm1378
        %vm1387 = vmand %vm1371, %vm1379
        %vm1388 = vmand %vm1372, %vm1380
        %v1389 = vsel %vm1381, 1, 0
        %v1390 = vsel %vm1382, 1, 0
        %v1391 = vsel %vm1383, 1, 0
        %v1392 = vsel %vm1384, 1, 0
        %v1393 = vsel %vm1385, 1, 0
        %v1394 = vsel %vm1386, 1, 0
        %v1395 = vsel %vm1387, 1, 0
        %v1396 = vsel %vm1388, 1, 0
        %v1397 = vcvt.s32.f32 %v1389
        %v1398 = vcvt.s32.f32 %v1390
        %v1399 = vcvt.s32.f32 %v1391
        %v1400 = vcvt.s32.f32 %v1392
        %v1401 = vcvt.s32.f32 %v1393
        %v1402 = vcvt.s32.f32 %v1394
        %v1403 = vcvt.s32.f32 %v1395
        %v1404 = vcvt.s32.f32 %v1396
        %s1405 = scalar_lea.vmem [#allocation2], 32
        %v1406 = vld [vmem:[%s1405] sm:$0xff]
        %v1407 = vld [vmem:[%s1405 + $0x8] sm:$0xff]
        %v1408 = vld [vmem:[%s1405 + $0x10] sm:$0xff]
        %v1409 = vld [vmem:[%s1405 + $0x18] sm:$0xff]
        %s1410 = scalar_lea.vmem [#allocation4], 32
        %v1411 = vld [vmem:[%s1410] sm:$0xff]
        %v1412 = vld [vmem:[%s1410 + $0x8] sm:$0xff]
        %v1413 = vld [vmem:[%s1410 + $0x10] sm:$0xff]
        %v1414 = vld [vmem:[%s1410 + $0x18] sm:$0xff]
        %v1415 = vsel %vm456, %v1019, 0
        %v1417 = vsel %vm456, %v1012, 0
        %v1419 = vsel %vm456, %v1013, 0
        %v1421 = vsel %vm456, %v1014, 0
        %v1423 = vsel %vm456, %v1015, 0
        %v1425 = vsel %vm456, %v1016, 0
        %v1427 = vsel %vm456, %v1017, 0
        %v1429 = vsel %vm456, %v1018, 0
        %1431 = vmatpush.msra.mxu0 0.0
        %1432 = vmatpush.msra.mxu0 0.0
        %1433 = vmatpush.msra.mxu0 0.0
        %1434 = vmatpush.msra.mxu0 0.0
        %1435 = vmatpush.msra.mxu0 0.0
        %1436 = vmatpush.msra.mxu0 0.0
        %1437 = vmatpush.msra.mxu0 0.0
        %1438 = vmatpush.msra.mxu0 0.0
        %1439 = vmatpush.msra.mxu0 0.0
        %1440 = vmatpush.msra.mxu0 0.0
        %1441 = vmatpush.msra.mxu0 0.0
        %1442 = vmatpush.msra.mxu0 0.0
        %1443 = vmatpush.msra.mxu0 %v1414
        %1444 = vmatpush.msra.mxu0 %v1413
        %1445 = vmatpush.msra.mxu0 %v1412
        %1446 = vmatpush.msra.mxu0 %v1411
        %1447 = vmatmul.f32.gmra.mxu0 %v1415
        %v1448 = vpop.f32.mrf.mxu0
        %v1449 = vadd.f32 0.0, %v1448
        %1450 = vmatmul.f32.gmra.mxu0 %v1417
        %v1451 = vpop.f32.mrf.mxu0
        %v1452 = vadd.f32 0.0, %v1451
        %1453 = vmatmul.f32.gmra.mxu0 %v1419
        %v1454 = vpop.f32.mrf.mxu0
        %v1455 = vadd.f32 0.0, %v1454
        %1456 = vmatmul.f32.gmra.mxu0 %v1421
        %v1457 = vpop.f32.mrf.mxu0
        %v1458 = vadd.f32 0.0, %v1457
        %1459 = vmatmul.f32.gmra.mxu0 %v1423
        %v1460 = vpop.f32.mrf.mxu0
        %v1461 = vadd.f32 0.0, %v1460
        %1462 = vmatmul.f32.gmra.mxu0 %v1425
        %v1463 = vpop.f32.mrf.mxu0
        %v1464 = vadd.f32 0.0, %v1463
        %1465 = vmatmul.f32.gmra.mxu0 %v1427
        %v1466 = vpop.f32.mrf.mxu0
        %v1467 = vadd.f32 0.0, %v1466
        %1468 = vmatmul.f32.gmra.mxu0 %v1429
        %v1469 = vpop.f32.mrf.mxu0
        %v1470 = vadd.f32 0.0, %v1469
        %1471 = vdwg.mxu0
        %v1472 = vsel %vm456, %v1011, 0
        %v1474 = vsel %vm456, %v1004, 0
        %v1476 = vsel %vm456, %v1005, 0
        %v1478 = vsel %vm456, %v1006, 0
        %v1480 = vsel %vm456, %v1007, 0
        %v1482 = vsel %vm456, %v1008, 0
        %v1484 = vsel %vm456, %v1009, 0
        %v1486 = vsel %vm456, %v1010, 0
        %1488 = vmatpush.msra.mxu0 0.0
        %1489 = vmatpush.msra.mxu0 0.0
        %1490 = vmatpush.msra.mxu0 0.0
        %1491 = vmatpush.msra.mxu0 0.0
        %1492 = vmatpush.msra.mxu0 0.0
        %1493 = vmatpush.msra.mxu0 0.0
        %1494 = vmatpush.msra.mxu0 0.0
        %1495 = vmatpush.msra.mxu0 0.0
        %1496 = vmatpush.msra.mxu0 0.0
        %1497 = vmatpush.msra.mxu0 0.0
        %1498 = vmatpush.msra.mxu0 0.0
        %1499 = vmatpush.msra.mxu0 0.0
        %1500 = vmatpush.msra.mxu0 %v1409
        %1501 = vmatpush.msra.mxu0 %v1408
        %1502 = vmatpush.msra.mxu0 %v1407
        %1503 = vmatpush.msra.mxu0 %v1406
        %1504 = vmatmul.f32.gmra.mxu0 %v1472
        %v1505 = vpop.f32.mrf.mxu0
        %v1506 = vadd.f32 %v1449, %v1505
        %1507 = vmatmul.f32.gmra.mxu0 %v1474
        %v1508 = vpop.f32.mrf.mxu0
        %v1509 = vadd.f32 %v1452, %v1508
        %1510 = vmatmul.f32.gmra.mxu0 %v1476
        %v1511 = vpop.f32.mrf.mxu0
        %v1512 = vadd.f32 %v1455, %v1511
        %1513 = vmatmul.f32.gmra.mxu0 %v1478
        %v1514 = vpop.f32.mrf.mxu0
        %v1515 = vadd.f32 %v1458, %v1514
        %1516 = vmatmul.f32.gmra.mxu0 %v1480
        %v1517 = vpop.f32.mrf.mxu0
        %v1518 = vadd.f32 %v1461, %v1517
        %1519 = vmatmul.f32.gmra.mxu0 %v1482
        %v1520 = vpop.f32.mrf.mxu0
        %v1521 = vadd.f32 %v1464, %v1520
        %1522 = vmatmul.f32.gmra.mxu0 %v1484
        %v1523 = vpop.f32.mrf.mxu0
        %v1524 = vadd.f32 %v1467, %v1523
        %1525 = vmatmul.f32.gmra.mxu0 %v1486
        %v1526 = vpop.f32.mrf.mxu0
        %v1527 = vadd.f32 %v1470, %v1526
        %1528 = vdwg.mxu0
        %1530 = vset.pattern.permute.xlu0 0
        %1531 = vperm.xlu0 %1530, %v1397
        %v1532 = vpop.permute.xlu0 %1531
        %1535 = vset.pattern.permute.xlu0 0
        %1536 = vperm.xlu0 %1535, %v1398
        %v1537 = vpop.permute.xlu0 %1536
        %1540 = vset.pattern.permute.xlu0 0
        %1541 = vperm.xlu0 %1540, %v1399
        %v1542 = vpop.permute.xlu0 %1541
        %1545 = vset.pattern.permute.xlu0 0
        %1546 = vperm.xlu0 %1545, %v1400
        %v1547 = vpop.permute.xlu0 %1546
        %1550 = vset.pattern.permute.xlu0 0
        %1551 = vperm.xlu0 %1550, %v1401
        %v1552 = vpop.permute.xlu0 %1551
        %1555 = vset.pattern.permute.xlu0 0
        %1556 = vperm.xlu0 %1555, %v1402
        %v1557 = vpop.permute.xlu0 %1556
        %1560 = vset.pattern.permute.xlu0 0
        %1561 = vperm.xlu0 %1560, %v1403
        %v1562 = vpop.permute.xlu0 %1561
        %1565 = vset.pattern.permute.xlu0 0
        %1566 = vperm.xlu0 %1565, %v1404
        %v1567 = vpop.permute.xlu0 %1566
        %v1569 = vmul.f32 %v1532, %v1506
        %v1570 = vmul.f32 %v1537, %v1509
        %v1571 = vmul.f32 %v1542, %v1512
        %v1572 = vmul.f32 %v1547, %v1515
        %v1573 = vmul.f32 %v1552, %v1518
        %v1574 = vmul.f32 %v1557, %v1521
        %v1575 = vmul.f32 %v1562, %v1524
        %v1576 = vmul.f32 %v1567, %v1527
        %v1577 = vadd.f32 %v1349, %v1569
        %v1578 = vadd.f32 %v1350, %v1570
        %v1579 = vadd.f32 %v1351, %v1571
        %v1580 = vadd.f32 %v1352, %v1572
        %v1581 = vadd.f32 %v1353, %v1573
        %v1582 = vadd.f32 %v1354, %v1574
        %v1583 = vadd.f32 %v1355, %v1575
        %v1584 = vadd.f32 %v1356, %v1576
        %v1585 = vadd.s32 %v1028, 1
        %v1586 = vadd.s32 %v1029, 1
        %v1587 = vadd.s32 %v1030, 1
        %v1588 = vadd.s32 %v1031, 1
        %v1589 = vadd.s32 %v1032, 1
        %v1590 = vadd.s32 %v1033, 1
        %v1591 = vadd.s32 %v1034, 1
        %v1592 = vadd.s32 %v1035, 1
        %vm1593 = vcmp.ge.s32.totalorder %v1585, 0
        %vm1594 = vcmp.ge.s32.totalorder %v1586, 0
        %vm1595 = vcmp.ge.s32.totalorder %v1587, 0
        %vm1596 = vcmp.ge.s32.totalorder %v1588, 0
        %vm1597 = vcmp.ge.s32.totalorder %v1589, 0
        %vm1598 = vcmp.ge.s32.totalorder %v1590, 0
        %vm1599 = vcmp.ge.s32.totalorder %v1591, 0
        %vm1600 = vcmp.ge.s32.totalorder %v1592, 0
        %vm1601 = vmand %vm1060, %vm1593
        %vm1602 = vmand %vm1061, %vm1594
        %vm1603 = vmand %vm1062, %vm1595
        %vm1604 = vmand %vm1063, %vm1596
        %vm1605 = vmand %vm1064, %vm1597
        %vm1606 = vmand %vm1065, %vm1598
        %vm1607 = vmand %vm1066, %vm1599
        %vm1608 = vmand %vm1067, %vm1600
        %vm1609 = vcmp.lt.s32.totalorder %v1585, 8
        %vm1610 = vcmp.lt.s32.totalorder %v1586, 8
        %vm1611 = vcmp.lt.s32.totalorder %v1587, 8
        %vm1612 = vcmp.lt.s32.totalorder %v1588, 8
        %vm1613 = vcmp.lt.s32.totalorder %v1589, 8
        %vm1614 = vcmp.lt.s32.totalorder %v1590, 8
        %vm1615 = vcmp.lt.s32.totalorder %v1591, 8
        %vm1616 = vcmp.lt.s32.totalorder %v1592, 8
        %vm1617 = vmand %vm1601, %vm1609
        %vm1618 = vmand %vm1602, %vm1610
        %vm1619 = vmand %vm1603, %vm1611
        %vm1620 = vmand %vm1604, %vm1612
        %vm1621 = vmand %vm1605, %vm1613
        %vm1622 = vmand %vm1606, %vm1614
        %vm1623 = vmand %vm1607, %vm1615
        %vm1624 = vmand %vm1608, %vm1616
        %v1625 = vsel %vm1617, 1, 0
        %v1626 = vsel %vm1618, 1, 0
        %v1627 = vsel %vm1619, 1, 0
        %v1628 = vsel %vm1620, 1, 0
        %v1629 = vsel %vm1621, 1, 0
        %v1630 = vsel %vm1622, 1, 0
        %v1631 = vsel %vm1623, 1, 0
        %v1632 = vsel %vm1624, 1, 0
        %v1633 = vcvt.s32.f32 %v1625
        %v1634 = vcvt.s32.f32 %v1626
        %v1635 = vcvt.s32.f32 %v1627
        %v1636 = vcvt.s32.f32 %v1628
        %v1637 = vcvt.s32.f32 %v1629
        %v1638 = vcvt.s32.f32 %v1630
        %v1639 = vcvt.s32.f32 %v1631
        %v1640 = vcvt.s32.f32 %v1632
        %v1641 = vrot.slane %v1011, 1
        %vm1643 = vcmask 1046528
        %v1644 = vrot.slane %v1004, 1
        %v1645 = vrot.slane %v1005, 1
        %v1646 = vsel %vm1643, %v1644, %v1645
        %v1647 = vrot.slane %v1006, 1
        %v1648 = vsel %vm1643, %v1645, %v1647
        %v1649 = vrot.slane %v1007, 1
        %v1650 = vsel %vm1643, %v1647, %v1649
        %v1651 = vrot.slane %v1008, 1
        %v1652 = vsel %vm1643, %v1649, %v1651
        %v1653 = vrot.slane %v1009, 1
        %v1654 = vsel %vm1643, %v1651, %v1653
        %v1655 = vrot.slane %v1010, 1
        %v1656 = vsel %vm1643, %v1653, %v1655
        %v1657 = vsel %vm1643, %v1655, %v1641
        %v1659 = vsel %vm1643, %v1641, %v1644
        %s1660 = scalar_lea.vmem [#allocation2], 64
        %v1661 = vld [vmem:[%s1660] sm:$0xff]
        %v1662 = vld [vmem:[%s1660 + $0x8] sm:$0xff]
        %v1663 = vld [vmem:[%s1660 + $0x10] sm:$0xff]
        %v1664 = vld [vmem:[%s1660 + $0x18] sm:$0xff]
        %v1665 = vrot.slane %v1019, 1
        %v1667 = vrot.slane %v1012, 1
        %v1668 = vrot.slane %v1013, 1
        %v1669 = vsel %vm1643, %v1667, %v1668
        %v1670 = vrot.slane %v1014, 1
        %v1671 = vsel %vm1643, %v1668, %v1670
        %v1672 = vrot.slane %v1015, 1
        %v1673 = vsel %vm1643, %v1670, %v1672
        %v1674 = vrot.slane %v1016, 1
        %v1675 = vsel %vm1643, %v1672, %v1674
        %v1676 = vrot.slane %v1017, 1
        %v1677 = vsel %vm1643, %v1674, %v1676
        %v1678 = vrot.slane %v1018, 1
        %v1679 = vsel %vm1643, %v1676, %v1678
        %v1680 = vsel %vm1643, %v1678, %v1665
        %v1682 = vsel %vm1643, %v1665, %v1667
        %s1683 = scalar_lea.vmem [#allocation4], 64
        %v1684 = vld [vmem:[%s1683] sm:$0xff]
        %v1685 = vld [vmem:[%s1683 + $0x8] sm:$0xff]
        %v1686 = vld [vmem:[%s1683 + $0x10] sm:$0xff]
        %v1687 = vld [vmem:[%s1683 + $0x18] sm:$0xff]
        %v1689 = vsel %vm456, %v1682, 0
        %v1691 = vsel %vm456, %v1669, 0
        %v1693 = vsel %vm456, %v1671, 0
        %v1695 = vsel %vm456, %v1673, 0
        %v1697 = vsel %vm456, %v1675, 0
        %v1699 = vsel %vm456, %v1677, 0
        %v1701 = vsel %vm456, %v1679, 0
        %v1703 = vsel %vm456, %v1680, 0
        %1705 = vmatpush.msra.mxu0 0.0
        %1706 = vmatpush.msra.mxu0 0.0
        %1707 = vmatpush.msra.mxu0 0.0
        %1708 = vmatpush.msra.mxu0 0.0
        %1709 = vmatpush.msra.mxu0 0.0
        %1710 = vmatpush.msra.mxu0 0.0
        %1711 = vmatpush.msra.mxu0 0.0
        %1712 = vmatpush.msra.mxu0 0.0
        %1713 = vmatpush.msra.mxu0 0.0
        %1714 = vmatpush.msra.mxu0 0.0
        %1715 = vmatpush.msra.mxu0 0.0
        %1716 = vmatpush.msra.mxu0 0.0
        %1717 = vmatpush.msra.mxu0 %v1687
        %1718 = vmatpush.msra.mxu0 %v1686
        %1719 = vmatpush.msra.mxu0 %v1685
        %1720 = vmatpush.msra.mxu0 %v1684
        %1721 = vmatmul.f32.gmra.mxu0 %v1689
        %v1722 = vpop.f32.mrf.mxu0
        %v1723 = vadd.f32 0.0, %v1722
        %1724 = vmatmul.f32.gmra.mxu0 %v1691
        %v1725 = vpop.f32.mrf.mxu0
        %v1726 = vadd.f32 0.0, %v1725
        %1727 = vmatmul.f32.gmra.mxu0 %v1693
        %v1728 = vpop.f32.mrf.mxu0
        %v1729 = vadd.f32 0.0, %v1728
        %1730 = vmatmul.f32.gmra.mxu0 %v1695
        %v1731 = vpop.f32.mrf.mxu0
        %v1732 = vadd.f32 0.0, %v1731
        %1733 = vmatmul.f32.gmra.mxu0 %v1697
        %v1734 = vpop.f32.mrf.mxu0
        %v1735 = vadd.f32 0.0, %v1734
        %1736 = vmatmul.f32.gmra.mxu0 %v1699
        %v1737 = vpop.f32.mrf.mxu0
        %v1738 = vadd.f32 0.0, %v1737
        %1739 = vmatmul.f32.gmra.mxu0 %v1701
        %v1740 = vpop.f32.mrf.mxu0
        %v1741 = vadd.f32 0.0, %v1740
        %1742 = vmatmul.f32.gmra.mxu0 %v1703
        %v1743 = vpop.f32.mrf.mxu0
        %v1744 = vadd.f32 0.0, %v1743
        %1745 = vdwg.mxu0
        %v1747 = vsel %vm456, %v1659, 0
        %v1749 = vsel %vm456, %v1646, 0
        %v1751 = vsel %vm456, %v1648, 0
        %v1753 = vsel %vm456, %v1650, 0
        %v1755 = vsel %vm456, %v1652, 0
        %v1757 = vsel %vm456, %v1654, 0
        %v1759 = vsel %vm456, %v1656, 0
        %v1761 = vsel %vm456, %v1657, 0
        %1763 = vmatpush.msra.mxu0 0.0
        %1764 = vmatpush.msra.mxu0 0.0
        %1765 = vmatpush.msra.mxu0 0.0
        %1766 = vmatpush.msra.mxu0 0.0
        %1767 = vmatpush.msra.mxu0 0.0
        %1768 = vmatpush.msra.mxu0 0.0
        %1769 = vmatpush.msra.mxu0 0.0
        %1770 = vmatpush.msra.mxu0 0.0
        %1771 = vmatpush.msra.mxu0 0.0
        %1772 = vmatpush.msra.mxu0 0.0
        %1773 = vmatpush.msra.mxu0 0.0
        %1774 = vmatpush.msra.mxu0 0.0
        %1775 = vmatpush.msra.mxu0 %v1664
        %1776 = vmatpush.msra.mxu0 %v1663
        %1777 = vmatpush.msra.mxu0 %v1662
        %1778 = vmatpush.msra.mxu0 %v1661
        %1779 = vmatmul.f32.gmra.mxu0 %v1747
        %v1780 = vpop.f32.mrf.mxu0
        %v1781 = vadd.f32 %v1723, %v1780
        %1782 = vmatmul.f32.gmra.mxu0 %v1749
        %v1783 = vpop.f32.mrf.mxu0
        %v1784 = vadd.f32 %v1726, %v1783
        %1785 = vmatmul.f32.gmra.mxu0 %v1751
        %v1786 = vpop.f32.mrf.mxu0
        %v1787 = vadd.f32 %v1729, %v1786
        %1788 = vmatmul.f32.gmra.mxu0 %v1753
        %v1789 = vpop.f32.mrf.mxu0
        %v1790 = vadd.f32 %v1732, %v1789
        %1791 = vmatmul.f32.gmra.mxu0 %v1755
        %v1792 = vpop.f32.mrf.mxu0
        %v1793 = vadd.f32 %v1735, %v1792
        %1794 = vmatmul.f32.gmra.mxu0 %v1757
        %v1795 = vpop.f32.mrf.mxu0
        %v1796 = vadd.f32 %v1738, %v1795
        %1797 = vmatmul.f32.gmra.mxu0 %v1759
        %v1798 = vpop.f32.mrf.mxu0
        %v1799 = vadd.f32 %v1741, %v1798
        %1800 = vmatmul.f32.gmra.mxu0 %v1761
        %v1801 = vpop.f32.mrf.mxu0
        %v1802 = vadd.f32 %v1744, %v1801
        %1803 = vdwg.mxu0
        %1805 = vset.pattern.permute.xlu0 0
        %1806 = vperm.xlu0 %1805, %v1633
        %v1807 = vpop.permute.xlu0 %1806
        %1810 = vset.pattern.permute.xlu0 0
        %1811 = vperm.xlu0 %1810, %v1634
        %v1812 = vpop.permute.xlu0 %1811
        %1815 = vset.pattern.permute.xlu0 0
        %1816 = vperm.xlu0 %1815, %v1635
        %v1817 = vpop.permute.xlu0 %1816
        %1820 = vset.pattern.permute.xlu0 0
        %1821 = vperm.xlu0 %1820, %v1636
        %v1822 = vpop.permute.xlu0 %1821
        %1825 = vset.pattern.permute.xlu0 0
        %1826 = vperm.xlu0 %1825, %v1637
        %v1827 = vpop.permute.xlu0 %1826
        %1830 = vset.pattern.permute.xlu0 0
        %1831 = vperm.xlu0 %1830, %v1638
        %v1832 = vpop.permute.xlu0 %1831
        %1835 = vset.pattern.permute.xlu0 0
        %1836 = vperm.xlu0 %1835, %v1639
        %v1837 = vpop.permute.xlu0 %1836
        %1840 = vset.pattern.permute.xlu0 0
        %1841 = vperm.xlu0 %1840, %v1640
        %v1842 = vpop.permute.xlu0 %1841
        %v1844 = vmul.f32 %v1807, %v1781
        %v1845 = vmul.f32 %v1812, %v1784
        %v1846 = vmul.f32 %v1817, %v1787
        %v1847 = vmul.f32 %v1822, %v1790
        %v1848 = vmul.f32 %v1827, %v1793
        %v1849 = vmul.f32 %v1832, %v1796
        %v1850 = vmul.f32 %v1837, %v1799
        %v1851 = vmul.f32 %v1842, %v1802
        %v1852 = vadd.f32 %v1577, %v1844
        %v1853 = vadd.f32 %v1578, %v1845
        %v1854 = vadd.f32 %v1579, %v1846
        %v1855 = vadd.f32 %v1580, %v1847
        %v1856 = vadd.f32 %v1581, %v1848
        %v1857 = vadd.f32 %v1582, %v1849
        %v1858 = vadd.f32 %v1583, %v1850
        %v1859 = vadd.f32 %v1584, %v1851
        %vm1860 = vcmp.ge.s32.totalorder %v1020, 0
        %vm1861 = vcmp.ge.s32.totalorder %v1021, 0
        %vm1862 = vcmp.ge.s32.totalorder %v1022, 0
        %vm1863 = vcmp.ge.s32.totalorder %v1023, 0
        %vm1864 = vcmp.ge.s32.totalorder %v1024, 0
        %vm1865 = vcmp.ge.s32.totalorder %v1025, 0
        %vm1866 = vcmp.ge.s32.totalorder %v1026, 0
        %vm1867 = vcmp.ge.s32.totalorder %v1027, 0
        %vm1868 = vcmp.lt.s32.totalorder %v1020, 8
        %vm1869 = vcmp.lt.s32.totalorder %v1021, 8
        %vm1870 = vcmp.lt.s32.totalorder %v1022, 8
        %vm1871 = vcmp.lt.s32.totalorder %v1023, 8
        %vm1872 = vcmp.lt.s32.totalorder %v1024, 8
        %vm1873 = vcmp.lt.s32.totalorder %v1025, 8
        %vm1874 = vcmp.lt.s32.totalorder %v1026, 8
        %vm1875 = vcmp.lt.s32.totalorder %v1027, 8
        %vm1876 = vmand %vm1860, %vm1868
        %vm1877 = vmand %vm1861, %vm1869
        %vm1878 = vmand %vm1862, %vm1870
        %vm1879 = vmand %vm1863, %vm1871
        %vm1880 = vmand %vm1864, %vm1872
        %vm1881 = vmand %vm1865, %vm1873
        %vm1882 = vmand %vm1866, %vm1874
        %vm1883 = vmand %vm1867, %vm1875
        %vm1884 = vmand %vm1876, %vm1076
        %vm1885 = vmand %vm1877, %vm1077
        %vm1886 = vmand %vm1878, %vm1078
        %vm1887 = vmand %vm1879, %vm1079
        %vm1888 = vmand %vm1880, %vm1080
        %vm1889 = vmand %vm1881, %vm1081
        %vm1890 = vmand %vm1882, %vm1082
        %vm1891 = vmand %vm1883, %vm1083
        %vm1892 = vmand %vm1884, %vm1092
        %vm1893 = vmand %vm1885, %vm1093
        %vm1894 = vmand %vm1886, %vm1094
        %vm1895 = vmand %vm1887, %vm1095
        %vm1896 = vmand %vm1888, %vm1096
        %vm1897 = vmand %vm1889, %vm1097
        %vm1898 = vmand %vm1890, %vm1098
        %vm1899 = vmand %vm1891, %vm1099
        %v1900 = vsel %vm1892, 1, 0
        %v1901 = vsel %vm1893, 1, 0
        %v1902 = vsel %vm1894, 1, 0
        %v1903 = vsel %vm1895, 1, 0
        %v1904 = vsel %vm1896, 1, 0
        %v1905 = vsel %vm1897, 1, 0
        %v1906 = vsel %vm1898, 1, 0
        %v1907 = vsel %vm1899, 1, 0
        %v1908 = vcvt.s32.f32 %v1900
        %v1909 = vcvt.s32.f32 %v1901
        %v1910 = vcvt.s32.f32 %v1902
        %v1911 = vcvt.s32.f32 %v1903
        %v1912 = vcvt.s32.f32 %v1904
        %v1913 = vcvt.s32.f32 %v1905
        %v1914 = vcvt.s32.f32 %v1906
        %v1915 = vcvt.s32.f32 %v1907
        %s1916 = scalar_lea.vmem [#allocation2], 96
        %v1917 = vld [vmem:[%s1916] sm:$0xff]
        %v1918 = vld [vmem:[%s1916 + $0x8] sm:$0xff]
        %v1919 = vld [vmem:[%s1916 + $0x10] sm:$0xff]
        %v1920 = vld [vmem:[%s1916 + $0x18] sm:$0xff]
        %s1921 = scalar_lea.vmem [#allocation4], 96
        %v1922 = vld [vmem:[%s1921] sm:$0xff]
        %v1923 = vld [vmem:[%s1921 + $0x8] sm:$0xff]
        %v1924 = vld [vmem:[%s1921 + $0x10] sm:$0xff]
        %v1925 = vld [vmem:[%s1921 + $0x18] sm:$0xff]
        %1926 = vmatpush.msra.mxu0 0.0
        %1927 = vmatpush.msra.mxu0 0.0
        %1928 = vmatpush.msra.mxu0 0.0
        %1929 = vmatpush.msra.mxu0 0.0
        %1930 = vmatpush.msra.mxu0 0.0
        %1931 = vmatpush.msra.mxu0 0.0
        %1932 = vmatpush.msra.mxu0 0.0
        %1933 = vmatpush.msra.mxu0 0.0
        %1934 = vmatpush.msra.mxu0 0.0
        %1935 = vmatpush.msra.mxu0 0.0
        %1936 = vmatpush.msra.mxu0 0.0
        %1937 = vmatpush.msra.mxu0 0.0
        %1938 = vmatpush.msra.mxu0 %v1925
        %1939 = vmatpush.msra.mxu0 %v1924
        %1940 = vmatpush.msra.mxu0 %v1923
        %1941 = vmatpush.msra.mxu0 %v1922
        %1942 = vmatmul.f32.gmra.mxu0 %v1188
        %v1943 = vpop.f32.mrf.mxu0
        %v1944 = vadd.f32 0.0, %v1943
        %1945 = vmatmul.f32.gmra.mxu0 %v1190
        %v1946 = vpop.f32.mrf.mxu0
        %v1947 = vadd.f32 0.0, %v1946
        %1948 = vmatmul.f32.gmra.mxu0 %v1192
        %v1949 = vpop.f32.mrf.mxu0
        %v1950 = vadd.f32 0.0, %v1949
        %1951 = vmatmul.f32.gmra.mxu0 %v1194
        %v1952 = vpop.f32.mrf.mxu0
        %v1953 = vadd.f32 0.0, %v1952
        %1954 = vmatmul.f32.gmra.mxu0 %v1196
        %v1955 = vpop.f32.mrf.mxu0
        %v1956 = vadd.f32 0.0, %v1955
        %1957 = vmatmul.f32.gmra.mxu0 %v1198
        %v1958 = vpop.f32.mrf.mxu0
        %v1959 = vadd.f32 0.0, %v1958
        %1960 = vmatmul.f32.gmra.mxu0 %v1200
        %v1961 = vpop.f32.mrf.mxu0
        %v1962 = vadd.f32 0.0, %v1961
        %1963 = vmatmul.f32.gmra.mxu0 %v1185
        %v1964 = vpop.f32.mrf.mxu0
        %v1965 = vadd.f32 0.0, %v1964
        %1966 = vdwg.mxu0
        %1967 = vmatpush.msra.mxu0 0.0
        %1968 = vmatpush.msra.mxu0 0.0
        %1969 = vmatpush.msra.mxu0 0.0
        %1970 = vmatpush.msra.mxu0 0.0
        %1971 = vmatpush.msra.mxu0 0.0
        %1972 = vmatpush.msra.mxu0 0.0
        %1973 = vmatpush.msra.mxu0 0.0
        %1974 = vmatpush.msra.mxu0 0.0
        %1975 = vmatpush.msra.mxu0 0.0
        %1976 = vmatpush.msra.mxu0 0.0
        %1977 = vmatpush.msra.mxu0 0.0
        %1978 = vmatpush.msra.mxu0 0.0
        %1979 = vmatpush.msra.mxu0 %v1920
        %1980 = vmatpush.msra.mxu0 %v1919
        %1981 = vmatpush.msra.mxu0 %v1918
        %1982 = vmatpush.msra.mxu0 %v1917
        %1983 = vmatmul.f32.gmra.mxu0 %v1246
        %v1984 = vpop.f32.mrf.mxu0
        %v1985 = vadd.f32 %v1944, %v1984
        %1986 = vmatmul.f32.gmra.mxu0 %v1248
        %v1987 = vpop.f32.mrf.mxu0
        %v1988 = vadd.f32 %v1947, %v1987
        %1989 = vmatmul.f32.gmra.mxu0 %v1250
        %v1990 = vpop.f32.mrf.mxu0
        %v1991 = vadd.f32 %v1950, %v1990
        %1992 = vmatmul.f32.gmra.mxu0 %v1252
        %v1993 = vpop.f32.mrf.mxu0
        %v1994 = vadd.f32 %v1953, %v1993
        %1995 = vmatmul.f32.gmra.mxu0 %v1254
        %v1996 = vpop.f32.mrf.mxu0
        %v1997 = vadd.f32 %v1956, %v1996
        %1998 = vmatmul.f32.gmra.mxu0 %v1256
        %v1999 = vpop.f32.mrf.mxu0
        %v2000 = vadd.f32 %v1959, %v1999
        %2001 = vmatmul.f32.gmra.mxu0 %v1258
        %v2002 = vpop.f32.mrf.mxu0
        %v2003 = vadd.f32 %v1962, %v2002
        %2004 = vmatmul.f32.gmra.mxu0 %v1243
        %v2005 = vpop.f32.mrf.mxu0
        %v2006 = vadd.f32 %v1965, %v2005
        %2007 = vdwg.mxu0
        %2009 = vset.pattern.permute.xlu0 0
        %2010 = vperm.xlu0 %2009, %v1908
        %v2011 = vpop.permute.xlu0 %2010
        %2014 = vset.pattern.permute.xlu0 0
        %2015 = vperm.xlu0 %2014, %v1909
        %v2016 = vpop.permute.xlu0 %2015
        %2019 = vset.pattern.permute.xlu0 0
        %2020 = vperm.xlu0 %2019, %v1910
        %v2021 = vpop.permute.xlu0 %2020
        %2024 = vset.pattern.permute.xlu0 0
        %2025 = vperm.xlu0 %2024, %v1911
        %v2026 = vpop.permute.xlu0 %2025
        %2029 = vset.pattern.permute.xlu0 0
        %2030 = vperm.xlu0 %2029, %v1912
        %v2031 = vpop.permute.xlu0 %2030
        %2034 = vset.pattern.permute.xlu0 0
        %2035 = vperm.xlu0 %2034, %v1913
        %v2036 = vpop.permute.xlu0 %2035
        %2039 = vset.pattern.permute.xlu0 0
        %2040 = vperm.xlu0 %2039, %v1914
        %v2041 = vpop.permute.xlu0 %2040
        %2044 = vset.pattern.permute.xlu0 0
        %2045 = vperm.xlu0 %2044, %v1915
        %v2046 = vpop.permute.xlu0 %2045
        %v2048 = vmul.f32 %v2011, %v1985
        %v2049 = vmul.f32 %v2016, %v1988
        %v2050 = vmul.f32 %v2021, %v1991
        %v2051 = vmul.f32 %v2026, %v1994
        %v2052 = vmul.f32 %v2031, %v1997
        %v2053 = vmul.f32 %v2036, %v2000
        %v2054 = vmul.f32 %v2041, %v2003
        %v2055 = vmul.f32 %v2046, %v2006
        %v2056 = vadd.f32 %v1852, %v2048
        %v2057 = vadd.f32 %v1853, %v2049
        %v2058 = vadd.f32 %v1854, %v2050
        %v2059 = vadd.f32 %v1855, %v2051
        %v2060 = vadd.f32 %v1856, %v2052
        %v2061 = vadd.f32 %v1857, %v2053
        %v2062 = vadd.f32 %v1858, %v2054
        %v2063 = vadd.f32 %v1859, %v2055
        %vm2064 = vmand %vm1876, %vm1357
        %vm2065 = vmand %vm1877, %vm1358
        %vm2066 = vmand %vm1878, %vm1359
        %vm2067 = vmand %vm1879, %vm1360
        %vm2068 = vmand %vm1880, %vm1361
        %vm2069 = vmand %vm1881, %vm1362
        %vm2070 = vmand %vm1882, %vm1363
        %vm2071 = vmand %vm1883, %vm1364
        %vm2072 = vmand %vm2064, %vm1373
        %vm2073 = vmand %vm2065, %vm1374
        %vm2074 = vmand %vm2066, %vm1375
        %vm2075 = vmand %vm2067, %vm1376
        %vm2076 = vmand %vm2068, %vm1377
        %vm2077 = vmand %vm2069, %vm1378
        %vm2078 = vmand %vm2070, %vm1379
        %vm2079 = vmand %vm2071, %vm1380
        %v2080 = vsel %vm2072, 1, 0
        %v2081 = vsel %vm2073, 1, 0
        %v2082 = vsel %vm2074, 1, 0
        %v2083 = vsel %vm2075, 1, 0
        %v2084 = vsel %vm2076, 1, 0
        %v2085 = vsel %vm2077, 1, 0
        %v2086 = vsel %vm2078, 1, 0
        %v2087 = vsel %vm2079, 1, 0
        %v2088 = vcvt.s32.f32 %v2080
        %v2089 = vcvt.s32.f32 %v2081
        %v2090 = vcvt.s32.f32 %v2082
        %v2091 = vcvt.s32.f32 %v2083
        %v2092 = vcvt.s32.f32 %v2084
        %v2093 = vcvt.s32.f32 %v2085
        %v2094 = vcvt.s32.f32 %v2086
        %v2095 = vcvt.s32.f32 %v2087
        %s2096 = scalar_lea.vmem [#allocation2], 128
        %v2097 = vld [vmem:[%s2096] sm:$0xff]
        %v2098 = vld [vmem:[%s2096 + $0x8] sm:$0xff]
        %v2099 = vld [vmem:[%s2096 + $0x10] sm:$0xff]
        %v2100 = vld [vmem:[%s2096 + $0x18] sm:$0xff]
        %s2101 = scalar_lea.vmem [#allocation4], 128
        %v2102 = vld [vmem:[%s2101] sm:$0xff]
        %v2103 = vld [vmem:[%s2101 + $0x8] sm:$0xff]
        %v2104 = vld [vmem:[%s2101 + $0x10] sm:$0xff]
        %v2105 = vld [vmem:[%s2101 + $0x18] sm:$0xff]
        %2106 = vmatpush.msra.mxu0 0.0
        %2107 = vmatpush.msra.mxu0 0.0
        %2108 = vmatpush.msra.mxu0 0.0
        %2109 = vmatpush.msra.mxu0 0.0
        %2110 = vmatpush.msra.mxu0 0.0
        %2111 = vmatpush.msra.mxu0 0.0
        %2112 = vmatpush.msra.mxu0 0.0
        %2113 = vmatpush.msra.mxu0 0.0
        %2114 = vmatpush.msra.mxu0 0.0
        %2115 = vmatpush.msra.mxu0 0.0
        %2116 = vmatpush.msra.mxu0 0.0
        %2117 = vmatpush.msra.mxu0 0.0
        %2118 = vmatpush.msra.mxu0 %v2105
        %2119 = vmatpush.msra.mxu0 %v2104
        %2120 = vmatpush.msra.mxu0 %v2103
        %2121 = vmatpush.msra.mxu0 %v2102
        %2122 = vmatmul.f32.gmra.mxu0 %v1417
        %v2123 = vpop.f32.mrf.mxu0
        %v2124 = vadd.f32 0.0, %v2123
        %2125 = vmatmul.f32.gmra.mxu0 %v1419
        %v2126 = vpop.f32.mrf.mxu0
        %v2127 = vadd.f32 0.0, %v2126
        %2128 = vmatmul.f32.gmra.mxu0 %v1421
        %v2129 = vpop.f32.mrf.mxu0
        %v2130 = vadd.f32 0.0, %v2129
        %2131 = vmatmul.f32.gmra.mxu0 %v1423
        %v2132 = vpop.f32.mrf.mxu0
        %v2133 = vadd.f32 0.0, %v2132
        %2134 = vmatmul.f32.gmra.mxu0 %v1425
        %v2135 = vpop.f32.mrf.mxu0
        %v2136 = vadd.f32 0.0, %v2135
        %2137 = vmatmul.f32.gmra.mxu0 %v1427
        %v2138 = vpop.f32.mrf.mxu0
        %v2139 = vadd.f32 0.0, %v2138
        %2140 = vmatmul.f32.gmra.mxu0 %v1429
        %v2141 = vpop.f32.mrf.mxu0
        %v2142 = vadd.f32 0.0, %v2141
        %2143 = vmatmul.f32.gmra.mxu0 %v1415
        %v2144 = vpop.f32.mrf.mxu0
        %v2145 = vadd.f32 0.0, %v2144
        %2146 = vdwg.mxu0
        %2147 = vmatpush.msra.mxu0 0.0
        %2148 = vmatpush.msra.mxu0 0.0
        %2149 = vmatpush.msra.mxu0 0.0
        %2150 = vmatpush.msra.mxu0 0.0
        %2151 = vmatpush.msra.mxu0 0.0
        %2152 = vmatpush.msra.mxu0 0.0
        %2153 = vmatpush.msra.mxu0 0.0
        %2154 = vmatpush.msra.mxu0 0.0
        %2155 = vmatpush.msra.mxu0 0.0
        %2156 = vmatpush.msra.mxu0 0.0
        %2157 = vmatpush.msra.mxu0 0.0
        %2158 = vmatpush.msra.mxu0 0.0
        %2159 = vmatpush.msra.mxu0 %v2100
        %2160 = vmatpush.msra.mxu0 %v2099
        %2161 = vmatpush.msra.mxu0 %v2098
        %2162 = vmatpush.msra.mxu0 %v2097
        %2163 = vmatmul.f32.gmra.mxu0 %v1474
        %v2164 = vpop.f32.mrf.mxu0
        %v2165 = vadd.f32 %v2124, %v2164
        %2166 = vmatmul.f32.gmra.mxu0 %v1476
        %v2167 = vpop.f32.mrf.mxu0
        %v2168 = vadd.f32 %v2127, %v2167
        %2169 = vmatmul.f32.gmra.mxu0 %v1478
        %v2170 = vpop.f32.mrf.mxu0
        %v2171 = vadd.f32 %v2130, %v2170
        %2172 = vmatmul.f32.gmra.mxu0 %v1480
        %v2173 = vpop.f32.mrf.mxu0
        %v2174 = vadd.f32 %v2133, %v2173
        %2175 = vmatmul.f32.gmra.mxu0 %v1482
        %v2176 = vpop.f32.mrf.mxu0
        %v2177 = vadd.f32 %v2136, %v2176
        %2178 = vmatmul.f32.gmra.mxu0 %v1484
        %v2179 = vpop.f32.mrf.mxu0
        %v2180 = vadd.f32 %v2139, %v2179
        %2181 = vmatmul.f32.gmra.mxu0 %v1486
        %v2182 = vpop.f32.mrf.mxu0
        %v2183 = vadd.f32 %v2142, %v2182
        %2184 = vmatmul.f32.gmra.mxu0 %v1472
        %v2185 = vpop.f32.mrf.mxu0
        %v2186 = vadd.f32 %v2145, %v2185
        %2187 = vdwg.mxu0
        %2189 = vset.pattern.permute.xlu0 0
        %2190 = vperm.xlu0 %2189, %v2088
        %v2191 = vpop.permute.xlu0 %2190
        %2194 = vset.pattern.permute.xlu0 0
        %2195 = vperm.xlu0 %2194, %v2089
        %v2196 = vpop.permute.xlu0 %2195
        %2199 = vset.pattern.permute.xlu0 0
        %2200 = vperm.xlu0 %2199, %v2090
        %v2201 = vpop.permute.xlu0 %2200
        %2204 = vset.pattern.permute.xlu0 0
        %2205 = vperm.xlu0 %2204, %v2091
        %v2206 = vpop.permute.xlu0 %2205
        %2209 = vset.pattern.permute.xlu0 0
        %2210 = vperm.xlu0 %2209, %v2092
        %v2211 = vpop.permute.xlu0 %2210
        %2214 = vset.pattern.permute.xlu0 0
        %2215 = vperm.xlu0 %2214, %v2093
        %v2216 = vpop.permute.xlu0 %2215
        %2219 = vset.pattern.permute.xlu0 0
        %2220 = vperm.xlu0 %2219, %v2094
        %v2221 = vpop.permute.xlu0 %2220
        %2224 = vset.pattern.permute.xlu0 0
        %2225 = vperm.xlu0 %2224, %v2095
        %v2226 = vpop.permute.xlu0 %2225
        %v2228 = vmul.f32 %v2191, %v2165
        %v2229 = vmul.f32 %v2196, %v2168
        %v2230 = vmul.f32 %v2201, %v2171
        %v2231 = vmul.f32 %v2206, %v2174
        %v2232 = vmul.f32 %v2211, %v2177
        %v2233 = vmul.f32 %v2216, %v2180
        %v2234 = vmul.f32 %v2221, %v2183
        %v2235 = vmul.f32 %v2226, %v2186
        %v2236 = vadd.f32 %v2056, %v2228
        %v2237 = vadd.f32 %v2057, %v2229
        %v2238 = vadd.f32 %v2058, %v2230
        %v2239 = vadd.f32 %v2059, %v2231
        %v2240 = vadd.f32 %v2060, %v2232
        %v2241 = vadd.f32 %v2061, %v2233
        %v2242 = vadd.f32 %v2062, %v2234
        %v2243 = vadd.f32 %v2063, %v2235
        %vm2244 = vmand %vm1876, %vm1593
        %vm2245 = vmand %vm1877, %vm1594
        %vm2246 = vmand %vm1878, %vm1595
        %vm2247 = vmand %vm1879, %vm1596
        %vm2248 = vmand %vm1880, %vm1597
        %vm2249 = vmand %vm1881, %vm1598
        %vm2250 = vmand %vm1882, %vm1599
        %vm2251 = vmand %vm1883, %vm1600
        %vm2252 = vmand %vm2244, %vm1609
        %vm2253 = vmand %vm2245, %vm1610
        %vm2254 = vmand %vm2246, %vm1611
        %vm2255 = vmand %vm2247, %vm1612
        %vm2256 = vmand %vm2248, %vm1613
        %vm2257 = vmand %vm2249, %vm1614
        %vm2258 = vmand %vm2250, %vm1615
        %vm2259 = vmand %vm2251, %vm1616
        %v2260 = vsel %vm2252, 1, 0
        %v2261 = vsel %vm2253, 1, 0
        %v2262 = vsel %vm2254, 1, 0
        %v2263 = vsel %vm2255, 1, 0
        %v2264 = vsel %vm2256, 1, 0
        %v2265 = vsel %vm2257, 1, 0
        %v2266 = vsel %vm2258, 1, 0
        %v2267 = vsel %vm2259, 1, 0
        %v2268 = vcvt.s32.f32 %v2260
        %v2269 = vcvt.s32.f32 %v2261
        %v2270 = vcvt.s32.f32 %v2262
        %v2271 = vcvt.s32.f32 %v2263
        %v2272 = vcvt.s32.f32 %v2264
        %v2273 = vcvt.s32.f32 %v2265
        %v2274 = vcvt.s32.f32 %v2266
        %v2275 = vcvt.s32.f32 %v2267
        %s2276 = scalar_lea.vmem [#allocation2], 160
        %v2277 = vld [vmem:[%s2276] sm:$0xff]
        %v2278 = vld [vmem:[%s2276 + $0x8] sm:$0xff]
        %v2279 = vld [vmem:[%s2276 + $0x10] sm:$0xff]
        %v2280 = vld [vmem:[%s2276 + $0x18] sm:$0xff]
        %s2281 = scalar_lea.vmem [#allocation4], 160
        %v2282 = vld [vmem:[%s2281] sm:$0xff]
        %v2283 = vld [vmem:[%s2281 + $0x8] sm:$0xff]
        %v2284 = vld [vmem:[%s2281 + $0x10] sm:$0xff]
        %v2285 = vld [vmem:[%s2281 + $0x18] sm:$0xff]
        %2286 = vmatpush.msra.mxu0 0.0
        %2287 = vmatpush.msra.mxu0 0.0
        %2288 = vmatpush.msra.mxu0 0.0
        %2289 = vmatpush.msra.mxu0 0.0
        %2290 = vmatpush.msra.mxu0 0.0
        %2291 = vmatpush.msra.mxu0 0.0
        %2292 = vmatpush.msra.mxu0 0.0
        %2293 = vmatpush.msra.mxu0 0.0
        %2294 = vmatpush.msra.mxu0 0.0
        %2295 = vmatpush.msra.mxu0 0.0
        %2296 = vmatpush.msra.mxu0 0.0
        %2297 = vmatpush.msra.mxu0 0.0
        %2298 = vmatpush.msra.mxu0 %v2285
        %2299 = vmatpush.msra.mxu0 %v2284
        %2300 = vmatpush.msra.mxu0 %v2283
        %2301 = vmatpush.msra.mxu0 %v2282
        %2302 = vmatmul.f32.gmra.mxu0 %v1691
        %v2303 = vpop.f32.mrf.mxu0
        %v2304 = vadd.f32 0.0, %v2303
        %2305 = vmatmul.f32.gmra.mxu0 %v1693
        %v2306 = vpop.f32.mrf.mxu0
        %v2307 = vadd.f32 0.0, %v2306
        %2308 = vmatmul.f32.gmra.mxu0 %v1695
        %v2309 = vpop.f32.mrf.mxu0
        %v2310 = vadd.f32 0.0, %v2309
        %2311 = vmatmul.f32.gmra.mxu0 %v1697
        %v2312 = vpop.f32.mrf.mxu0
        %v2313 = vadd.f32 0.0, %v2312
        %2314 = vmatmul.f32.gmra.mxu0 %v1699
        %v2315 = vpop.f32.mrf.mxu0
        %v2316 = vadd.f32 0.0, %v2315
        %2317 = vmatmul.f32.gmra.mxu0 %v1701
        %v2318 = vpop.f32.mrf.mxu0
        %v2319 = vadd.f32 0.0, %v2318
        %2320 = vmatmul.f32.gmra.mxu0 %v1703
        %v2321 = vpop.f32.mrf.mxu0
        %v2322 = vadd.f32 0.0, %v2321
        %2323 = vmatmul.f32.gmra.mxu0 %v1689
        %v2324 = vpop.f32.mrf.mxu0
        %v2325 = vadd.f32 0.0, %v2324
        %2326 = vdwg.mxu0
        %2327 = vmatpush.msra.mxu0 0.0
        %2328 = vmatpush.msra.mxu0 0.0
        %2329 = vmatpush.msra.mxu0 0.0
        %2330 = vmatpush.msra.mxu0 0.0
        %2331 = vmatpush.msra.mxu0 0.0
        %2332 = vmatpush.msra.mxu0 0.0
        %2333 = vmatpush.msra.mxu0 0.0
        %2334 = vmatpush.msra.mxu0 0.0
        %2335 = vmatpush.msra.mxu0 0.0
        %2336 = vmatpush.msra.mxu0 0.0
        %2337 = vmatpush.msra.mxu0 0.0
        %2338 = vmatpush.msra.mxu0 0.0
        %2339 = vmatpush.msra.mxu0 %v2280
        %2340 = vmatpush.msra.mxu0 %v2279
        %2341 = vmatpush.msra.mxu0 %v2278
        %2342 = vmatpush.msra.mxu0 %v2277
        %2343 = vmatmul.f32.gmra.mxu0 %v1749
        %v2344 = vpop.f32.mrf.mxu0
        %v2345 = vadd.f32 %v2304, %v2344
        %2346 = vmatmul.f32.gmra.mxu0 %v1751
        %v2347 = vpop.f32.mrf.mxu0
        %v2348 = vadd.f32 %v2307, %v2347
        %2349 = vmatmul.f32.gmra.mxu0 %v1753
        %v2350 = vpop.f32.mrf.mxu0
        %v2351 = vadd.f32 %v2310, %v2350
        %2352 = vmatmul.f32.gmra.mxu0 %v1755
        %v2353 = vpop.f32.mrf.mxu0
        %v2354 = vadd.f32 %v2313, %v2353
        %2355 = vmatmul.f32.gmra.mxu0 %v1757
        %v2356 = vpop.f32.mrf.mxu0
        %v2357 = vadd.f32 %v2316, %v2356
        %2358 = vmatmul.f32.gmra.mxu0 %v1759
        %v2359 = vpop.f32.mrf.mxu0
        %v2360 = vadd.f32 %v2319, %v2359
        %2361 = vmatmul.f32.gmra.mxu0 %v1761
        %v2362 = vpop.f32.mrf.mxu0
        %v2363 = vadd.f32 %v2322, %v2362
        %2364 = vmatmul.f32.gmra.mxu0 %v1747
        %v2365 = vpop.f32.mrf.mxu0
        %v2366 = vadd.f32 %v2325, %v2365
        %2367 = vdwg.mxu0
        %2369 = vset.pattern.permute.xlu0 0
        %2370 = vperm.xlu0 %2369, %v2268
        %v2371 = vpop.permute.xlu0 %2370
        %2374 = vset.pattern.permute.xlu0 0
        %2375 = vperm.xlu0 %2374, %v2269
        %v2376 = vpop.permute.xlu0 %2375
        %2379 = vset.pattern.permute.xlu0 0
        %2380 = vperm.xlu0 %2379, %v2270
        %v2381 = vpop.permute.xlu0 %2380
        %2384 = vset.pattern.permute.xlu0 0
        %2385 = vperm.xlu0 %2384, %v2271
        %v2386 = vpop.permute.xlu0 %2385
        %2389 = vset.pattern.permute.xlu0 0
        %2390 = vperm.xlu0 %2389, %v2272
        %v2391 = vpop.permute.xlu0 %2390
        %2394 = vset.pattern.permute.xlu0 0
        %2395 = vperm.xlu0 %2394, %v2273
        %v2396 = vpop.permute.xlu0 %2395
        %2399 = vset.pattern.permute.xlu0 0
        %2400 = vperm.xlu0 %2399, %v2274
        %v2401 = vpop.permute.xlu0 %2400
        %2404 = vset.pattern.permute.xlu0 0
        %2405 = vperm.xlu0 %2404, %v2275
        %v2406 = vpop.permute.xlu0 %2405
        %v2408 = vmul.f32 %v2371, %v2345
        %v2409 = vmul.f32 %v2376, %v2348
        %v2410 = vmul.f32 %v2381, %v2351
        %v2411 = vmul.f32 %v2386, %v2354
        %v2412 = vmul.f32 %v2391, %v2357
        %v2413 = vmul.f32 %v2396, %v2360
        %v2414 = vmul.f32 %v2401, %v2363
        %v2415 = vmul.f32 %v2406, %v2366
        %v2416 = vadd.f32 %v2236, %v2408
        %v2417 = vadd.f32 %v2237, %v2409
        %v2418 = vadd.f32 %v2238, %v2410
        %v2419 = vadd.f32 %v2239, %v2411
        %v2420 = vadd.f32 %v2240, %v2412
        %v2421 = vadd.f32 %v2241, %v2413
        %v2422 = vadd.f32 %v2242, %v2414
        %v2423 = vadd.f32 %v2243, %v2415
        %v2424 = vadd.s32 %v1020, 1
        %v2425 = vadd.s32 %v1021, 1
        %v2426 = vadd.s32 %v1022, 1
        %v2427 = vadd.s32 %v1023, 1
        %v2428 = vadd.s32 %v1024, 1
        %v2429 = vadd.s32 %v1025, 1
        %v2430 = vadd.s32 %v1026, 1
        %v2431 = vadd.s32 %v1027, 1
        %vm2432 = vcmp.ge.s32.totalorder %v2424, 0
        %vm2433 = vcmp.ge.s32.totalorder %v2425, 0
        %vm2434 = vcmp.ge.s32.totalorder %v2426, 0
        %vm2435 = vcmp.ge.s32.totalorder %v2427, 0
        %vm2436 = vcmp.ge.s32.totalorder %v2428, 0
        %vm2437 = vcmp.ge.s32.totalorder %v2429, 0
        %vm2438 = vcmp.ge.s32.totalorder %v2430, 0
        %vm2439 = vcmp.ge.s32.totalorder %v2431, 0
        %vm2440 = vcmp.lt.s32.totalorder %v2424, 8
        %vm2441 = vcmp.lt.s32.totalorder %v2425, 8
        %vm2442 = vcmp.lt.s32.totalorder %v2426, 8
        %vm2443 = vcmp.lt.s32.totalorder %v2427, 8
        %vm2444 = vcmp.lt.s32.totalorder %v2428, 8
        %vm2445 = vcmp.lt.s32.totalorder %v2429, 8
        %vm2446 = vcmp.lt.s32.totalorder %v2430, 8
        %vm2447 = vcmp.lt.s32.totalorder %v2431, 8
        %vm2448 = vmand %vm2432, %vm2440
        %vm2449 = vmand %vm2433, %vm2441
        %vm2450 = vmand %vm2434, %vm2442
        %vm2451 = vmand %vm2435, %vm2443
        %vm2452 = vmand %vm2436, %vm2444
        %vm2453 = vmand %vm2437, %vm2445
        %vm2454 = vmand %vm2438, %vm2446
        %vm2455 = vmand %vm2439, %vm2447
        %vm2456 = vmand %vm2448, %vm1076
        %vm2457 = vmand %vm2449, %vm1077
        %vm2458 = vmand %vm2450, %vm1078
        %vm2459 = vmand %vm2451, %vm1079
        %vm2460 = vmand %vm2452, %vm1080
        %vm2461 = vmand %vm2453, %vm1081
        %vm2462 = vmand %vm2454, %vm1082
        %vm2463 = vmand %vm2455, %vm1083
        %vm2464 = vmand %vm2456, %vm1092
        %vm2465 = vmand %vm2457, %vm1093
        %vm2466 = vmand %vm2458, %vm1094
        %vm2467 = vmand %vm2459, %vm1095
        %vm2468 = vmand %vm2460, %vm1096
        %vm2469 = vmand %vm2461, %vm1097
        %vm2470 = vmand %vm2462, %vm1098
        %vm2471 = vmand %vm2463, %vm1099
        %v2472 = vsel %vm2464, 1, 0
        %v2473 = vsel %vm2465, 1, 0
        %v2474 = vsel %vm2466, 1, 0
        %v2475 = vsel %vm2467, 1, 0
        %v2476 = vsel %vm2468, 1, 0
        %v2477 = vsel %vm2469, 1, 0
        %v2478 = vsel %vm2470, 1, 0
        %v2479 = vsel %vm2471, 1, 0
        %v2480 = vcvt.s32.f32 %v2472
        %v2481 = vcvt.s32.f32 %v2473
        %v2482 = vcvt.s32.f32 %v2474
        %v2483 = vcvt.s32.f32 %v2475
        %v2484 = vcvt.s32.f32 %v2476
        %v2485 = vcvt.s32.f32 %v2477
        %v2486 = vcvt.s32.f32 %v2478
        %v2487 = vcvt.s32.f32 %v2479
        %s2488 = scalar_lea.vmem [#allocation2], 192
        %v2489 = vld [vmem:[%s2488] sm:$0xff]
        %v2490 = vld [vmem:[%s2488 + $0x8] sm:$0xff]
        %v2491 = vld [vmem:[%s2488 + $0x10] sm:$0xff]
        %v2492 = vld [vmem:[%s2488 + $0x18] sm:$0xff]
        %s2493 = scalar_lea.vmem [#allocation4], 192
        %v2494 = vld [vmem:[%s2493] sm:$0xff]
        %v2495 = vld [vmem:[%s2493 + $0x8] sm:$0xff]
        %v2496 = vld [vmem:[%s2493 + $0x10] sm:$0xff]
        %v2497 = vld [vmem:[%s2493 + $0x18] sm:$0xff]
        %2498 = vmatpush.msra.mxu0 0.0
        %2499 = vmatpush.msra.mxu0 0.0
        %2500 = vmatpush.msra.mxu0 0.0
        %2501 = vmatpush.msra.mxu0 0.0
        %2502 = vmatpush.msra.mxu0 0.0
        %2503 = vmatpush.msra.mxu0 0.0
        %2504 = vmatpush.msra.mxu0 0.0
        %2505 = vmatpush.msra.mxu0 0.0
        %2506 = vmatpush.msra.mxu0 0.0
        %2507 = vmatpush.msra.mxu0 0.0
        %2508 = vmatpush.msra.mxu0 0.0
        %2509 = vmatpush.msra.mxu0 0.0
        %2510 = vmatpush.msra.mxu0 %v2497
        %2511 = vmatpush.msra.mxu0 %v2496
        %2512 = vmatpush.msra.mxu0 %v2495
        %2513 = vmatpush.msra.mxu0 %v2494
        %2514 = vmatmul.f32.gmra.mxu0 %v1190
        %v2515 = vpop.f32.mrf.mxu0
        %v2516 = vadd.f32 0.0, %v2515
        %2517 = vmatmul.f32.gmra.mxu0 %v1192
        %v2518 = vpop.f32.mrf.mxu0
        %v2519 = vadd.f32 0.0, %v2518
        %2520 = vmatmul.f32.gmra.mxu0 %v1194
        %v2521 = vpop.f32.mrf.mxu0
        %v2522 = vadd.f32 0.0, %v2521
        %2523 = vmatmul.f32.gmra.mxu0 %v1196
        %v2524 = vpop.f32.mrf.mxu0
        %v2525 = vadd.f32 0.0, %v2524
        %2526 = vmatmul.f32.gmra.mxu0 %v1198
        %v2527 = vpop.f32.mrf.mxu0
        %v2528 = vadd.f32 0.0, %v2527
        %2529 = vmatmul.f32.gmra.mxu0 %v1200
        %v2530 = vpop.f32.mrf.mxu0
        %v2531 = vadd.f32 0.0, %v2530
        %2532 = vmatmul.f32.gmra.mxu0 %v1185
        %v2533 = vpop.f32.mrf.mxu0
        %v2534 = vadd.f32 0.0, %v2533
        %2535 = vmatmul.f32.gmra.mxu0 %v1188
        %v2536 = vpop.f32.mrf.mxu0
        %v2537 = vadd.f32 0.0, %v2536
        %2538 = vdwg.mxu0
        %2539 = vmatpush.msra.mxu0 0.0
        %2540 = vmatpush.msra.mxu0 0.0
        %2541 = vmatpush.msra.mxu0 0.0
        %2542 = vmatpush.msra.mxu0 0.0
        %2543 = vmatpush.msra.mxu0 0.0
        %2544 = vmatpush.msra.mxu0 0.0
        %2545 = vmatpush.msra.mxu0 0.0
        %2546 = vmatpush.msra.mxu0 0.0
        %2547 = vmatpush.msra.mxu0 0.0
        %2548 = vmatpush.msra.mxu0 0.0
        %2549 = vmatpush.msra.mxu0 0.0
        %2550 = vmatpush.msra.mxu0 0.0
        %2551 = vmatpush.msra.mxu0 %v2492
        %2552 = vmatpush.msra.mxu0 %v2491
        %2553 = vmatpush.msra.mxu0 %v2490
        %2554 = vmatpush.msra.mxu0 %v2489
        %2555 = vmatmul.f32.gmra.mxu0 %v1248
        %v2556 = vpop.f32.mrf.mxu0
        %v2557 = vadd.f32 %v2516, %v2556
        %2558 = vmatmul.f32.gmra.mxu0 %v1250
        %v2559 = vpop.f32.mrf.mxu0
        %v2560 = vadd.f32 %v2519, %v2559
        %2561 = vmatmul.f32.gmra.mxu0 %v1252
        %v2562 = vpop.f32.mrf.mxu0
        %v2563 = vadd.f32 %v2522, %v2562
        %2564 = vmatmul.f32.gmra.mxu0 %v1254
        %v2565 = vpop.f32.mrf.mxu0
        %v2566 = vadd.f32 %v2525, %v2565
        %2567 = vmatmul.f32.gmra.mxu0 %v1256
        %v2568 = vpop.f32.mrf.mxu0
        %v2569 = vadd.f32 %v2528, %v2568
        %2570 = vmatmul.f32.gmra.mxu0 %v1258
        %v2571 = vpop.f32.mrf.mxu0
        %v2572 = vadd.f32 %v2531, %v2571
        %2573 = vmatmul.f32.gmra.mxu0 %v1243
        %v2574 = vpop.f32.mrf.mxu0
        %v2575 = vadd.f32 %v2534, %v2574
        %2576 = vmatmul.f32.gmra.mxu0 %v1246
        %v2577 = vpop.f32.mrf.mxu0
        %v2578 = vadd.f32 %v2537, %v2577
        %2579 = vdwg.mxu0
        %2581 = vset.pattern.permute.xlu0 0
        %2582 = vperm.xlu0 %2581, %v2480
        %v2583 = vpop.permute.xlu0 %2582
        %2586 = vset.pattern.permute.xlu0 0
        %2587 = vperm.xlu0 %2586, %v2481
        %v2588 = vpop.permute.xlu0 %2587
        %2591 = vset.pattern.permute.xlu0 0
        %2592 = vperm.xlu0 %2591, %v2482
        %v2593 = vpop.permute.xlu0 %2592
        %2596 = vset.pattern.permute.xlu0 0
        %2597 = vperm.xlu0 %2596, %v2483
        %v2598 = vpop.permute.xlu0 %2597
        %2601 = vset.pattern.permute.xlu0 0
        %2602 = vperm.xlu0 %2601, %v2484
        %v2603 = vpop.permute.xlu0 %2602
        %2606 = vset.pattern.permute.xlu0 0
        %2607 = vperm.xlu0 %2606, %v2485
        %v2608 = vpop.permute.xlu0 %2607
        %2611 = vset.pattern.permute.xlu0 0
        %2612 = vperm.xlu0 %2611, %v2486
        %v2613 = vpop.permute.xlu0 %2612
        %2616 = vset.pattern.permute.xlu0 0
        %2617 = vperm.xlu0 %2616, %v2487
        %v2618 = vpop.permute.xlu0 %2617
        %v2620 = vmul.f32 %v2583, %v2557
        %v2621 = vmul.f32 %v2588, %v2560
        %v2622 = vmul.f32 %v2593, %v2563
        %v2623 = vmul.f32 %v2598, %v2566
        %v2624 = vmul.f32 %v2603, %v2569
        %v2625 = vmul.f32 %v2608, %v2572
        %v2626 = vmul.f32 %v2613, %v2575
        %v2627 = vmul.f32 %v2618, %v2578
        %v2628 = vadd.f32 %v2416, %v2620
        %v2629 = vadd.f32 %v2417, %v2621
        %v2630 = vadd.f32 %v2418, %v2622
        %v2631 = vadd.f32 %v2419, %v2623
        %v2632 = vadd.f32 %v2420, %v2624
        %v2633 = vadd.f32 %v2421, %v2625
        %v2634 = vadd.f32 %v2422, %v2626
        %v2635 = vadd.f32 %v2423, %v2627
        %vm2636 = vmand %vm2448, %vm1357
        %vm2637 = vmand %vm2449, %vm1358
        %vm2638 = vmand %vm2450, %vm1359
        %vm2639 = vmand %vm2451, %vm1360
        %vm2640 = vmand %vm2452, %vm1361
        %vm2641 = vmand %vm2453, %vm1362
        %vm2642 = vmand %vm2454, %vm1363
        %vm2643 = vmand %vm2455, %vm1364
        %vm2644 = vmand %vm2636, %vm1373
        %vm2645 = vmand %vm2637, %vm1374
        %vm2646 = vmand %vm2638, %vm1375
        %vm2647 = vmand %vm2639, %vm1376
        %vm2648 = vmand %vm2640, %vm1377
        %vm2649 = vmand %vm2641, %vm1378
        %vm2650 = vmand %vm2642, %vm1379
        %vm2651 = vmand %vm2643, %vm1380
        %v2652 = vsel %vm2644, 1, 0
        %v2653 = vsel %vm2645, 1, 0
        %v2654 = vsel %vm2646, 1, 0
        %v2655 = vsel %vm2647, 1, 0
        %v2656 = vsel %vm2648, 1, 0
        %v2657 = vsel %vm2649, 1, 0
        %v2658 = vsel %vm2650, 1, 0
        %v2659 = vsel %vm2651, 1, 0
        %v2660 = vcvt.s32.f32 %v2652
        %v2661 = vcvt.s32.f32 %v2653
        %v2662 = vcvt.s32.f32 %v2654
        %v2663 = vcvt.s32.f32 %v2655
        %v2664 = vcvt.s32.f32 %v2656
        %v2665 = vcvt.s32.f32 %v2657
        %v2666 = vcvt.s32.f32 %v2658
        %v2667 = vcvt.s32.f32 %v2659
        %s2668 = scalar_lea.vmem [#allocation2], 224
        %v2669 = vld [vmem:[%s2668] sm:$0xff]
        %v2670 = vld [vmem:[%s2668 + $0x8] sm:$0xff]
        %v2671 = vld [vmem:[%s2668 + $0x10] sm:$0xff]
        %v2672 = vld [vmem:[%s2668 + $0x18] sm:$0xff]
        %s2673 = scalar_lea.vmem [#allocation4], 224
        %v2674 = vld [vmem:[%s2673] sm:$0xff]
        %v2675 = vld [vmem:[%s2673 + $0x8] sm:$0xff]
        %v2676 = vld [vmem:[%s2673 + $0x10] sm:$0xff]
        %v2677 = vld [vmem:[%s2673 + $0x18] sm:$0xff]
        %2678 = vmatpush.msra.mxu0 0.0
        %2679 = vmatpush.msra.mxu0 0.0
        %2680 = vmatpush.msra.mxu0 0.0
        %2681 = vmatpush.msra.mxu0 0.0
        %2682 = vmatpush.msra.mxu0 0.0
        %2683 = vmatpush.msra.mxu0 0.0
        %2684 = vmatpush.msra.mxu0 0.0
        %2685 = vmatpush.msra.mxu0 0.0
        %2686 = vmatpush.msra.mxu0 0.0
        %2687 = vmatpush.msra.mxu0 0.0
        %2688 = vmatpush.msra.mxu0 0.0
        %2689 = vmatpush.msra.mxu0 0.0
        %2690 = vmatpush.msra.mxu0 %v2677
        %2691 = vmatpush.msra.mxu0 %v2676
        %2692 = vmatpush.msra.mxu0 %v2675
        %2693 = vmatpush.msra.mxu0 %v2674
        %2694 = vmatmul.f32.gmra.mxu0 %v1419
        %v2695 = vpop.f32.mrf.mxu0
        %v2696 = vadd.f32 0.0, %v2695
        %2697 = vmatmul.f32.gmra.mxu0 %v1421
        %v2698 = vpop.f32.mrf.mxu0
        %v2699 = vadd.f32 0.0, %v2698
        %2700 = vmatmul.f32.gmra.mxu0 %v1423
        %v2701 = vpop.f32.mrf.mxu0
        %v2702 = vadd.f32 0.0, %v2701
        %2703 = vmatmul.f32.gmra.mxu0 %v1425
        %v2704 = vpop.f32.mrf.mxu0
        %v2705 = vadd.f32 0.0, %v2704
        %2706 = vmatmul.f32.gmra.mxu0 %v1427
        %v2707 = vpop.f32.mrf.mxu0
        %v2708 = vadd.f32 0.0, %v2707
        %2709 = vmatmul.f32.gmra.mxu0 %v1429
        %v2710 = vpop.f32.mrf.mxu0
        %v2711 = vadd.f32 0.0, %v2710
        %2712 = vmatmul.f32.gmra.mxu0 %v1415
        %v2713 = vpop.f32.mrf.mxu0
        %v2714 = vadd.f32 0.0, %v2713
        %2715 = vmatmul.f32.gmra.mxu0 %v1417
        %v2716 = vpop.f32.mrf.mxu0
        %v2717 = vadd.f32 0.0, %v2716
        %2718 = vdwg.mxu0
        %2719 = vmatpush.msra.mxu0 0.0
        %2720 = vmatpush.msra.mxu0 0.0
        %2721 = vmatpush.msra.mxu0 0.0
        %2722 = vmatpush.msra.mxu0 0.0
        %2723 = vmatpush.msra.mxu0 0.0
        %2724 = vmatpush.msra.mxu0 0.0
        %2725 = vmatpush.msra.mxu0 0.0
        %2726 = vmatpush.msra.mxu0 0.0
        %2727 = vmatpush.msra.mxu0 0.0
        %2728 = vmatpush.msra.mxu0 0.0
        %2729 = vmatpush.msra.mxu0 0.0
        %2730 = vmatpush.msra.mxu0 0.0
        %2731 = vmatpush.msra.mxu0 %v2672
        %2732 = vmatpush.msra.mxu0 %v2671
        %2733 = vmatpush.msra.mxu0 %v2670
        %2734 = vmatpush.msra.mxu0 %v2669
        %2735 = vmatmul.f32.gmra.mxu0 %v1476
        %v2736 = vpop.f32.mrf.mxu0
        %v2737 = vadd.f32 %v2696, %v2736
        %2738 = vmatmul.f32.gmra.mxu0 %v1478
        %v2739 = vpop.f32.mrf.mxu0
        %v2740 = vadd.f32 %v2699, %v2739
        %2741 = vmatmul.f32.gmra.mxu0 %v1480
        %v2742 = vpop.f32.mrf.mxu0
        %v2743 = vadd.f32 %v2702, %v2742
        %2744 = vmatmul.f32.gmra.mxu0 %v1482
        %v2745 = vpop.f32.mrf.mxu0
        %v2746 = vadd.f32 %v2705, %v2745
        %2747 = vmatmul.f32.gmra.mxu0 %v1484
        %v2748 = vpop.f32.mrf.mxu0
        %v2749 = vadd.f32 %v2708, %v2748
        %2750 = vmatmul.f32.gmra.mxu0 %v1486
        %v2751 = vpop.f32.mrf.mxu0
        %v2752 = vadd.f32 %v2711, %v2751
        %2753 = vmatmul.f32.gmra.mxu0 %v1472
        %v2754 = vpop.f32.mrf.mxu0
        %v2755 = vadd.f32 %v2714, %v2754
        %2756 = vmatmul.f32.gmra.mxu0 %v1474
        %v2757 = vpop.f32.mrf.mxu0
        %v2758 = vadd.f32 %v2717, %v2757
        %2759 = vdwg.mxu0
        %2761 = vset.pattern.permute.xlu0 0
        %2762 = vperm.xlu0 %2761, %v2660
        %v2763 = vpop.permute.xlu0 %2762
        %2766 = vset.pattern.permute.xlu0 0
        %2767 = vperm.xlu0 %2766, %v2661
        %v2768 = vpop.permute.xlu0 %2767
        %2771 = vset.pattern.permute.xlu0 0
        %2772 = vperm.xlu0 %2771, %v2662
        %v2773 = vpop.permute.xlu0 %2772
        %2776 = vset.pattern.permute.xlu0 0
        %2777 = vperm.xlu0 %2776, %v2663
        %v2778 = vpop.permute.xlu0 %2777
        %2781 = vset.pattern.permute.xlu0 0
        %2782 = vperm.xlu0 %2781, %v2664
        %v2783 = vpop.permute.xlu0 %2782
        %2786 = vset.pattern.permute.xlu0 0
        %2787 = vperm.xlu0 %2786, %v2665
        %v2788 = vpop.permute.xlu0 %2787
        %2791 = vset.pattern.permute.xlu0 0
        %2792 = vperm.xlu0 %2791, %v2666
        %v2793 = vpop.permute.xlu0 %2792
        %2796 = vset.pattern.permute.xlu0 0
        %2797 = vperm.xlu0 %2796, %v2667
        %v2798 = vpop.permute.xlu0 %2797
        %v2800 = vmul.f32 %v2763, %v2737
        %v2801 = vmul.f32 %v2768, %v2740
        %v2802 = vmul.f32 %v2773, %v2743
        %v2803 = vmul.f32 %v2778, %v2746
        %v2804 = vmul.f32 %v2783, %v2749
        %v2805 = vmul.f32 %v2788, %v2752
        %v2806 = vmul.f32 %v2793, %v2755
        %v2807 = vmul.f32 %v2798, %v2758
        %v2808 = vadd.f32 %v2628, %v2800
        %v2809 = vadd.f32 %v2629, %v2801
        %v2810 = vadd.f32 %v2630, %v2802
        %v2811 = vadd.f32 %v2631, %v2803
        %v2812 = vadd.f32 %v2632, %v2804
        %v2813 = vadd.f32 %v2633, %v2805
        %v2814 = vadd.f32 %v2634, %v2806
        %v2815 = vadd.f32 %v2635, %v2807
        %vm2816 = vmand %vm2448, %vm1593
        %vm2817 = vmand %vm2449, %vm1594
        %vm2818 = vmand %vm2450, %vm1595
        %vm2819 = vmand %vm2451, %vm1596
        %vm2820 = vmand %vm2452, %vm1597
        %vm2821 = vmand %vm2453, %vm1598
        %vm2822 = vmand %vm2454, %vm1599
        %vm2823 = vmand %vm2455, %vm1600
        %vm2824 = vmand %vm2816, %vm1609
        %vm2825 = vmand %vm2817, %vm1610
        %vm2826 = vmand %vm2818, %vm1611
        %vm2827 = vmand %vm2819, %vm1612
        %vm2828 = vmand %vm2820, %vm1613
        %vm2829 = vmand %vm2821, %vm1614
        %vm2830 = vmand %vm2822, %vm1615
        %vm2831 = vmand %vm2823, %vm1616
        %v2832 = vsel %vm2824, 1, 0
        %v2833 = vsel %vm2825, 1, 0
        %v2834 = vsel %vm2826, 1, 0
        %v2835 = vsel %vm2827, 1, 0
        %v2836 = vsel %vm2828, 1, 0
        %v2837 = vsel %vm2829, 1, 0
        %v2838 = vsel %vm2830, 1, 0
        %v2839 = vsel %vm2831, 1, 0
        %v2840 = vcvt.s32.f32 %v2832
        %v2841 = vcvt.s32.f32 %v2833
        %v2842 = vcvt.s32.f32 %v2834
        %v2843 = vcvt.s32.f32 %v2835
        %v2844 = vcvt.s32.f32 %v2836
        %v2845 = vcvt.s32.f32 %v2837
        %v2846 = vcvt.s32.f32 %v2838
        %v2847 = vcvt.s32.f32 %v2839
        %s2848 = scalar_lea.vmem [#allocation2], 256
        %v2849 = vld [vmem:[%s2848] sm:$0xff]
        %v2850 = vld [vmem:[%s2848 + $0x8] sm:$0xff]
        %v2851 = vld [vmem:[%s2848 + $0x10] sm:$0xff]
        %v2852 = vld [vmem:[%s2848 + $0x18] sm:$0xff]
        %s2853 = scalar_lea.vmem [#allocation4], 256
        %v2854 = vld [vmem:[%s2853] sm:$0xff]
        %v2855 = vld [vmem:[%s2853 + $0x8] sm:$0xff]
        %v2856 = vld [vmem:[%s2853 + $0x10] sm:$0xff]
        %v2857 = vld [vmem:[%s2853 + $0x18] sm:$0xff]
        %2858 = vmatpush.msra.mxu0 0.0
        %2859 = vmatpush.msra.mxu0 0.0
        %2860 = vmatpush.msra.mxu0 0.0
        %2861 = vmatpush.msra.mxu0 0.0
        %2862 = vmatpush.msra.mxu0 0.0
        %2863 = vmatpush.msra.mxu0 0.0
        %2864 = vmatpush.msra.mxu0 0.0
        %2865 = vmatpush.msra.mxu0 0.0
        %2866 = vmatpush.msra.mxu0 0.0
        %2867 = vmatpush.msra.mxu0 0.0
        %2868 = vmatpush.msra.mxu0 0.0
        %2869 = vmatpush.msra.mxu0 0.0
        %2870 = vmatpush.msra.mxu0 %v2857
        %2871 = vmatpush.msra.mxu0 %v2856
        %2872 = vmatpush.msra.mxu0 %v2855
        %2873 = vmatpush.msra.mxu0 %v2854
        %2874 = vmatmul.f32.gmra.mxu0 %v1693
        %v2875 = vpop.f32.mrf.mxu0
        %v2876 = vadd.f32 0.0, %v2875
        %2877 = vmatmul.f32.gmra.mxu0 %v1695
        %v2878 = vpop.f32.mrf.mxu0
        %v2879 = vadd.f32 0.0, %v2878
        %2880 = vmatmul.f32.gmra.mxu0 %v1697
        %v2881 = vpop.f32.mrf.mxu0
        %v2882 = vadd.f32 0.0, %v2881
        %2883 = vmatmul.f32.gmra.mxu0 %v1699
        %v2884 = vpop.f32.mrf.mxu0
        %v2885 = vadd.f32 0.0, %v2884
        %2886 = vmatmul.f32.gmra.mxu0 %v1701
        %v2887 = vpop.f32.mrf.mxu0
        %v2888 = vadd.f32 0.0, %v2887
        %2889 = vmatmul.f32.gmra.mxu0 %v1703
        %v2890 = vpop.f32.mrf.mxu0
        %v2891 = vadd.f32 0.0, %v2890
        %2892 = vmatmul.f32.gmra.mxu0 %v1689
        %v2893 = vpop.f32.mrf.mxu0
        %v2894 = vadd.f32 0.0, %v2893
        %2895 = vmatmul.f32.gmra.mxu0 %v1691
        %v2896 = vpop.f32.mrf.mxu0
        %v2897 = vadd.f32 0.0, %v2896
        %2898 = vdwg.mxu0
        %2899 = vmatpush.msra.mxu0 0.0
        %2900 = vmatpush.msra.mxu0 0.0
        %2901 = vmatpush.msra.mxu0 0.0
        %2902 = vmatpush.msra.mxu0 0.0
        %2903 = vmatpush.msra.mxu0 0.0
        %2904 = vmatpush.msra.mxu0 0.0
        %2905 = vmatpush.msra.mxu0 0.0
        %2906 = vmatpush.msra.mxu0 0.0
        %2907 = vmatpush.msra.mxu0 0.0
        %2908 = vmatpush.msra.mxu0 0.0
        %2909 = vmatpush.msra.mxu0 0.0
        %2910 = vmatpush.msra.mxu0 0.0
        %2911 = vmatpush.msra.mxu0 %v2852
        %2912 = vmatpush.msra.mxu0 %v2851
        %2913 = vmatpush.msra.mxu0 %v2850
        %2914 = vmatpush.msra.mxu0 %v2849
        %2915 = vmatmul.f32.gmra.mxu0 %v1751
        %v2916 = vpop.f32.mrf.mxu0
        %v2917 = vadd.f32 %v2876, %v2916
        %2918 = vmatmul.f32.gmra.mxu0 %v1753
        %v2919 = vpop.f32.mrf.mxu0
        %v2920 = vadd.f32 %v2879, %v2919
        %2921 = vmatmul.f32.gmra.mxu0 %v1755
        %v2922 = vpop.f32.mrf.mxu0
        %v2923 = vadd.f32 %v2882, %v2922
        %2924 = vmatmul.f32.gmra.mxu0 %v1757
        %v2925 = vpop.f32.mrf.mxu0
        %v2926 = vadd.f32 %v2885, %v2925
        %2927 = vmatmul.f32.gmra.mxu0 %v1759
        %v2928 = vpop.f32.mrf.mxu0
        %v2929 = vadd.f32 %v2888, %v2928
        %2930 = vmatmul.f32.gmra.mxu0 %v1761
        %v2931 = vpop.f32.mrf.mxu0
        %v2932 = vadd.f32 %v2891, %v2931
        %2933 = vmatmul.f32.gmra.mxu0 %v1747
        %v2934 = vpop.f32.mrf.mxu0
        %v2935 = vadd.f32 %v2894, %v2934
        %2936 = vmatmul.f32.gmra.mxu0 %v1749
        %v2937 = vpop.f32.mrf.mxu0
        %v2938 = vadd.f32 %v2897, %v2937
        %2939 = vdwg.mxu0
        %2941 = vset.pattern.permute.xlu0 0
        %2942 = vperm.xlu0 %2941, %v2840
        %v2943 = vpop.permute.xlu0 %2942
        %2946 = vset.pattern.permute.xlu0 0
        %2947 = vperm.xlu0 %2946, %v2841
        %v2948 = vpop.permute.xlu0 %2947
        %2951 = vset.pattern.permute.xlu0 0
        %2952 = vperm.xlu0 %2951, %v2842
        %v2953 = vpop.permute.xlu0 %2952
        %2956 = vset.pattern.permute.xlu0 0
        %2957 = vperm.xlu0 %2956, %v2843
        %v2958 = vpop.permute.xlu0 %2957
        %2961 = vset.pattern.permute.xlu0 0
        %2962 = vperm.xlu0 %2961, %v2844
        %v2963 = vpop.permute.xlu0 %2962
        %2966 = vset.pattern.permute.xlu0 0
        %2967 = vperm.xlu0 %2966, %v2845
        %v2968 = vpop.permute.xlu0 %2967
        %2971 = vset.pattern.permute.xlu0 0
        %2972 = vperm.xlu0 %2971, %v2846
        %v2973 = vpop.permute.xlu0 %2972
        %2976 = vset.pattern.permute.xlu0 0
        %2977 = vperm.xlu0 %2976, %v2847
        %v2978 = vpop.permute.xlu0 %2977
        %v2980 = vmul.f32 %v2943, %v2917
        %v2981 = vmul.f32 %v2948, %v2920
        %v2982 = vmul.f32 %v2953, %v2923
        %v2983 = vmul.f32 %v2958, %v2926
        %v2984 = vmul.f32 %v2963, %v2929
        %v2985 = vmul.f32 %v2968, %v2932
        %v2986 = vmul.f32 %v2973, %v2935
        %v2987 = vmul.f32 %v2978, %v2938
        %v2988 = vadd.f32 %v2808, %v2980
        %v2989 = vadd.f32 %v2809, %v2981
        %v2990 = vadd.f32 %v2810, %v2982
        %v2991 = vadd.f32 %v2811, %v2983
        %v2992 = vadd.f32 %v2812, %v2984
        %v2993 = vadd.f32 %v2813, %v2985
        %v2994 = vadd.f32 %v2814, %v2986
        %v2995 = vadd.f32 %v2815, %v2987
        %v2996 = vld [vmem:[%s11] sm:$0x1]
        %v2998 = vperm.slane %v2996, 0
        %v3000 = vadd.f32 %v2988, %v2998
        %v3001 = vadd.f32 %v2989, %v2998
        %v3002 = vadd.f32 %v2990, %v2998
        %v3003 = vadd.f32 %v2991, %v2998
        %v3004 = vadd.f32 %v2992, %v2998
        %v3005 = vadd.f32 %v2993, %v2998
        %v3006 = vadd.f32 %v2994, %v2998
        %v3007 = vadd.f32 %v2995, %v2998
        %v3008 = vadd.f32 %v3000, %v656
        %v3009 = vadd.f32 %v3001, %v657
        %v3010 = vadd.f32 %v3002, %v658
        %v3011 = vadd.f32 %v3003, %v659
        %v3012 = vadd.f32 %v3004, %v660
        %v3013 = vadd.f32 %v3005, %v661
        %v3014 = vadd.f32 %v3006, %v662
        %v3015 = vadd.f32 %v3007, %v663
        %v3016 = vadd.f32 %v3008, %v3008
        %v3017 = vadd.f32 %v3009, %v3009
        %v3018 = vadd.f32 %v3010, %v3010
        %v3019 = vadd.f32 %v3011, %v3011
        %v3020 = vadd.f32 %v3012, %v3012
        %v3021 = vadd.f32 %v3013, %v3013
        %v3022 = vadd.f32 %v3014, %v3014
        %v3023 = vadd.f32 %v3015, %v3015
        %3024 = vst.msk [vmem:[%s447] sm:$0xff] %vm456, %v3016
        %3025 = vst.msk [vmem:[%s447 + $0x8] sm:$0xff] %vm456, %v3017
        %3026 = vst.msk [vmem:[%s447 + $0x10] sm:$0xff] %vm456, %v3018
        %3027 = vst.msk [vmem:[%s447 + $0x18] sm:$0xff] %vm456, %v3019
        %3028 = vst.msk [vmem:[%s447 + $0x20] sm:$0xff] %vm456, %v3020
        %3029 = vst.msk [vmem:[%s447 + $0x28] sm:$0xff] %vm456, %v3021
        %3030 = vst.msk [vmem:[%s447 + $0x30] sm:$0xff] %vm456, %v3022
        %3031 = vst.msk [vmem:[%s447 + $0x38] sm:$0xff] %vm456, %v3023
        %p3032 = scmp.lt.s32.totalorder %s25, 1
        %s3033 = scalar_select %p3032, %s25, 1
        %s3034 = smul.addr %s3033, 8
        %s3035 = smul.addr %s3034, 8
        %s3036 = scalar_lea.vmem %s12, %s3035
        // Predicated region
        $region77: #{tpu_custom_call.1} parent=67 // pred_check
          %p3037 = pneg %p300
        $region78: #{tpu_custom_call.1} parent=67 // pred_check_branch
          %3039 = sbr.rel (%p3037) target = $region80
        $region79: #{tpu_custom_call.1} parent=67 // pred_region
          _
        $region80: #{tpu_custom_call.1} parent=67 // pred_fallthru
          _
      $region68: #{tpu_custom_call.1} parent=5 // pred_fallthru
        _
      %p3040 = scmp.le.s32.totalorder 2, %s20
      // Predicated region
      $region81: #{tpu_custom_call.1} parent=5 // pred_check
        %p3041 = pneg %p3040
      $region82: #{tpu_custom_call.1} parent=5 // pred_check_branch
        %3043 = sbr.rel (%p3041) target = $region84
      $region83: #{tpu_custom_call.1} parent=5 // pred_region
        %s3044 = ssub.s32 %s20, 2
        // Predicated region
        $region85: #{tpu_custom_call.1} parent=83 // pred_check
          %p3045 = pneg %p306
        $region86: #{tpu_custom_call.1} parent=83 // pred_check_branch
          %3047 = sbr.rel (%p3045) target = $region88
        $region87: #{tpu_custom_call.1} parent=83 // pred_region
          %p3048 = scmp.lt.s32.totalorder %s26, 1
          %s3049 = scalar_select %p3048, %s26, 1
          %s3050 = smul.addr %s3049, 8
          %s3051 = smul.addr %s3050, 8
          %s3052 = scalar_lea.vmem %s12, %s3051
        $region88: #{tpu_custom_call.1} parent=83 // pred_fallthru
          _
      $region84: #{tpu_custom_call.1} parent=5 // pred_fallthru
        _
    $region6: #{tpu_custom_call.1} parent=1 // loop_footer
      %s24 = sadd.s32 1, %s20
    $region7: #{tpu_custom_call.1} parent=1 // loop_footer_branch
      %19 = sbr.rel target = $region3
    $region8: #{tpu_custom_call.1} parent=1 // loop_exit
      _
    %3053 = vsyncpa [#allocation3], 1
    %s3054 = scalar_lea.sflag [#allocation3], 1
    %3055 = vsyncpa %s3054, 1
    %3056 = vsyncpa [#allocation5], 1

</llo_original>
